<compile_context>
chip_gen: v7x
topology: tpu7x:2x2x1
jax: 0.10.0
libtpu: 0.0.40
codegen_flags: <defaults>
</compile_context>

<pallas_src>
import functools

import jax
import jax.numpy as jnp
from jax.experimental import pallas as pl
from jax.experimental.pallas import tpu as pltpu


def _round_up(x, m):
    return (x + m - 1) // m * m


def _pad2d(x, rows, cols):
    pr, pc = rows - x.shape[0], cols - x.shape[1]
    if pr == 0 and pc == 0:
        return x
    return jnp.pad(x, ((0, pr), (0, pc)))


# --------------------------------------------------------------- matmul kernel
def _matmul_kernel(a_ref, b_ref, o_ref, acc_ref, *, act):
    @pl.when(pl.program_id(2) == 0)
    def _init():
        acc_ref[...] = jnp.zeros_like(acc_ref)

    acc_ref[...] += jnp.dot(a_ref[...], b_ref[...],
                            preferred_element_type=jnp.float32)

    @pl.when(pl.program_id(2) == pl.num_programs(2) - 1)
    def _store():
        y = acc_ref[...]
        if act == "tanh":
            y = jnp.tanh(y)
        o_ref[...] = y.astype(o_ref.dtype)


def pallas_matmul(a, b, act=None, out_dtype=jnp.float32):
    """(M, K) @ (K, N) -> (M, N). bf16 MXU operands, f32 accumulation in VMEM,
    optional activation fused on the last K step. Tiled over (M, N, K)."""
    M, K = a.shape
    K2, N = b.shape
    assert K == K2
    Mp = _round_up(M, 16)       # bf16 sublane tile
    Kp = _round_up(K, 128)
    Np = _round_up(N, 128)
    if Mp <= 512:
        TM = Mp
    else:
        TM = max(t for t in (512, 256, 128, 64, 32, 16) if Mp % t == 0)
    TN = Np if Np <= 256 else (256 if Np % 256 == 0 else 128)
    TK = Kp if Kp <= 512 else (512 if Kp % 512 == 0 else
                               (256 if Kp % 256 == 0 else 128))
    a_p = _pad2d(a.astype(jnp.bfloat16), Mp, Kp)
    b_p = _pad2d(b.astype(jnp.bfloat16), Kp, Np)
    out = pl.pallas_call(
        functools.partial(_matmul_kernel, act=act),
        out_shape=jax.ShapeDtypeStruct((Mp, Np), out_dtype),
        grid=(Mp // TM, Np // TN, Kp // TK),
        in_specs=[
            pl.BlockSpec((TM, TK), lambda i, j, k: (i, k)),
            pl.BlockSpec((TK, TN), lambda i, j, k: (k, j)),
        ],
        out_specs=pl.BlockSpec((TM, TN), lambda i, j, k: (i, j)),
        scratch_shapes=[pltpu.VMEM((TM, TN), jnp.float32)],
        compiler_params=pltpu.CompilerParams(
            dimension_semantics=("parallel", "parallel", "arbitrary"),
            vmem_limit_bytes=32 * 1024 * 1024),
    )(a_p, b_p)
    if (Mp, Np) != (M, N):
        out = out[:M, :N]
    return out


# -------------------------------------------- fused BatchNorm scale/bias + ReLU
def _scale_bias_relu_kernel(x_ref, s_ref, b_ref, o_ref):
    y = x_ref[...] * s_ref[...] + b_ref[...]
    o_ref[...] = jnp.maximum(y, 0.0).astype(o_ref.dtype)


def pallas_scale_bias_relu(x, scale, bias, out_dtype=jnp.bfloat16):
    """x: (M, C) f32; per-channel affine (folded BatchNorm) + ReLU.
    Large row tiles (mem-bound path); bf16 output feeds next layer's matmul."""
    M, C = x.shape
    Mp = _round_up(M, 8)
    if Mp <= 1024:
        TM = Mp
    else:
        TM = max(t for t in (1024, 512, 256, 128, 64, 32, 16, 8) if Mp % t == 0)
    x_p = _pad2d(x, Mp, C)
    out = pl.pallas_call(
        _scale_bias_relu_kernel,
        out_shape=jax.ShapeDtypeStruct((Mp, C), out_dtype),
        grid=(Mp // TM,),
        in_specs=[
            pl.BlockSpec((TM, C), lambda i: (i, 0)),
            pl.BlockSpec((1, C), lambda i: (0, 0)),
            pl.BlockSpec((1, C), lambda i: (0, 0)),
        ],
        out_specs=pl.BlockSpec((TM, C), lambda i: (i, 0)),
        compiler_params=pltpu.CompilerParams(
            dimension_semantics=("parallel",),
            vmem_limit_bytes=32 * 1024 * 1024),
    )(x_p, scale.reshape(1, C).astype(jnp.float32),
      bias.reshape(1, C).astype(jnp.float32))
    return out[:M] if Mp != M else out


def batchnorm_relu(x2d, gamma, beta, eps):
    """PyTorch training-mode BatchNorm2d forward (biased batch variance),
    folded to per-channel scale/bias; applied by the Pallas elementwise kernel."""
    mean = jnp.mean(x2d, axis=0)
    var = jnp.mean(jnp.square(x2d - mean), axis=0)
    scale = gamma * jax.lax.rsqrt(var + eps)
    bias = beta - mean * scale
    return pallas_scale_bias_relu(x2d, scale, bias)


# ----------------------------------------------------- ConvTranspose2d lowering
def _wflip(w):
    """(CI, CO, KH, KW) -> (KH, KW, CI, CO), spatially flipped."""
    return jnp.transpose(jnp.flip(w, (2, 3)), (2, 3, 0, 1))


def conv_t_1x1_input(z2d, w):
    """ConvTranspose2d(k=4, s=1, p=0) on a 1x1 spatial input.
    z2d: (N, CI). Returns ((N*KH*KW, CO) f32 with rows in (n, kh, kw), dims)."""
    CI, CO, KH, KW = w.shape
    wm = jnp.transpose(w, (0, 2, 3, 1)).reshape(CI, KH * KW * CO)
    out = pallas_matmul(z2d, wm)                            # (N, KH*KW*CO)
    return out.reshape(-1, CO), (z2d.shape[0], KH, KW, CO)


def conv_t_s2_phases(x_nhwc, w):
    """ConvTranspose2d(k=4, s=2, p=1, bias=False) via sub-pixel decomposition:
    4 phase matmuls with 2x2 effective kernels (no multiply-by-inserted-zeros).
    x_nhwc: (N, H, W, CI). Returns ((4, N*H*W, CO) f32 phase-major, dims)."""
    CI, CO, _, _ = w.shape
    N, H, W, _ = x_nhwc.shape
    wf = _wflip(w)                                          # (4, 4, CI, CO)
    outs = []
    for py in (0, 1):
        for px in (0, 1):
            xp = jnp.pad(x_nhwc, ((0, 0), (1 - py, py), (1 - px, px), (0, 0)))
            cols = jnp.concatenate(
                [xp[:, dy:dy + H, dw:dw + W, :] for dy in (0, 1) for dw in (0, 1)],
                axis=-1).reshape(N * H * W, 4 * CI)
            wm = wf[py::2, px::2].reshape(4 * CI, CO)
            outs.append(pallas_matmul(cols, wm))            # (N*H*W, CO) f32
    return jnp.stack(outs, axis=0), (N, H, W, CO)


def interleave_phases_nhwc(stacked, N, H, W, CO):
    """(4, N*H*W, CO) phase-major -> (N, 2H, 2W, CO)."""
    y = stacked.reshape(2, 2, N, H, W, CO)
    y = jnp.transpose(y, (2, 3, 0, 4, 1, 5))                # (N, H, py, W, px, CO)
    return y.reshape(N, 2 * H, 2 * W, CO)


def conv_t_s2_tanh_nchw(x_nhwc, w):
    """Final ConvTranspose2d(k=4, s=2, p=1) + Tanh, computed channel-major so the
    wide spatial axis maps to TPU lanes; tanh fused in the matmul epilogue.
    Returns (N, CO, 2H, 2W) f32 (already NCHW)."""
    CI, CO, _, _ = w.shape
    N, H, W, _ = x_nhwc.shape
    wf = _wflip(w)
    x_nchw = jnp.transpose(x_nhwc, (0, 3, 1, 2))            # (N, CI, H, W)
    outs = []
    for py in (0, 1):
        for px in (0, 1):
            xp = jnp.pad(x_nchw, ((0, 0), (0, 0), (1 - py, py), (1 - px, px)))
            taps = jnp.stack(
                [xp[:, :, dy:dy + H, dw:dw + W] for dy in (0, 1) for dw in (0, 1)],
                axis=0)                                     # (4, N, CI, H, W)
            bmat = jnp.transpose(taps, (0, 2, 1, 3, 4)).reshape(4 * CI, N * H * W)
            amat = jnp.transpose(wf[py::2, px::2], (3, 0, 1, 2)).reshape(CO, 4 * CI)
            outs.append(pallas_matmul(amat, bmat, act="tanh"))   # (CO, N*H*W)
    y = jnp.stack(outs, axis=0).reshape(2, 2, CO, N, H, W)
    y = jnp.transpose(y, (3, 2, 4, 0, 5, 1))                # (N, CO, H, py, W, px)
    return y.reshape(N, CO, 2 * H, 2 * W)


def conv_t_s1_tanh_nchw(x_nhwc, w):
    """Final ConvTranspose2d(k=4, s=1, p=1) + Tanh (output_size=32 path)."""
    CI, CO, KH, KW = w.shape
    N, H, W, _ = x_nhwc.shape
    OH, OW = H + 1, W + 1
    xp = jnp.pad(x_nhwc, ((0, 0), (2, 2), (2, 2), (0, 0)))
    cols = jnp.concatenate(
        [xp[:, kh:kh + OH, kw:kw + OW, :] for kh in range(KH) for kw in range(KW)],
        axis=-1).reshape(N * OH * OW, KH * KW * CI)
    wm = _wflip(w).reshape(KH * KW * CI, CO)
    out = pallas_matmul(cols, wm, act="tanh").reshape(N, OH, OW, CO)
    return jnp.transpose(out, (0, 3, 1, 2))


# --------------------------------------------------------------- Generator model
def init_generator_params(key, num_channels, num_features, latent_vect_size):
    nz, ngf, nc = latent_vect_size, num_features, num_channels
    dims = [(nz, ngf * 8), (ngf * 8, ngf * 4), (ngf * 4, ngf * 2),
            (ngf * 2, ngf), (ngf, nc)]
    params = {"w": [], "gamma": [], "beta": []}
    for i, (ci, co) in enumerate(dims):
        key, k1, k2 = jax.random.split(key, 3)
        params["w"].append(0.02 * jax.random.normal(k1, (ci, co, 4, 4), jnp.float32))
        if i < 4:  # last layer has no BatchNorm
            params["gamma"].append(1.0 + 0.02 * jax.random.normal(k2, (co,), jnp.float32))
            params["beta"].append(jnp.zeros((co,), jnp.float32))
    return params


def generator_forward(z_nchw, params, output_size=64):
    eps = 1e-5
    ws, gammas, betas = params["w"], params["gamma"], params["beta"]
    N = z_nchw.shape[0]
    z2d = z_nchw.reshape(N, -1).astype(jnp.bfloat16)

    # layer 1: ConvTranspose(nz, ngf*8, 4, 1, 0) + BN + ReLU
    out2d, (n_, h_, w_, co) = conv_t_1x1_input(z2d, ws[0])
    x = batchnorm_relu(out2d, gammas[0], betas[0], eps).reshape(n_, h_, w_, co)

    # layers 2-4: ConvTranspose(ci, co, 4, 2, 1) + BN + ReLU (sub-pixel phases)
    for layer in (1, 2, 3):
        stacked, (n_, h_, w_, co) = conv_t_s2_phases(x, ws[layer])
        flat = batchnorm_relu(stacked.reshape(-1, co), gammas[layer], betas[layer], eps)
        x = interleave_phases_nhwc(flat.reshape(4, n_ * h_ * w_, co), n_, h_, w_, co)

    # layer 5: ConvTranspose(ngf, nc, 4, final_stride, 1) + Tanh -> NCHW
    if output_size == 64:
        return conv_t_s2_tanh_nchw(x, ws[4])
    return conv_t_s1_tanh_nchw(x, ws[4])


if __name__ == "__main__":
    batch, nz, ngf, nc = 2, 16, 8, 3
    key = jax.random.PRNGKey(0)
    kp, kz = jax.random.split(key)
    params = init_generator_params(kp, num_channels=nc, num_features=ngf,
                                   latent_vect_size=nz)
    z = jax.random.normal(kz, (batch, nz, 1, 1), jnp.float32)

    fwd = jax.jit(functools.partial(generator_forward, output_size=64))
    out = jax.block_until_ready(fwd(z, params))

    assert out.shape == (batch, nc, 64, 64), out.shape
    assert bool(jnp.all(jnp.isfinite(out)))
    assert bool(jnp.all(jnp.abs(out) <= 1.0))  # tanh range
    print("KERNEL_OK")
</pallas_src>

<mosaic_0001>
module attributes {stable_mosaic.version = 11 : i64} {
  func.func @_matmul_kernel(%arg0: i32, %arg1: i32, %arg2: i32, %arg3: memref<16x128xbf16, #tpu.memory_space<vmem>>, %arg4: memref<128x256xbf16, #tpu.memory_space<vmem>>, %arg5: memref<16x256xf32, #tpu.memory_space<vmem>>, %arg6: memref<16x256xf32, #tpu.memory_space<vmem>>) attributes {dimension_semantics = [#tpu.dimension_semantics<parallel>, #tpu.dimension_semantics<parallel>, #tpu.dimension_semantics<arbitrary>], iteration_bounds = array<i64: 1, 4, 1>, scalar_prefetch = 0 : i64, scratch_operands = 1 : i64, tpu.core_type = #tpu.core_type<tc>, window_params = [{transform_indices = @transform_0, window_bounds = array<i64: 16, 128>}, {transform_indices = @transform_1, window_bounds = array<i64: 128, 256>}, {transform_indices = @transform_2, window_bounds = array<i64: 16, 256>}]} {
    %c0_i32 = arith.constant 0 : i32
    %0 = arith.cmpi eq, %arg2, %c0_i32 : i32
    %1 = arith.extui %0 : i1 to i32
    %c0_i32_0 = arith.constant 0 : i32
    %2 = arith.cmpi ne, %1, %c0_i32_0 : i32
    scf.if %2 {
      %cst_10 = arith.constant 0.000000e+00 : f32
      %12 = vector.broadcast %cst_10 : f32 to vector<16x256xf32>
      %c0_11 = arith.constant 0 : index
      %c0_12 = arith.constant 0 : index
      %13 = vector.load %arg6[%c0_11, %c0_12] : memref<16x256xf32, #tpu.memory_space<vmem>>, vector<16x256xf32>
      tpu.vector_store %arg6[%c0_11, %c0_12], %12 {strides = array<i32>} : memref<16x256xf32, #tpu.memory_space<vmem>>, vector<16x256xf32>,
    } else {
    }
    %c0 = arith.constant 0 : index
    %c0_1 = arith.constant 0 : index
    %3 = vector.load %arg6[%c0, %c0_1] : memref<16x256xf32, #tpu.memory_space<vmem>>, vector<16x256xf32>
    %c0_2 = arith.constant 0 : index
    %c0_3 = arith.constant 0 : index
    %4 = vector.load %arg3[%c0_2, %c0_3] : memref<16x128xbf16, #tpu.memory_space<vmem>>, vector<16x128xbf16>
    %c0_4 = arith.constant 0 : index
    %c0_5 = arith.constant 0 : index
    %5 = vector.load %arg4[%c0_4, %c0_5] : memref<128x256xbf16, #tpu.memory_space<vmem>>, vector<128x256xbf16>
    %cst = arith.constant dense<0.000000e+00> : vector<16x256xf32>
    %6 = tpu.matmul %4, %5, %cst {dimension_numbers = #tpu.dot_dimension_numbers<[1], [0], [0], [1], [0, 0, 1, 1], [], []>} : vector<16x128xbf16>, vector<128x256xbf16>, vector<16x256xf32> -> vector<16x256xf32>
    %7 = arith.addf %3, %6 : vector<16x256xf32>
    %c0_6 = arith.constant 0 : index
    %c0_7 = arith.constant 0 : index
    %8 = vector.load %arg6[%c0_6, %c0_7] : memref<16x256xf32, #tpu.memory_space<vmem>>, vector<16x256xf32>
    tpu.vector_store %arg6[%c0_6, %c0_7], %7 {strides = array<i32>} : memref<16x256xf32, #tpu.memory_space<vmem>>, vector<16x256xf32>,
    %c0_i32_8 = arith.constant 0 : i32
    %9 = arith.cmpi eq, %arg2, %c0_i32_8 : i32
    %10 = arith.extui %9 : i1 to i32
    %c0_i32_9 = arith.constant 0 : i32
    %11 = arith.cmpi ne, %10, %c0_i32_9 : i32
    scf.if %11 {
      %c0_10 = arith.constant 0 : index
      %c0_11 = arith.constant 0 : index
      %12 = vector.load %arg6[%c0_10, %c0_11] : memref<16x256xf32, #tpu.memory_space<vmem>>, vector<16x256xf32>
      %c0_12 = arith.constant 0 : index
      %c0_13 = arith.constant 0 : index
      %13 = vector.load %arg5[%c0_12, %c0_13] : memref<16x256xf32, #tpu.memory_space<vmem>>, vector<16x256xf32>
      tpu.vector_store %arg5[%c0_12, %c0_13], %12 {strides = array<i32>} : memref<16x256xf32, #tpu.memory_space<vmem>>, vector<16x256xf32>,
    } else {
    }
    return
  }
  func.func @transform_0(%arg0: i32, %arg1: i32, %arg2: i32) -> (i32, i32) {
    %c0_i32 = arith.constant 0 : i32
    return %arg0, %arg2 : i32, i32
  }
  func.func @transform_1(%arg0: i32, %arg1: i32, %arg2: i32) -> (i32, i32) {
    %c0_i32 = arith.constant 0 : i32
    return %arg2, %arg1 : i32, i32
  }
  func.func @transform_2(%arg0: i32, %arg1: i32, %arg2: i32) -> (i32, i32) {
    %c0_i32 = arith.constant 0 : i32
    return %arg0, %arg1 : i32, i32
  }
}

module attributes {stable_mosaic.version = 11 : i64} {
  func.func @_scale_bias_relu_kernel(%arg0: i32, %arg1: memref<32x64xf32, #tpu.memory_space<vmem>>, %arg2: memref<1x64xf32, #tpu.memory_space<vmem>>, %arg3: memref<1x64xf32, #tpu.memory_space<vmem>>, %arg4: memref<32x64xbf16, #tpu.memory_space<vmem>>) attributes {dimension_semantics = [#tpu.dimension_semantics<parallel>], iteration_bounds = array<i64: 1>, scalar_prefetch = 0 : i64, scratch_operands = 0 : i64, tpu.core_type = #tpu.core_type<tc>, window_params = [{transform_indices = @transform_0, window_bounds = array<i64: 32, 64>}, {pipeline_mode = #tpu.pipeline_mode<synchronous>, transform_indices = @transform_1, window_bounds = array<i64: 1, 64>}, {pipeline_mode = #tpu.pipeline_mode<synchronous>, transform_indices = @transform_2, window_bounds = array<i64: 1, 64>}, {transform_indices = @transform_3, window_bounds = array<i64: 32, 64>}]} {
    %c0 = arith.constant 0 : index
    %c0_0 = arith.constant 0 : index
    %0 = vector.load %arg1[%c0, %c0_0] : memref<32x64xf32, #tpu.memory_space<vmem>>, vector<32x64xf32>
    %c0_1 = arith.constant 0 : index
    %c0_2 = arith.constant 0 : index
    %1 = vector.load %arg2[%c0_1, %c0_2] : memref<1x64xf32, #tpu.memory_space<vmem>>, vector<1x64xf32>
    %2 = vector.broadcast %1 : vector<1x64xf32> to vector<32x64xf32>
    %3 = arith.mulf %0, %2 : vector<32x64xf32>
    %c0_3 = arith.constant 0 : index
    %c0_4 = arith.constant 0 : index
    %4 = vector.load %arg3[%c0_3, %c0_4] : memref<1x64xf32, #tpu.memory_space<vmem>>, vector<1x64xf32>
    %5 = vector.broadcast %4 : vector<1x64xf32> to vector<32x64xf32>
    %6 = arith.addf %3, %5 : vector<32x64xf32>
    %cst = arith.constant 0.000000e+00 : f32
    %7 = vector.broadcast %cst : f32 to vector<32x64xf32>
    %8 = arith.maximumf %6, %7 : vector<32x64xf32>
    %9 = arith.truncf %8 : vector<32x64xf32> to vector<32x64xbf16>
    %c0_5 = arith.constant 0 : index
    %c0_6 = arith.constant 0 : index
    %10 = vector.load %arg4[%c0_5, %c0_6] : memref<32x64xbf16, #tpu.memory_space<vmem>>, vector<32x64xbf16>
    tpu.vector_store %arg4[%c0_5, %c0_6], %9 {strides = array<i32>} : memref<32x64xbf16, #tpu.memory_space<vmem>>, vector<32x64xbf16>,
    return
  }
  func.func @transform_0(%arg0: i32) -> (i32, i32) {
    %c0_i32 = arith.constant 0 : i32
    %c0_i32_0 = arith.constant 0 : i32
    return %arg0, %c0_i32 : i32, i32
  }
  func.func @transform_1(%arg0: i32) -> (i32, i32) {
    %c0_i32 = arith.constant 0 : i32
    %c0_i32_0 = arith.constant 0 : i32
    %c0_i32_1 = arith.constant 0 : i32
    return %c0_i32, %c0_i32_0 : i32, i32
  }
  func.func @transform_2(%arg0: i32) -> (i32, i32) {
    %c0_i32 = arith.constant 0 : i32
    %c0_i32_0 = arith.constant 0 : i32
    %c0_i32_1 = arith.constant 0 : i32
    return %c0_i32, %c0_i32_0 : i32, i32
  }
  func.func @transform_3(%arg0: i32) -> (i32, i32) {
    %c0_i32 = arith.constant 0 : i32
    %c0_i32_0 = arith.constant 0 : i32
    return %arg0, %c0_i32 : i32, i32
  }
}

module attributes {stable_mosaic.version = 11 : i64} {
  func.func @_matmul_kernel(%arg0: i32, %arg1: i32, %arg2: i32, %arg3: memref<32x256xbf16, #tpu.memory_space<vmem>>, %arg4: memref<256x128xbf16, #tpu.memory_space<vmem>>, %arg5: memref<32x128xf32, #tpu.memory_space<vmem>>, %arg6: memref<32x128xf32, #tpu.memory_space<vmem>>) attributes {dimension_semantics = [#tpu.dimension_semantics<parallel>, #tpu.dimension_semantics<parallel>, #tpu.dimension_semantics<arbitrary>], iteration_bounds = array<i64: 1, 1, 1>, scalar_prefetch = 0 : i64, scratch_operands = 1 : i64, tpu.core_type = #tpu.core_type<tc>, window_params = [{transform_indices = @transform_0, window_bounds = array<i64: 32, 256>}, {transform_indices = @transform_1, window_bounds = array<i64: 256, 128>}, {transform_indices = @transform_2, window_bounds = array<i64: 32, 128>}]} {
    %c0_i32 = arith.constant 0 : i32
    %0 = arith.cmpi eq, %arg2, %c0_i32 : i32
    %1 = arith.extui %0 : i1 to i32
    %c0_i32_0 = arith.constant 0 : i32
    %2 = arith.cmpi ne, %1, %c0_i32_0 : i32
    scf.if %2 {
      %cst_10 = arith.constant 0.000000e+00 : f32
      %12 = vector.broadcast %cst_10 : f32 to vector<32x128xf32>
      %c0_11 = arith.constant 0 : index
      %c0_12 = arith.constant 0 : index
      %13 = vector.load %arg6[%c0_11, %c0_12] : memref<32x128xf32, #tpu.memory_space<vmem>>, vector<32x128xf32>
      tpu.vector_store %arg6[%c0_11, %c0_12], %12 {strides = array<i32>} : memref<32x128xf32, #tpu.memory_space<vmem>>, vector<32x128xf32>,
    } else {
    }
    %c0 = arith.constant 0 : index
    %c0_1 = arith.constant 0 : index
    %3 = vector.load %arg6[%c0, %c0_1] : memref<32x128xf32, #tpu.memory_space<vmem>>, vector<32x128xf32>
    %c0_2 = arith.constant 0 : index
    %c0_3 = arith.constant 0 : index
    %4 = vector.load %arg3[%c0_2, %c0_3] : memref<32x256xbf16, #tpu.memory_space<vmem>>, vector<32x256xbf16>
    %c0_4 = arith.constant 0 : index
    %c0_5 = arith.constant 0 : index
    %5 = vector.load %arg4[%c0_4, %c0_5] : memref<256x128xbf16, #tpu.memory_space<vmem>>, vector<256x128xbf16>
    %cst = arith.constant dense<0.000000e+00> : vector<32x128xf32>
    %6 = tpu.matmul %4, %5, %cst {dimension_numbers = #tpu.dot_dimension_numbers<[1], [0], [0], [1], [0, 0, 1, 1], [], []>} : vector<32x256xbf16>, vector<256x128xbf16>, vector<32x128xf32> -> vector<32x128xf32>
    %7 = arith.addf %3, %6 : vector<32x128xf32>
    %c0_6 = arith.constant 0 : index
    %c0_7 = arith.constant 0 : index
    %8 = vector.load %arg6[%c0_6, %c0_7] : memref<32x128xf32, #tpu.memory_space<vmem>>, vector<32x128xf32>
    tpu.vector_store %arg6[%c0_6, %c0_7], %7 {strides = array<i32>} : memref<32x128xf32, #tpu.memory_space<vmem>>, vector<32x128xf32>,
    %c0_i32_8 = arith.constant 0 : i32
    %9 = arith.cmpi eq, %arg2, %c0_i32_8 : i32
    %10 = arith.extui %9 : i1 to i32
    %c0_i32_9 = arith.constant 0 : i32
    %11 = arith.cmpi ne, %10, %c0_i32_9 : i32
    scf.if %11 {
      %c0_10 = arith.constant 0 : index
      %c0_11 = arith.constant 0 : index
      %12 = vector.load %arg6[%c0_10, %c0_11] : memref<32x128xf32, #tpu.memory_space<vmem>>, vector<32x128xf32>
      %c0_12 = arith.constant 0 : index
      %c0_13 = arith.constant 0 : index
      %13 = vector.load %arg5[%c0_12, %c0_13] : memref<32x128xf32, #tpu.memory_space<vmem>>, vector<32x128xf32>
      tpu.vector_store %arg5[%c0_12, %c0_13], %12 {strides = array<i32>} : memref<32x128xf32, #tpu.memory_space<vmem>>, vector<32x128xf32>,
    } else {
    }
    return
  }
  func.func @transform_0(%arg0: i32, %arg1: i32, %arg2: i32) -> (i32, i32) {
    %c0_i32 = arith.constant 0 : i32
    return %arg0, %arg2 : i32, i32
  }
  func.func @transform_1(%arg0: i32, %arg1: i32, %arg2: i32) -> (i32, i32) {
    %c0_i32 = arith.constant 0 : i32
    return %arg2, %arg1 : i32, i32
  }
  func.func @transform_2(%arg0: i32, %arg1: i32, %arg2: i32) -> (i32, i32) {
    %c0_i32 = arith.constant 0 : i32
    return %arg0, %arg1 : i32, i32
  }
}

module attributes {stable_mosaic.version = 11 : i64} {
  func.func @_scale_bias_relu_kernel(%arg0: i32, %arg1: memref<128x32xf32, #tpu.memory_space<vmem>>, %arg2: memref<1x32xf32, #tpu.memory_space<vmem>>, %arg3: memref<1x32xf32, #tpu.memory_space<vmem>>, %arg4: memref<128x32xbf16, #tpu.memory_space<vmem>>) attributes {dimension_semantics = [#tpu.dimension_semantics<parallel>], iteration_bounds = array<i64: 1>, scalar_prefetch = 0 : i64, scratch_operands = 0 : i64, tpu.core_type = #tpu.core_type<tc>, window_params = [{transform_indices = @transform_0, window_bounds = array<i64: 128, 32>}, {pipeline_mode = #tpu.pipeline_mode<synchronous>, transform_indices = @transform_1, window_bounds = array<i64: 1, 32>}, {pipeline_mode = #tpu.pipeline_mode<synchronous>, transform_indices = @transform_2, window_bounds = array<i64: 1, 32>}, {transform_indices = @transform_3, window_bounds = array<i64: 128, 32>}]} {
    %c0 = arith.constant 0 : index
    %c0_0 = arith.constant 0 : index
    %0 = vector.load %arg1[%c0, %c0_0] : memref<128x32xf32, #tpu.memory_space<vmem>>, vector<128x32xf32>
    %c0_1 = arith.constant 0 : index
    %c0_2 = arith.constant 0 : index
    %1 = vector.load %arg2[%c0_1, %c0_2] : memref<1x32xf32, #tpu.memory_space<vmem>>, vector<1x32xf32>
    %2 = vector.broadcast %1 : vector<1x32xf32> to vector<128x32xf32>
    %3 = arith.mulf %0, %2 : vector<128x32xf32>
    %c0_3 = arith.constant 0 : index
    %c0_4 = arith.constant 0 : index
    %4 = vector.load %arg3[%c0_3, %c0_4] : memref<1x32xf32, #tpu.memory_space<vmem>>, vector<1x32xf32>
    %5 = vector.broadcast %4 : vector<1x32xf32> to vector<128x32xf32>
    %6 = arith.addf %3, %5 : vector<128x32xf32>
    %cst = arith.constant 0.000000e+00 : f32
    %7 = vector.broadcast %cst : f32 to vector<128x32xf32>
    %8 = arith.maximumf %6, %7 : vector<128x32xf32>
    %9 = arith.truncf %8 : vector<128x32xf32> to vector<128x32xbf16>
    %c0_5 = arith.constant 0 : index
    %c0_6 = arith.constant 0 : index
    %10 = vector.load %arg4[%c0_5, %c0_6] : memref<128x32xbf16, #tpu.memory_space<vmem>>, vector<128x32xbf16>
    tpu.vector_store %arg4[%c0_5, %c0_6], %9 {strides = array<i32>} : memref<128x32xbf16, #tpu.memory_space<vmem>>, vector<128x32xbf16>,
    return
  }
  func.func @transform_0(%arg0: i32) -> (i32, i32) {
    %c0_i32 = arith.constant 0 : i32
    %c0_i32_0 = arith.constant 0 : i32
    return %arg0, %c0_i32 : i32, i32
  }
  func.func @transform_1(%arg0: i32) -> (i32, i32) {
    %c0_i32 = arith.constant 0 : i32
    %c0_i32_0 = arith.constant 0 : i32
    %c0_i32_1 = arith.constant 0 : i32
    return %c0_i32, %c0_i32_0 : i32, i32
  }
  func.func @transform_2(%arg0: i32) -> (i32, i32) {
    %c0_i32 = arith.constant 0 : i32
    %c0_i32_0 = arith.constant 0 : i32
    %c0_i32_1 = arith.constant 0 : i32
    return %c0_i32, %c0_i32_0 : i32, i32
  }
  func.func @transform_3(%arg0: i32) -> (i32, i32) {
    %c0_i32 = arith.constant 0 : i32
    %c0_i32_0 = arith.constant 0 : i32
    return %arg0, %c0_i32 : i32, i32
  }
}

module attributes {stable_mosaic.version = 11 : i64} {
  func.func @_matmul_kernel(%arg0: i32, %arg1: i32, %arg2: i32, %arg3: memref<128x128xbf16, #tpu.memory_space<vmem>>, %arg4: memref<128x128xbf16, #tpu.memory_space<vmem>>, %arg5: memref<128x128xf32, #tpu.memory_space<vmem>>, %arg6: memref<128x128xf32, #tpu.memory_space<vmem>>) attributes {dimension_semantics = [#tpu.dimension_semantics<parallel>, #tpu.dimension_semantics<parallel>, #tpu.dimension_semantics<arbitrary>], iteration_bounds = array<i64: 1, 1, 1>, scalar_prefetch = 0 : i64, scratch_operands = 1 : i64, tpu.core_type = #tpu.core_type<tc>, window_params = [{transform_indices = @transform_0, window_bounds = array<i64: 128, 128>}, {transform_indices = @transform_1, window_bounds = array<i64: 128, 128>}, {transform_indices = @transform_2, window_bounds = array<i64: 128, 128>}]} {
    %c0_i32 = arith.constant 0 : i32
    %0 = arith.cmpi eq, %arg2, %c0_i32 : i32
    %1 = arith.extui %0 : i1 to i32
    %c0_i32_0 = arith.constant 0 : i32
    %2 = arith.cmpi ne, %1, %c0_i32_0 : i32
    scf.if %2 {
      %cst_10 = arith.constant 0.000000e+00 : f32
      %12 = vector.broadcast %cst_10 : f32 to vector<128x128xf32>
      %c0_11 = arith.constant 0 : index
      %c0_12 = arith.constant 0 : index
      %13 = vector.load %arg6[%c0_11, %c0_12] : memref<128x128xf32, #tpu.memory_space<vmem>>, vector<128x128xf32>
      tpu.vector_store %arg6[%c0_11, %c0_12], %12 {strides = array<i32>} : memref<128x128xf32, #tpu.memory_space<vmem>>, vector<128x128xf32>,
    } else {
    }
    %c0 = arith.constant 0 : index
    %c0_1 = arith.constant 0 : index
    %3 = vector.load %arg6[%c0, %c0_1] : memref<128x128xf32, #tpu.memory_space<vmem>>, vector<128x128xf32>
    %c0_2 = arith.constant 0 : index
    %c0_3 = arith.constant 0 : index
    %4 = vector.load %arg3[%c0_2, %c0_3] : memref<128x128xbf16, #tpu.memory_space<vmem>>, vector<128x128xbf16>
    %c0_4 = arith.constant 0 : index
    %c0_5 = arith.constant 0 : index
    %5 = vector.load %arg4[%c0_4, %c0_5] : memref<128x128xbf16, #tpu.memory_space<vmem>>, vector<128x128xbf16>
    %cst = arith.constant dense<0.000000e+00> : vector<128x128xf32>
    %6 = tpu.matmul %4, %5, %cst {dimension_numbers = #tpu.dot_dimension_numbers<[1], [0], [0], [1], [0, 0, 1, 1], [], []>} : vector<128x128xbf16>, vector<128x128xbf16>, vector<128x128xf32> -> vector<128x128xf32>
    %7 = arith.addf %3, %6 : vector<128x128xf32>
    %c0_6 = arith.constant 0 : index
    %c0_7 = arith.constant 0 : index
    %8 = vector.load %arg6[%c0_6, %c0_7] : memref<128x128xf32, #tpu.memory_space<vmem>>, vector<128x128xf32>
    tpu.vector_store %arg6[%c0_6, %c0_7], %7 {strides = array<i32>} : memref<128x128xf32, #tpu.memory_space<vmem>>, vector<128x128xf32>,
    %c0_i32_8 = arith.constant 0 : i32
    %9 = arith.cmpi eq, %arg2, %c0_i32_8 : i32
    %10 = arith.extui %9 : i1 to i32
    %c0_i32_9 = arith.constant 0 : i32
    %11 = arith.cmpi ne, %10, %c0_i32_9 : i32
    scf.if %11 {
      %c0_10 = arith.constant 0 : index
      %c0_11 = arith.constant 0 : index
      %12 = vector.load %arg6[%c0_10, %c0_11] : memref<128x128xf32, #tpu.memory_space<vmem>>, vector<128x128xf32>
      %c0_12 = arith.constant 0 : index
      %c0_13 = arith.constant 0 : index
      %13 = vector.load %arg5[%c0_12, %c0_13] : memref<128x128xf32, #tpu.memory_space<vmem>>, vector<128x128xf32>
      tpu.vector_store %arg5[%c0_12, %c0_13], %12 {strides = array<i32>} : memref<128x128xf32, #tpu.memory_space<vmem>>, vector<128x128xf32>,
    } else {
    }
    return
  }
  func.func @transform_0(%arg0: i32, %arg1: i32, %arg2: i32) -> (i32, i32) {
    %c0_i32 = arith.constant 0 : i32
    return %arg0, %arg2 : i32, i32
  }
  func.func @transform_1(%arg0: i32, %arg1: i32, %arg2: i32) -> (i32, i32) {
    %c0_i32 = arith.constant 0 : i32
    return %arg2, %arg1 : i32, i32
  }
  func.func @transform_2(%arg0: i32, %arg1: i32, %arg2: i32) -> (i32, i32) {
    %c0_i32 = arith.constant 0 : i32
    return %arg0, %arg1 : i32, i32
  }
}

module attributes {stable_mosaic.version = 11 : i64} {
  func.func @_scale_bias_relu_kernel(%arg0: i32, %arg1: memref<512x16xf32, #tpu.memory_space<vmem>>, %arg2: memref<1x16xf32, #tpu.memory_space<vmem>>, %arg3: memref<1x16xf32, #tpu.memory_space<vmem>>, %arg4: memref<512x16xbf16, #tpu.memory_space<vmem>>) attributes {dimension_semantics = [#tpu.dimension_semantics<parallel>], iteration_bounds = array<i64: 1>, scalar_prefetch = 0 : i64, scratch_operands = 0 : i64, tpu.core_type = #tpu.core_type<tc>, window_params = [{transform_indices = @transform_0, window_bounds = array<i64: 512, 16>}, {pipeline_mode = #tpu.pipeline_mode<synchronous>, transform_indices = @transform_1, window_bounds = array<i64: 1, 16>}, {pipeline_mode = #tpu.pipeline_mode<synchronous>, transform_indices = @transform_2, window_bounds = array<i64: 1, 16>}, {transform_indices = @transform_3, window_bounds = array<i64: 512, 16>}]} {
    %c0 = arith.constant 0 : index
    %c0_0 = arith.constant 0 : index
    %0 = vector.load %arg1[%c0, %c0_0] : memref<512x16xf32, #tpu.memory_space<vmem>>, vector<512x16xf32>
    %c0_1 = arith.constant 0 : index
    %c0_2 = arith.constant 0 : index
    %1 = vector.load %arg2[%c0_1, %c0_2] : memref<1x16xf32, #tpu.memory_space<vmem>>, vector<1x16xf32>
    %2 = vector.broadcast %1 : vector<1x16xf32> to vector<512x16xf32>
    %3 = arith.mulf %0, %2 : vector<512x16xf32>
    %c0_3 = arith.constant 0 : index
    %c0_4 = arith.constant 0 : index
    %4 = vector.load %arg3[%c0_3, %c0_4] : memref<1x16xf32, #tpu.memory_space<vmem>>, vector<1x16xf32>
    %5 = vector.broadcast %4 : vector<1x16xf32> to vector<512x16xf32>
    %6 = arith.addf %3, %5 : vector<512x16xf32>
    %cst = arith.constant 0.000000e+00 : f32
    %7 = vector.broadcast %cst : f32 to vector<512x16xf32>
    %8 = arith.maximumf %6, %7 : vector<512x16xf32>
    %9 = arith.truncf %8 : vector<512x16xf32> to vector<512x16xbf16>
    %c0_5 = arith.constant 0 : index
    %c0_6 = arith.constant 0 : index
    %10 = vector.load %arg4[%c0_5, %c0_6] : memref<512x16xbf16, #tpu.memory_space<vmem>>, vector<512x16xbf16>
    tpu.vector_store %arg4[%c0_5, %c0_6], %9 {strides = array<i32>} : memref<512x16xbf16, #tpu.memory_space<vmem>>, vector<512x16xbf16>,
    return
  }
  func.func @transform_0(%arg0: i32) -> (i32, i32) {
    %c0_i32 = arith.constant 0 : i32
    %c0_i32_0 = arith.constant 0 : i32
    return %arg0, %c0_i32 : i32, i32
  }
  func.func @transform_1(%arg0: i32) -> (i32, i32) {
    %c0_i32 = arith.constant 0 : i32
    %c0_i32_0 = arith.constant 0 : i32
    %c0_i32_1 = arith.constant 0 : i32
    return %c0_i32, %c0_i32_0 : i32, i32
  }
  func.func @transform_2(%arg0: i32) -> (i32, i32) {
    %c0_i32 = arith.constant 0 : i32
    %c0_i32_0 = arith.constant 0 : i32
    %c0_i32_1 = arith.constant 0 : i32
    return %c0_i32, %c0_i32_0 : i32, i32
  }
  func.func @transform_3(%arg0: i32) -> (i32, i32) {
    %c0_i32 = arith.constant 0 : i32
    %c0_i32_0 = arith.constant 0 : i32
    return %arg0, %c0_i32 : i32, i32
  }
}

module attributes {stable_mosaic.version = 11 : i64} {
  func.func @_matmul_kernel(%arg0: i32, %arg1: i32, %arg2: i32, %arg3: memref<512x128xbf16, #tpu.memory_space<vmem>>, %arg4: memref<128x128xbf16, #tpu.memory_space<vmem>>, %arg5: memref<512x128xf32, #tpu.memory_space<vmem>>, %arg6: memref<512x128xf32, #tpu.memory_space<vmem>>) attributes {dimension_semantics = [#tpu.dimension_semantics<parallel>, #tpu.dimension_semantics<parallel>, #tpu.dimension_semantics<arbitrary>], iteration_bounds = array<i64: 1, 1, 1>, scalar_prefetch = 0 : i64, scratch_operands = 1 : i64, tpu.core_type = #tpu.core_type<tc>, window_params = [{transform_indices = @transform_0, window_bounds = array<i64: 512, 128>}, {transform_indices = @transform_1, window_bounds = array<i64: 128, 128>}, {transform_indices = @transform_2, window_bounds = array<i64: 512, 128>}]} {
    %c0_i32 = arith.constant 0 : i32
    %0 = arith.cmpi eq, %arg2, %c0_i32 : i32
    %1 = arith.extui %0 : i1 to i32
    %c0_i32_0 = arith.constant 0 : i32
    %2 = arith.cmpi ne, %1, %c0_i32_0 : i32
    scf.if %2 {
      %cst_10 = arith.constant 0.000000e+00 : f32
      %12 = vector.broadcast %cst_10 : f32 to vector<512x128xf32>
      %c0_11 = arith.constant 0 : index
      %c0_12 = arith.constant 0 : index
      %13 = vector.load %arg6[%c0_11, %c0_12] : memref<512x128xf32, #tpu.memory_space<vmem>>, vector<512x128xf32>
      tpu.vector_store %arg6[%c0_11, %c0_12], %12 {strides = array<i32>} : memref<512x128xf32, #tpu.memory_space<vmem>>, vector<512x128xf32>,
    } else {
    }
    %c0 = arith.constant 0 : index
    %c0_1 = arith.constant 0 : index
    %3 = vector.load %arg6[%c0, %c0_1] : memref<512x128xf32, #tpu.memory_space<vmem>>, vector<512x128xf32>
    %c0_2 = arith.constant 0 : index
    %c0_3 = arith.constant 0 : index
    %4 = vector.load %arg3[%c0_2, %c0_3] : memref<512x128xbf16, #tpu.memory_space<vmem>>, vector<512x128xbf16>
    %c0_4 = arith.constant 0 : index
    %c0_5 = arith.constant 0 : index
    %5 = vector.load %arg4[%c0_4, %c0_5] : memref<128x128xbf16, #tpu.memory_space<vmem>>, vector<128x128xbf16>
    %cst = arith.constant dense<0.000000e+00> : vector<512x128xf32>
    %6 = tpu.matmul %4, %5, %cst {dimension_numbers = #tpu.dot_dimension_numbers<[1], [0], [0], [1], [0, 0, 1, 1], [], []>} : vector<512x128xbf16>, vector<128x128xbf16>, vector<512x128xf32> -> vector<512x128xf32>
    %7 = arith.addf %3, %6 : vector<512x128xf32>
    %c0_6 = arith.constant 0 : index
    %c0_7 = arith.constant 0 : index
    %8 = vector.load %arg6[%c0_6, %c0_7] : memref<512x128xf32, #tpu.memory_space<vmem>>, vector<512x128xf32>
    tpu.vector_store %arg6[%c0_6, %c0_7], %7 {strides = array<i32>} : memref<512x128xf32, #tpu.memory_space<vmem>>, vector<512x128xf32>,
    %c0_i32_8 = arith.constant 0 : i32
    %9 = arith.cmpi eq, %arg2, %c0_i32_8 : i32
    %10 = arith.extui %9 : i1 to i32
    %c0_i32_9 = arith.constant 0 : i32
    %11 = arith.cmpi ne, %10, %c0_i32_9 : i32
    scf.if %11 {
      %c0_10 = arith.constant 0 : index
      %c0_11 = arith.constant 0 : index
      %12 = vector.load %arg6[%c0_10, %c0_11] : memref<512x128xf32, #tpu.memory_space<vmem>>, vector<512x128xf32>
      %c0_12 = arith.constant 0 : index
      %c0_13 = arith.constant 0 : index
      %13 = vector.load %arg5[%c0_12, %c0_13] : memref<512x128xf32, #tpu.memory_space<vmem>>, vector<512x128xf32>
      tpu.vector_store %arg5[%c0_12, %c0_13], %12 {strides = array<i32>} : memref<512x128xf32, #tpu.memory_space<vmem>>, vector<512x128xf32>,
    } else {
    }
    return
  }
  func.func @transform_0(%arg0: i32, %arg1: i32, %arg2: i32) -> (i32, i32) {
    %c0_i32 = arith.constant 0 : i32
    return %arg0, %arg2 : i32, i32
  }
  func.func @transform_1(%arg0: i32, %arg1: i32, %arg2: i32) -> (i32, i32) {
    %c0_i32 = arith.constant 0 : i32
    return %arg2, %arg1 : i32, i32
  }
  func.func @transform_2(%arg0: i32, %arg1: i32, %arg2: i32) -> (i32, i32) {
    %c0_i32 = arith.constant 0 : i32
    return %arg0, %arg1 : i32, i32
  }
}

module attributes {stable_mosaic.version = 11 : i64} {
  func.func @_scale_bias_relu_kernel(%arg0: i32, %arg1: memref<1024x8xf32, #tpu.memory_space<vmem>>, %arg2: memref<1x8xf32, #tpu.memory_space<vmem>>, %arg3: memref<1x8xf32, #tpu.memory_space<vmem>>, %arg4: memref<1024x8xbf16, #tpu.memory_space<vmem>>) attributes {dimension_semantics = [#tpu.dimension_semantics<parallel>], iteration_bounds = array<i64: 2>, scalar_prefetch = 0 : i64, scratch_operands = 0 : i64, tpu.core_type = #tpu.core_type<tc>, window_params = [{transform_indices = @transform_0, window_bounds = array<i64: 1024, 8>}, {pipeline_mode = #tpu.pipeline_mode<synchronous>, transform_indices = @transform_1, window_bounds = array<i64: 1, 8>}, {pipeline_mode = #tpu.pipeline_mode<synchronous>, transform_indices = @transform_2, window_bounds = array<i64: 1, 8>}, {transform_indices = @transform_3, window_bounds = array<i64: 1024, 8>}]} {
    %c0 = arith.constant 0 : index
    %c0_0 = arith.constant 0 : index
    %0 = vector.load %arg1[%c0, %c0_0] : memref<1024x8xf32, #tpu.memory_space<vmem>>, vector<1024x8xf32>
    %c0_1 = arith.constant 0 : index
    %c0_2 = arith.constant 0 : index
    %1 = vector.load %arg2[%c0_1, %c0_2] : memref<1x8xf32, #tpu.memory_space<vmem>>, vector<1x8xf32>
    %2 = vector.broadcast %1 : vector<1x8xf32> to vector<1024x8xf32>
    %3 = arith.mulf %0, %2 : vector<1024x8xf32>
    %c0_3 = arith.constant 0 : index
    %c0_4 = arith.constant 0 : index
    %4 = vector.load %arg3[%c0_3, %c0_4] : memref<1x8xf32, #tpu.memory_space<vmem>>, vector<1x8xf32>
    %5 = vector.broadcast %4 : vector<1x8xf32> to vector<1024x8xf32>
    %6 = arith.addf %3, %5 : vector<1024x8xf32>
    %cst = arith.constant 0.000000e+00 : f32
    %7 = vector.broadcast %cst : f32 to vector<1024x8xf32>
    %8 = arith.maximumf %6, %7 : vector<1024x8xf32>
    %9 = arith.truncf %8 : vector<1024x8xf32> to vector<1024x8xbf16>
    %c0_5 = arith.constant 0 : index
    %c0_6 = arith.constant 0 : index
    %10 = vector.load %arg4[%c0_5, %c0_6] : memref<1024x8xbf16, #tpu.memory_space<vmem>>, vector<1024x8xbf16>
    tpu.vector_store %arg4[%c0_5, %c0_6], %9 {strides = array<i32>} : memref<1024x8xbf16, #tpu.memory_space<vmem>>, vector<1024x8xbf16>,
    return
  }
  func.func @transform_0(%arg0: i32) -> (i32, i32) {
    %c0_i32 = arith.constant 0 : i32
    %c0_i32_0 = arith.constant 0 : i32
    return %arg0, %c0_i32 : i32, i32
  }
  func.func @transform_1(%arg0: i32) -> (i32, i32) {
    %c0_i32 = arith.constant 0 : i32
    %c0_i32_0 = arith.constant 0 : i32
    %c0_i32_1 = arith.constant 0 : i32
    return %c0_i32, %c0_i32_0 : i32, i32
  }
  func.func @transform_2(%arg0: i32) -> (i32, i32) {
    %c0_i32 = arith.constant 0 : i32
    %c0_i32_0 = arith.constant 0 : i32
    %c0_i32_1 = arith.constant 0 : i32
    return %c0_i32, %c0_i32_0 : i32, i32
  }
  func.func @transform_3(%arg0: i32) -> (i32, i32) {
    %c0_i32 = arith.constant 0 : i32
    %c0_i32_0 = arith.constant 0 : i32
    return %arg0, %c0_i32 : i32, i32
  }
}

module attributes {stable_mosaic.version = 11 : i64} {
  func.func @_matmul_kernel(%arg0: i32, %arg1: i32, %arg2: i32, %arg3: memref<16x128xbf16, #tpu.memory_space<vmem>>, %arg4: memref<128x256xbf16, #tpu.memory_space<vmem>>, %arg5: memref<16x256xf32, #tpu.memory_space<vmem>>, %arg6: memref<16x256xf32, #tpu.memory_space<vmem>>) attributes {dimension_semantics = [#tpu.dimension_semantics<parallel>, #tpu.dimension_semantics<parallel>, #tpu.dimension_semantics<arbitrary>], iteration_bounds = array<i64: 1, 8, 1>, scalar_prefetch = 0 : i64, scratch_operands = 1 : i64, tpu.core_type = #tpu.core_type<tc>, window_params = [{transform_indices = @transform_0, window_bounds = array<i64: 16, 128>}, {transform_indices = @transform_1, window_bounds = array<i64: 128, 256>}, {transform_indices = @transform_2, window_bounds = array<i64: 16, 256>}]} {
    %c0_i32 = arith.constant 0 : i32
    %0 = arith.cmpi eq, %arg2, %c0_i32 : i32
    %1 = arith.extui %0 : i1 to i32
    %c0_i32_0 = arith.constant 0 : i32
    %2 = arith.cmpi ne, %1, %c0_i32_0 : i32
    scf.if %2 {
      %cst_10 = arith.constant 0.000000e+00 : f32
      %12 = vector.broadcast %cst_10 : f32 to vector<16x256xf32>
      %c0_11 = arith.constant 0 : index
      %c0_12 = arith.constant 0 : index
      %13 = vector.load %arg6[%c0_11, %c0_12] : memref<16x256xf32, #tpu.memory_space<vmem>>, vector<16x256xf32>
      tpu.vector_store %arg6[%c0_11, %c0_12], %12 {strides = array<i32>} : memref<16x256xf32, #tpu.memory_space<vmem>>, vector<16x256xf32>,
    } else {
    }
    %c0 = arith.constant 0 : index
    %c0_1 = arith.constant 0 : index
    %3 = vector.load %arg6[%c0, %c0_1] : memref<16x256xf32, #tpu.memory_space<vmem>>, vector<16x256xf32>
    %c0_2 = arith.constant 0 : index
    %c0_3 = arith.constant 0 : index
    %4 = vector.load %arg3[%c0_2, %c0_3] : memref<16x128xbf16, #tpu.memory_space<vmem>>, vector<16x128xbf16>
    %c0_4 = arith.constant 0 : index
    %c0_5 = arith.constant 0 : index
    %5 = vector.load %arg4[%c0_4, %c0_5] : memref<128x256xbf16, #tpu.memory_space<vmem>>, vector<128x256xbf16>
    %cst = arith.constant dense<0.000000e+00> : vector<16x256xf32>
    %6 = tpu.matmul %4, %5, %cst {dimension_numbers = #tpu.dot_dimension_numbers<[1], [0], [0], [1], [0, 0, 1, 1], [], []>} : vector<16x128xbf16>, vector<128x256xbf16>, vector<16x256xf32> -> vector<16x256xf32>
    %7 = arith.addf %3, %6 : vector<16x256xf32>
    %c0_6 = arith.constant 0 : index
    %c0_7 = arith.constant 0 : index
    %8 = vector.load %arg6[%c0_6, %c0_7] : memref<16x256xf32, #tpu.memory_space<vmem>>, vector<16x256xf32>
    tpu.vector_store %arg6[%c0_6, %c0_7], %7 {strides = array<i32>} : memref<16x256xf32, #tpu.memory_space<vmem>>, vector<16x256xf32>,
    %c0_i32_8 = arith.constant 0 : i32
    %9 = arith.cmpi eq, %arg2, %c0_i32_8 : i32
    %10 = arith.extui %9 : i1 to i32
    %c0_i32_9 = arith.constant 0 : i32
    %11 = arith.cmpi ne, %10, %c0_i32_9 : i32
    scf.if %11 {
      %c0_10 = arith.constant 0 : index
      %c0_11 = arith.constant 0 : index
      %12 = vector.load %arg6[%c0_10, %c0_11] : memref<16x256xf32, #tpu.memory_space<vmem>>, vector<16x256xf32>
      %13 = math.tanh %12 : vector<16x256xf32>
      %c0_12 = arith.constant 0 : index
      %c0_13 = arith.constant 0 : index
      %14 = vector.load %arg5[%c0_12, %c0_13] : memref<16x256xf32, #tpu.memory_space<vmem>>, vector<16x256xf32>
      tpu.vector_store %arg5[%c0_12, %c0_13], %13 {strides = array<i32>} : memref<16x256xf32, #tpu.memory_space<vmem>>, vector<16x256xf32>,
    } else {
    }
    return
  }
  func.func @transform_0(%arg0: i32, %arg1: i32, %arg2: i32) -> (i32, i32) {
    %c0_i32 = arith.constant 0 : i32
    return %arg0, %arg2 : i32, i32
  }
  func.func @transform_1(%arg0: i32, %arg1: i32, %arg2: i32) -> (i32, i32) {
    %c0_i32 = arith.constant 0 : i32
    return %arg2, %arg1 : i32, i32
  }
  func.func @transform_2(%arg0: i32, %arg1: i32, %arg2: i32) -> (i32, i32) {
    %c0_i32 = arith.constant 0 : i32
    return %arg0, %arg1 : i32, i32
  }
}

</mosaic_0001>

<llo_original>
// kernel: generator_forward.22
$region0: #{generator_forward.22}
  #allocation0 [shape = 'u32[]', space=smem, size = 0x4, offset = 0x4, fixed_abs, tag = 'smem constant byte address 0x4 - core index']
  #allocation1 [shape = 'u32[144,128]{1,0:T(1,128)}', space=vmem, size = 0x12000, scoped, tag = 'internal scratch']
  %s0 = inlined_call_operand.vmem [shape: f32[32,64], index: 0, kind: input, shape index: {}]
  %s1 = inlined_call_operand.vmem [shape: f32[1,64], index: 1, kind: input, shape index: {}]
  %s2 = inlined_call_operand.vmem [shape: f32[1,64], index: 2, kind: input, shape index: {}]
  %s3 = inlined_call_operand.vmem [shape: bf16[32,64], index: 3, kind: output, shape index: {}]
  %s4 = sld [smem:[#allocation0]]
  $region22: #{generator_forward.22} parent=0
    _
  %s6 = ssub.s32 1, %s4
  %s7 = scalar_select 0, %s6, %s4
  // Predicated region
  $region2: #{generator_forward.22} parent=0 // pred_check
    _
  $region3: #{generator_forward.22} parent=0 // pred_check_branch
    %9 = sbr.rel (0) target = $region5
  $region4: #{generator_forward.22} parent=0 // pred_region
    _
  $region5: #{generator_forward.22} parent=0 // pred_fallthru
    _
  // Predicated region
  $region6: #{generator_forward.22} parent=0 // pred_check
    _
  $region7: #{generator_forward.22} parent=0 // pred_check_branch
    %11 = sbr.rel (0) target = $region9
  $region8: #{generator_forward.22} parent=0 // pred_region
    _
  $region9: #{generator_forward.22} parent=0 // pred_fallthru
    _
  // Predicated region
  $region10: #{generator_forward.22} parent=0 // pred_check
    _
  $region11: #{generator_forward.22} parent=0 // pred_check_branch
    %13 = sbr.rel (0) target = $region13
  $region12: #{generator_forward.22} parent=0 // pred_region
    _
  $region13: #{generator_forward.22} parent=0 // pred_fallthru
    _
  %v14 = vld [vmem:[%s0] sm:$0xff]
  %v15 = vld [vmem:[%s0 + $0x8] sm:$0xff]
  %v16 = vld [vmem:[%s0 + $0x10] sm:$0xff]
  %v17 = vld [vmem:[%s0 + $0x18] sm:$0xff]
  %v18 = vld [vmem:[%s1] sm:$0x1]
  %v20 = vlaneseq
  %v21 = vshrl.u32 %v20, 7
  %v22 = vsub.s32 0, %v21
  %v23 = vrot.slane %v18, %v22
  %v25 = vmul.f32 %v14, %v23
  %v26 = vmul.f32 %v15, %v23
  %v27 = vmul.f32 %v16, %v23
  %v28 = vmul.f32 %v17, %v23
  %v29 = vld [vmem:[%s2] sm:$0x1]
  %v31 = vlaneseq
  %v32 = vshrl.u32 %v31, 7
  %v33 = vsub.s32 0, %v32
  %v34 = vrot.slane %v29, %v33
  %v36 = vadd.f32 %v25, %v34
  %v37 = vadd.f32 %v26, %v34
  %v38 = vadd.f32 %v27, %v34
  %v39 = vadd.f32 %v28, %v34
  %v40 = vmax.f32 %v36, 0.0
  %v41 = vmax.f32 %v37, 0.0
  %v42 = vmax.f32 %v38, 0.0
  %v43 = vmax.f32 %v39, 0.0
  %v44 = vpack.c.bf16 %v41, %v40
  %v45 = vpack.c.bf16 %v43, %v42
  %v48 = vunpack.c.l.b16 %v44
  %v49 = vunpack.c.h.b16 %v44
  %v50 = vunpack.c.l.b16 %v45
  %v51 = vunpack.c.h.b16 %v45
  %v52 = vpack.c.b16 %v48, %v48
  %v53 = vpack.c.b16 %v49, %v49
  %v54 = vpack.c.b16 %v50, %v50
  %v55 = vpack.c.b16 %v51, %v51
  %vm60 = vcmask 519168
  %61 = vst.msk [vmem:[%s3] sm:$0xf] %vm60, %v52
  %62 = vst.msk [vmem:[%s3 + $0x4] sm:$0xf] %vm60, %v53
  %63 = vst.msk [vmem:[%s3 + $0x8] sm:$0xf] %vm60, %v54
  %64 = vst.msk [vmem:[%s3 + $0xc] sm:$0xf] %vm60, %v55
  // Predicated region
  $region14: #{generator_forward.22} parent=0 // pred_check
    _
  $region15: #{generator_forward.22} parent=0 // pred_check_branch
    %66 = sbr.rel (0) target = $region17
  $region16: #{generator_forward.22} parent=0 // pred_region
    _
  $region17: #{generator_forward.22} parent=0 // pred_fallthru
    _
  // Predicated region
  $region18: #{generator_forward.22} parent=0 // pred_check
    _
  $region19: #{generator_forward.22} parent=0 // pred_check_branch
    %68 = sbr.rel (0) target = $region21
  $region20: #{generator_forward.22} parent=0 // pred_region
    _
  $region21: #{generator_forward.22} parent=0 // pred_fallthru
    _

// kernel: generator_forward.21
$region0: #{generator_forward.21}
  #allocation0 [shape = 'u32[]', space=smem, size = 0x4, offset = 0x4, fixed_abs, tag = 'smem constant byte address 0x4 - core index']
  #allocation1 [shape = 'u32[144,128]{1,0:T(1,128)}', space=vmem, size = 0x12000, scoped, tag = 'internal scratch']
  #allocation2 [shape = 'f32[16,256]{1,0:T(8,128)}', space=vmem, size = 0x4000, scoped, tag = 'scratch operand']
  %s0 = inlined_call_operand.vmem [shape: bf16[16,128], index: 0, kind: input, shape index: {}]
  %s1 = inlined_call_operand.vmem [shape: bf16[128,1024], index: 1, kind: input, shape index: {}]
  %s2 = inlined_call_operand.vmem [shape: f32[16,1024], index: 2, kind: output, shape index: {}]
  %s3 = sld [smem:[#allocation0]]
  $region106: #{generator_forward.21} parent=0
    _
  %s5 = ssub.s32 1, %s3
  %s6 = scalar_select 0, %s5, %s3
  $region1: #{generator_forward.21} parent=0
    #allocation3 [shape = 'u8[131072]{0}', space=vmem, size = 0x20000, scoped, tag = 'input window, operand 1']
    #allocation4 [shape = 'u8[32768]{0}', space=vmem, size = 0x8000, scoped, tag = 'output window, operand 0']
    loop: start=0, step=1, limit=6
    $region2: #{generator_forward.21} parent=1 // loop_pre_header
      _
    $region3: #{generator_forward.21} parent=1 // loop_header
      %s8 = sphi 0, %s12
      %p9 = scmp.ge.s32.totalorder %s8, 6
      %s15 = sphi 0, %s34
      %s16 = sphi 0, %s30
      %s17 = sphi 0, %s26
      %s18 = sphi 0, %s15
      %s19 = sphi 0, %s16
      %s20 = sphi 0, %s17
      %s21 = sphi 0, %s18
      %s22 = sphi 0, %s19
      %s23 = sphi 0, %s20
      %s39 = sphi 0, %s41
      %s42 = sphi 0, %s39
      %s43 = sphi 0, %s42
      %s59 = sphi 0, %s43
      %s67 = sphi 0, %s69
      %s70 = sphi 0, %s67
      %s71 = sphi 0, %s70
      %s87 = sphi 0, %s71
      %s95 = sphi 0, %s97
      %s98 = sphi 0, %s95
      %s99 = sphi 0, %s98
      %s115 = sphi 0, %s99
    $region4: #{generator_forward.21} parent=1 // loop_header_branch
      %11 = sbr.rel (%p9) target = $region8
    $region5: #{generator_forward.21} parent=1 // loop_body
      %s13 = ssub.s32 %s8, 1
      %s14 = ssub.s32 %s8, 2
      %s24 = sadd.s32 1, %s17
      %p25 = scmp.ge.s32.totalorder %s24, 1
      %s26 = scalar_select %p25, 0, %s24
      %s27 = sadd.s32 1, %s16
      %s28 = scalar_select %p25, %s27, %s16
      %p29 = scmp.ge.s32.totalorder %s28, 4
      %s30 = scalar_select %p29, 0, %s28
      %s31 = sadd.s32 1, %s15
      %s32 = scalar_select %p29, %s31, %s15
      %p33 = scmp.ge.s32.totalorder %s32, 1
      %s34 = scalar_select %p33, 0, %s32
      %s35 = ssub.s32 %s15, %s34
      %s36 = ssub.s32 %s17, %s26
      %s37 = sor.u32 %s35, %s36
      %p38 = scmp.eq.s32.totalorder %s37, 0
      %s40 = sadd.s32 %s39, 1
      %s41 = scalar_select %p38, %s39, %s40
      %p44 = pneg %p38
      %p45 = scmp.eq.s32.totalorder %s8, 3
      %p46 = por %p44, %p45
      %p47 = scmp.ne.s32.totalorder %s39, %s42
      %p48 = scmp.eq.s32.totalorder %s8, 0
      %p49 = por %p47, %p48
      %p50 = scmp.ne.s32.totalorder %s39, %s42
      %p51 = scmp.eq.s32.totalorder %s13, 3
      %p52 = por %p50, %p51
      %p53 = scmp.ne.s32.totalorder %s42, %s43
      %p54 = scmp.eq.s32.totalorder %s13, 0
      %p55 = por %p53, %p54
      %p56 = scmp.ne.s32.totalorder %s42, %s43
      %p57 = scmp.eq.s32.totalorder %s14, 3
      %p58 = por %p56, %p57
      %p60 = scmp.ne.s32.totalorder %s43, %s59
      %p61 = scmp.eq.s32.totalorder %s14, 0
      %p62 = por %p60, %p61
      %s63 = ssub.s32 %s17, %s26
      %s64 = ssub.s32 %s16, %s30
      %s65 = sor.u32 %s63, %s64
      %p66 = scmp.eq.s32.totalorder %s65, 0
      %s68 = sadd.s32 %s67, 1
      %s69 = scalar_select %p66, %s67, %s68
      %p72 = pneg %p66
      %p73 = scmp.eq.s32.totalorder %s8, 3
      %p74 = por %p72, %p73
      %p75 = scmp.ne.s32.totalorder %s67, %s70
      %p76 = scmp.eq.s32.totalorder %s8, 0
      %p77 = por %p75, %p76
      %p78 = scmp.ne.s32.totalorder %s67, %s70
      %p79 = scmp.eq.s32.totalorder %s13, 3
      %p80 = por %p78, %p79
      %p81 = scmp.ne.s32.totalorder %s70, %s71
      %p82 = scmp.eq.s32.totalorder %s13, 0
      %p83 = por %p81, %p82
      %p84 = scmp.ne.s32.totalorder %s70, %s71
      %p85 = scmp.eq.s32.totalorder %s14, 3
      %p86 = por %p84, %p85
      %p88 = scmp.ne.s32.totalorder %s71, %s87
      %p89 = scmp.eq.s32.totalorder %s14, 0
      %p90 = por %p88, %p89
      %s91 = ssub.s32 %s15, %s34
      %s92 = ssub.s32 %s16, %s30
      %s93 = sor.u32 %s91, %s92
      %p94 = scmp.eq.s32.totalorder %s93, 0
      %s96 = sadd.s32 %s95, 1
      %s97 = scalar_select %p94, %s95, %s96
      %p100 = pneg %p94
      %p101 = scmp.eq.s32.totalorder %s8, 3
      %p102 = por %p100, %p101
      %p103 = scmp.ne.s32.totalorder %s95, %s98
      %p104 = scmp.eq.s32.totalorder %s8, 0
      %p105 = por %p103, %p104
      %p106 = scmp.ne.s32.totalorder %s95, %s98
      %p107 = scmp.eq.s32.totalorder %s13, 3
      %p108 = por %p106, %p107
      %p109 = scmp.ne.s32.totalorder %s98, %s99
      %p110 = scmp.eq.s32.totalorder %s13, 0
      %p111 = por %p109, %p110
      %p112 = scmp.ne.s32.totalorder %s98, %s99
      %p113 = scmp.eq.s32.totalorder %s14, 3
      %p114 = por %p112, %p113
      %p116 = scmp.ne.s32.totalorder %s99, %s115
      %p117 = scmp.eq.s32.totalorder %s14, 0
      %p118 = por %p116, %p117
      %p119 = scmp.le.s32.totalorder 1, %s8
      %p120 = scmp.lt.s32.totalorder %s8, 5
      %p121 = pnand %p119, %p120
      %p122 = pneg %p121
      // Predicated region
      $region9: #{generator_forward.21} parent=5 // pred_check
        _
      $region10: #{generator_forward.21} parent=5 // pred_check_branch
        %124 = sbr.rel (%p121) target = $region12
      $region11: #{generator_forward.21} parent=5 // pred_region
        %s125 = ssub.s32 %s8, 1
        // Predicated region
        $region13: #{generator_forward.21} parent=11 // pred_check
          %p126 = pneg %p55
        $region14: #{generator_forward.21} parent=11 // pred_check_branch
          %128 = sbr.rel (%p126) target = $region16
        $region15: #{generator_forward.21} parent=11 // pred_region
          %s129 = smul.u32 2, %s18
          %p130 = scmp.lt.s32.totalorder %s129, 1
          %s131 = scalar_select %p130, %s129, 1
          %p132 = scmp.lt.s32.totalorder %s20, 0
          %s133 = scalar_select %p132, %s20, 0
          %s134 = sadd.s32 %s133, %s131
          %s135 = smul.addr %s134, 4
          %s136 = scalar_lea.vmem %s0, %s135
          %s137 = smul.u32 2, %s18
        $region16: #{generator_forward.21} parent=11 // pred_fallthru
          _
      $region12: #{generator_forward.21} parent=5 // pred_fallthru
        _
      %p138 = scmp.lt.s32.totalorder %s8, 4
      // Predicated region
      $region17: #{generator_forward.21} parent=5 // pred_check
        %p139 = pneg %p138
      $region18: #{generator_forward.21} parent=5 // pred_check_branch
        %141 = sbr.rel (%p139) target = $region20
      $region19: #{generator_forward.21} parent=5 // pred_region
        // Predicated region
        $region21: #{generator_forward.21} parent=19 // pred_check
          %p142 = pneg %p77
        $region22: #{generator_forward.21} parent=19 // pred_check_branch
          %144 = sbr.rel (%p142) target = $region24
        $region23: #{generator_forward.21} parent=19 // pred_region
          %s145 = sand.u32 %s67, 1
          %s146 = sand.u32 %s67, 1
          %s147 = smul.addr %s146, 128
          %s148 = scalar_lea.vmem [#allocation3], %s147
          %s149 = smul.u32 16, %s17
          %s150 = smul.u32 2, %s16
          %s151 = smul.addr %s149, 8
          %s152 = sadd.s32 %s150, %s151
          %s153 = smul.addr %s152, 4
          %s154 = scalar_lea.vmem %s1, %s153
          // Predicated region
          $region25: #{generator_forward.21} parent=23 // pred_check
            _
          $region26: #{generator_forward.21} parent=23 // pred_check_branch
            %156 = sbr.rel (0) target = $region28
          $region27: #{generator_forward.21} parent=23 // pred_region
            // Predicated region
            $region29: #{generator_forward.21} parent=27 // pred_check
              _
            $region30: #{generator_forward.21} parent=27 // pred_check_branch
              %158 = sbr.rel (0) target = $region32
            $region31: #{generator_forward.21} parent=27 // pred_region
              // Predicated region
              $region44: #{generator_forward.21} parent=31 // pred_check
                _
              $region45: #{generator_forward.21} parent=31 // pred_check_branch
                %203 = sbr.rel (0) target = $region47
              $region46: #{generator_forward.21} parent=31 // pred_region
                loop: start=0, step=1, limit=1
                $region48: #{generator_forward.21} parent=46 // loop_pre_header
                  _
                $region49: #{generator_forward.21} parent=46 // loop_header
                  %s205 = sphi 0, %s209
                  %p206 = scmp.ge.s32.totalorder %s205, 1
                  %s210 = sphi %s154, %s154
                  %s211 = sphi %s148, %s148
                $region50: #{generator_forward.21} parent=46 // loop_header_branch
                  %208 = sbr.rel (%p206) target = $region54
                $region51: #{generator_forward.21} parent=46 // loop_body
                  %v212 = vld [vmem:[%s210] sm:$0xff]
                  %213 = vst [vmem:[%s211] sm:$0xff] %v212
                  %v214 = vld [vmem:[%s210 + $0x20] sm:$0xff]
                  %215 = vst [vmem:[%s211 + $0x8] sm:$0xff] %v214
                  %v216 = vld [vmem:[%s210 + $0x40] sm:$0xff]
                  %217 = vst [vmem:[%s211 + $0x10] sm:$0xff] %v216
                  %v218 = vld [vmem:[%s210 + $0x60] sm:$0xff]
                  %219 = vst [vmem:[%s211 + $0x18] sm:$0xff] %v218
                  %v220 = vld [vmem:[%s210 + $0x80] sm:$0xff]
                  %221 = vst [vmem:[%s211 + $0x20] sm:$0xff] %v220
                  %v222 = vld [vmem:[%s210 + $0xa0] sm:$0xff]
                  %223 = vst [vmem:[%s211 + $0x28] sm:$0xff] %v222
                  %v224 = vld [vmem:[%s210 + $0xc0] sm:$0xff]
                  %225 = vst [vmem:[%s211 + $0x30] sm:$0xff] %v224
                  %v226 = vld [vmem:[%s210 + $0xe0] sm:$0xff]
                  %227 = vst [vmem:[%s211 + $0x38] sm:$0xff] %v226
                  %v228 = vld [vmem:[%s210 + $0x100] sm:$0xff]
                  %229 = vst [vmem:[%s211 + $0x40] sm:$0xff] %v228
                  %v230 = vld [vmem:[%s210 + $0x120] sm:$0xff]
                  %231 = vst [vmem:[%s211 + $0x48] sm:$0xff] %v230
                  %v232 = vld [vmem:[%s210 + $0x140] sm:$0xff]
                  %233 = vst [vmem:[%s211 + $0x50] sm:$0xff] %v232
                  %v234 = vld [vmem:[%s210 + $0x160] sm:$0xff]
                  %235 = vst [vmem:[%s211 + $0x58] sm:$0xff] %v234
                  %v236 = vld [vmem:[%s210 + $0x180] sm:$0xff]
                  %237 = vst [vmem:[%s211 + $0x60] sm:$0xff] %v236
                  %v238 = vld [vmem:[%s210 + $0x1a0] sm:$0xff]
                  %239 = vst [vmem:[%s211 + $0x68] sm:$0xff] %v238
                  %v240 = vld [vmem:[%s210 + $0x1c0] sm:$0xff]
                  %241 = vst [vmem:[%s211 + $0x70] sm:$0xff] %v240
                  %v242 = vld [vmem:[%s210 + $0x1e0] sm:$0xff]
                  %243 = vst [vmem:[%s211 + $0x78] sm:$0xff] %v242
                $region52: #{generator_forward.21} parent=46 // loop_footer
                  %s209 = sadd.s32 1, %s205
                $region53: #{generator_forward.21} parent=46 // loop_footer_branch
                  %204 = sbr.rel target = $region49
                $region54: #{generator_forward.21} parent=46 // loop_exit
                  _
              $region47: #{generator_forward.21} parent=31 // pred_fallthru
                _
              // Predicated region
              $region55: #{generator_forward.21} parent=31 // pred_check
                _
              $region56: #{generator_forward.21} parent=31 // pred_check_branch
                %245 = sbr.rel target = $region58
              $region57: #{generator_forward.21} parent=31 // pred_region
                _
              $region58: #{generator_forward.21} parent=31 // pred_fallthru
                _
            $region32: #{generator_forward.21} parent=27 // pred_fallthru
              _
            // Predicated region
            $region33: #{generator_forward.21} parent=27 // pred_check
              _
            $region34: #{generator_forward.21} parent=27 // pred_check_branch
              %160 = sbr.rel target = $region36
            $region35: #{generator_forward.21} parent=27 // pred_region
              loop: start=0, step=1, limit=1
              $region37: #{generator_forward.21} parent=35 // loop_pre_header
                _
              $region38: #{generator_forward.21} parent=35 // loop_header
                %s163 = sphi 0, %s167
                %p164 = scmp.ge.s32.totalorder %s163, 1
                %s168 = sphi %s154, %s154
                %s169 = sphi %s148, %s148
              $region39: #{generator_forward.21} parent=35 // loop_header_branch
                %166 = sbr.rel (%p164) target = $region43
              $region40: #{generator_forward.21} parent=35 // loop_body
                %v170 = vld [vmem:[%s168] sm:$0xff]
                %171 = vst [vmem:[%s169] sm:$0xff] %v170
                %v172 = vld [vmem:[%s168 + $0x20] sm:$0xff]
                %173 = vst [vmem:[%s169 + $0x8] sm:$0xff] %v172
                %v174 = vld [vmem:[%s168 + $0x40] sm:$0xff]
                %175 = vst [vmem:[%s169 + $0x10] sm:$0xff] %v174
                %v176 = vld [vmem:[%s168 + $0x60] sm:$0xff]
                %177 = vst [vmem:[%s169 + $0x18] sm:$0xff] %v176
                %v178 = vld [vmem:[%s168 + $0x80] sm:$0xff]
                %179 = vst [vmem:[%s169 + $0x20] sm:$0xff] %v178
                %v180 = vld [vmem:[%s168 + $0xa0] sm:$0xff]
                %181 = vst [vmem:[%s169 + $0x28] sm:$0xff] %v180
                %v182 = vld [vmem:[%s168 + $0xc0] sm:$0xff]
                %183 = vst [vmem:[%s169 + $0x30] sm:$0xff] %v182
                %v184 = vld [vmem:[%s168 + $0xe0] sm:$0xff]
                %185 = vst [vmem:[%s169 + $0x38] sm:$0xff] %v184
                %v186 = vld [vmem:[%s168 + $0x100] sm:$0xff]
                %187 = vst [vmem:[%s169 + $0x40] sm:$0xff] %v186
                %v188 = vld [vmem:[%s168 + $0x120] sm:$0xff]
                %189 = vst [vmem:[%s169 + $0x48] sm:$0xff] %v188
                %v190 = vld [vmem:[%s168 + $0x140] sm:$0xff]
                %191 = vst [vmem:[%s169 + $0x50] sm:$0xff] %v190
                %v192 = vld [vmem:[%s168 + $0x160] sm:$0xff]
                %193 = vst [vmem:[%s169 + $0x58] sm:$0xff] %v192
                %v194 = vld [vmem:[%s168 + $0x180] sm:$0xff]
                %195 = vst [vmem:[%s169 + $0x60] sm:$0xff] %v194
                %v196 = vld [vmem:[%s168 + $0x1a0] sm:$0xff]
                %197 = vst [vmem:[%s169 + $0x68] sm:$0xff] %v196
                %v198 = vld [vmem:[%s168 + $0x1c0] sm:$0xff]
                %199 = vst [vmem:[%s169 + $0x70] sm:$0xff] %v198
                %v200 = vld [vmem:[%s168 + $0x1e0] sm:$0xff]
                %201 = vst [vmem:[%s169 + $0x78] sm:$0xff] %v200
              $region41: #{generator_forward.21} parent=35 // loop_footer
                %s167 = sadd.s32 1, %s163
              $region42: #{generator_forward.21} parent=35 // loop_footer_branch
                %162 = sbr.rel target = $region38
              $region43: #{generator_forward.21} parent=35 // loop_exit
                _
            $region36: #{generator_forward.21} parent=27 // pred_fallthru
              _
          $region28: #{generator_forward.21} parent=23 // pred_fallthru
            _
          %246 = vnop
        $region24: #{generator_forward.21} parent=19 // pred_fallthru
          _
      $region20: #{generator_forward.21} parent=5 // pred_fallthru
        _
      %p247 = scmp.le.s32.totalorder 1, %s8
      %p248 = scmp.lt.s32.totalorder %s8, 5
      %p249 = pnand %p247, %p248
      %p250 = pneg %p249
      // Predicated region
      $region59: #{generator_forward.21} parent=5 // pred_check
        _
      $region60: #{generator_forward.21} parent=5 // pred_check_branch
        %252 = sbr.rel (%p249) target = $region62
      $region61: #{generator_forward.21} parent=5 // pred_region
        %s253 = ssub.s32 %s8, 1
        %s254 = sand.u32 %s70, 1
        %s255 = sand.u32 %s70, 1
        %s256 = smul.addr %s255, 128
        %s257 = scalar_lea.vmem [#allocation3], %s256
        // Predicated region
        $region63: #{generator_forward.21} parent=61 // pred_check
          %p258 = pneg %p83
        $region64: #{generator_forward.21} parent=61 // pred_check_branch
          %260 = sbr.rel (%p258) target = $region66
        $region65: #{generator_forward.21} parent=61 // pred_region
          _
        $region66: #{generator_forward.21} parent=61 // pred_fallthru
          _
        %s261 = smul.u32 2, %s18
        %p262 = scmp.lt.s32.totalorder %s261, 1
        %s263 = scalar_select %p262, %s261, 1
        %p264 = scmp.lt.s32.totalorder %s20, 0
        %s265 = scalar_select %p264, %s20, 0
        %s266 = sadd.s32 %s265, %s263
        %s267 = smul.addr %s266, 4
        %s268 = scalar_lea.vmem %s0, %s267
        %p269 = pneg %p55
        %p270 = pneg %p52
        %s271 = sand.u32 %s70, 1
        %s272 = sand.u32 %s70, 1
        %s273 = smul.addr %s272, 128
        %s274 = scalar_lea.vmem [#allocation3], %s273
        %p275 = pneg %p83
        %p276 = pneg %p80
        %p277 = pneg %p111
        %p278 = pneg %p108
        %s279 = sand.u32 %s98, 1
        %s280 = sand.u32 %s98, 1
        %s281 = smul.addr %s280, 32
        %s282 = scalar_lea.vmem [#allocation4], %s281
        %s283 = smul.u32 2, %s18
        %p284 = scmp.lt.s32.totalorder %s283, 1
        %s285 = scalar_select %p284, %s283, 1
        %p286 = scmp.lt.s32.totalorder %s20, 0
        %s287 = scalar_select %p286, %s20, 0
        %s288 = sadd.s32 %s287, %s285
        %s289 = smul.addr %s288, 4
        %s290 = scalar_lea.vmem %s0, %s289
        %s291 = smul.u32 2, %s18
        %s292 = smul.u32 16, %s20
        %s293 = smul.u32 2, %s19
        %s294 = smul.u32 2, %s18
        %s295 = smul.u32 2, %s19
        %p297 = scmp.eq.s32.totalorder %s20, 0
        // Predicated region
        $region67: #{generator_forward.21} parent=61 // pred_check
          %p298 = pneg %p297
        $region68: #{generator_forward.21} parent=61 // pred_check_branch
          %300 = sbr.rel (%p298) target = $region70
        $region69: #{generator_forward.21} parent=61 // pred_region
          %301 = vst [vmem:[#allocation2] sm:$0xff] 0.0
          %302 = vst [vmem:[#allocation2 + $0x8] sm:$0xff] 0.0
          %303 = vst [vmem:[#allocation2 + $0x10] sm:$0xff] 0.0
          %304 = vst [vmem:[#allocation2 + $0x18] sm:$0xff] 0.0
        $region70: #{generator_forward.21} parent=61 // pred_fallthru
          _
        %v305 = vld [vmem:[#allocation2] sm:$0xff]
        %v306 = vld [vmem:[#allocation2 + $0x8] sm:$0xff]
        %v307 = vld [vmem:[#allocation2 + $0x10] sm:$0xff]
        %v308 = vld [vmem:[#allocation2 + $0x18] sm:$0xff]
        %v309 = vld [vmem:[%s290] sm:$0xf]
        %v310 = vld [vmem:[%s290 + $0x4] sm:$0xf]
        %v311 = vld [vmem:[%s257] sm:$0xff]
        %v312 = vld [vmem:[%s257 + $0x8] sm:$0xff]
        %v313 = vld [vmem:[%s257 + $0x10] sm:$0xff]
        %v314 = vld [vmem:[%s257 + $0x18] sm:$0xff]
        %v315 = vld [vmem:[%s257 + $0x20] sm:$0xff]
        %v316 = vld [vmem:[%s257 + $0x28] sm:$0xff]
        %v317 = vld [vmem:[%s257 + $0x30] sm:$0xff]
        %v318 = vld [vmem:[%s257 + $0x38] sm:$0xff]
        %v319 = vld [vmem:[%s257 + $0x40] sm:$0xff]
        %v320 = vld [vmem:[%s257 + $0x48] sm:$0xff]
        %v321 = vld [vmem:[%s257 + $0x50] sm:$0xff]
        %v322 = vld [vmem:[%s257 + $0x58] sm:$0xff]
        %v323 = vld [vmem:[%s257 + $0x60] sm:$0xff]
        %v324 = vld [vmem:[%s257 + $0x68] sm:$0xff]
        %v325 = vld [vmem:[%s257 + $0x70] sm:$0xff]
        %v326 = vld [vmem:[%s257 + $0x78] sm:$0xff]
        %v329 = vunpack.c.l.b16 %v309
        %v330 = vunpack.c.l.b16 %v310
        %v331 = vpack.c.b16 %v330, %v329
        %v349 = vunpack.c.l.b16 %v311
        %v350 = vunpack.c.h.b16 %v311
        %v351 = vunpack.c.l.b16 %v312
        %v352 = vunpack.c.h.b16 %v312
        %v353 = vunpack.c.l.b16 %v313
        %v354 = vunpack.c.h.b16 %v313
        %v355 = vunpack.c.l.b16 %v314
        %v356 = vunpack.c.h.b16 %v314
        %v357 = vunpack.c.l.b16 %v315
        %v358 = vunpack.c.h.b16 %v315
        %v359 = vunpack.c.l.b16 %v316
        %v360 = vunpack.c.h.b16 %v316
        %v361 = vunpack.c.l.b16 %v317
        %v362 = vunpack.c.h.b16 %v317
        %v363 = vunpack.c.l.b16 %v318
        %v364 = vunpack.c.h.b16 %v318
        %v365 = vunpack.c.l.b16 %v319
        %v366 = vunpack.c.h.b16 %v319
        %v367 = vunpack.c.l.b16 %v320
        %v368 = vunpack.c.h.b16 %v320
        %v369 = vunpack.c.l.b16 %v321
        %v370 = vunpack.c.h.b16 %v321
        %v371 = vunpack.c.l.b16 %v322
        %v372 = vunpack.c.h.b16 %v322
        %v373 = vunpack.c.l.b16 %v323
        %v374 = vunpack.c.h.b16 %v323
        %v375 = vunpack.c.l.b16 %v324
        %v376 = vunpack.c.h.b16 %v324
        %v377 = vunpack.c.l.b16 %v325
        %v378 = vunpack.c.h.b16 %v325
        %v379 = vunpack.c.l.b16 %v326
        %v380 = vunpack.c.h.b16 %v326
        %v381 = vpack.c.b16 %v351, %v349
        %v382 = vpack.c.b16 %v352, %v350
        %v383 = vpack.c.b16 %v355, %v353
        %v384 = vpack.c.b16 %v356, %v354
        %v385 = vpack.c.b16 %v359, %v357
        %v386 = vpack.c.b16 %v360, %v358
        %v387 = vpack.c.b16 %v363, %v361
        %v388 = vpack.c.b16 %v364, %v362
        %v389 = vpack.c.b16 %v367, %v365
        %v390 = vpack.c.b16 %v368, %v366
        %v391 = vpack.c.b16 %v371, %v369
        %v392 = vpack.c.b16 %v372, %v370
        %v393 = vpack.c.b16 %v375, %v373
        %v394 = vpack.c.b16 %v376, %v374
        %v395 = vpack.c.b16 %v379, %v377
        %v396 = vpack.c.b16 %v380, %v378
        %413 = vmatprep.subr.bf16.mxu0 %v382
        %414 = vmatpush1.bf16.msra.mxu0 %v381
        %415 = vmatprep.subr.bf16.mxu0 %v384
        %416 = vmatpush1.bf16.msra.mxu0 %v383
        %417 = vmatprep.subr.bf16.mxu0 %v386
        %418 = vmatpush1.bf16.msra.mxu0 %v385
        %419 = vmatprep.subr.bf16.mxu0 %v388
        %420 = vmatpush1.bf16.msra.mxu0 %v387
        %421 = vmatprep.subr.bf16.mxu0 %v390
        %422 = vmatpush1.bf16.msra.mxu0 %v389
        %423 = vmatprep.subr.bf16.mxu0 %v392
        %424 = vmatpush1.bf16.msra.mxu0 %v391
        %425 = vmatprep.subr.bf16.mxu0 %v394
        %426 = vmatpush1.bf16.msra.mxu0 %v393
        %427 = vmatprep.subr.bf16.mxu0 %v396
        %428 = vmatpush1.bf16.msra.mxu0 %v395
        %429 = vmatprep.subr.bf16.mxu0 0
        %430 = vmatpush1.bf16.msra.mxu0 0
        %431 = vmatprep.subr.bf16.mxu0 0
        %432 = vmatpush1.bf16.msra.mxu0 0
        %433 = vmatprep.subr.bf16.mxu0 0
        %434 = vmatpush1.bf16.msra.mxu0 0
        %435 = vmatprep.subr.bf16.mxu0 0
        %436 = vmatpush1.bf16.msra.mxu0 0
        %437 = vmatprep.subr.bf16.mxu0 0
        %438 = vmatpush1.bf16.msra.mxu0 0
        %439 = vmatprep.subr.bf16.mxu0 0
        %440 = vmatpush1.bf16.msra.mxu0 0
        %441 = vmatprep.subr.bf16.mxu0 0
        %442 = vmatpush1.bf16.msra.mxu0 0
        %443 = vmatprep.subr.bf16.mxu0 0
        %444 = vmatpush1.bf16.msra.mxu0 0
        %445 = vmatprep.mubr.bf16.mxu0 0
        %446 = vmatmul.mubr.bf16.gmra.mrb[0].mxu0 %v331
        %v447 = vpop.f32.mrb[0].mxu0
        %v448 = vadd.f32 0.0, %v447
        %v449 = vpop.f32.mrb[0].mxu0
        %v450 = vadd.f32 0.0, %v449
        %v451 = vpop.f32.mrb[0].mxu0
        %v452 = vadd.f32 0.0, %v451
        %v453 = vpop.f32.mrb[0].mxu0
        %v454 = vadd.f32 0.0, %v453
        %455 = vdwg.mxu0
        %v456 = vadd.f32 %v305, %v448
        %v457 = vadd.f32 %v306, %v450
        %v458 = vadd.f32 %v307, %v452
        %v459 = vadd.f32 %v308, %v454
        %460 = vst [vmem:[#allocation2] sm:$0xff] %v456
        %461 = vst [vmem:[#allocation2 + $0x8] sm:$0xff] %v457
        %462 = vst [vmem:[#allocation2 + $0x10] sm:$0xff] %v458
        %463 = vst [vmem:[#allocation2 + $0x18] sm:$0xff] %v459
        // Predicated region
        $region71: #{generator_forward.21} parent=61 // pred_check
          %p464 = pneg %p297
        $region72: #{generator_forward.21} parent=61 // pred_check_branch
          %466 = sbr.rel (%p464) target = $region74
        $region73: #{generator_forward.21} parent=61 // pred_region
          %v467 = vld [vmem:[#allocation2] sm:$0xff]
          %v468 = vld [vmem:[#allocation2 + $0x8] sm:$0xff]
          %v469 = vld [vmem:[#allocation2 + $0x10] sm:$0xff]
          %v470 = vld [vmem:[#allocation2 + $0x18] sm:$0xff]
          %471 = vst [vmem:[%s282] sm:$0xff] %v467
          %472 = vst [vmem:[%s282 + $0x8] sm:$0xff] %v468
          %473 = vst [vmem:[%s282 + $0x10] sm:$0xff] %v469
          %474 = vst [vmem:[%s282 + $0x18] sm:$0xff] %v470
        $region74: #{generator_forward.21} parent=61 // pred_fallthru
          _
        %s475 = sand.u32 %s98, 1
        %s476 = sand.u32 %s98, 1
        %s477 = smul.addr %s476, 32
        %s478 = scalar_lea.vmem [#allocation4], %s477
        // Predicated region
        $region75: #{generator_forward.21} parent=61 // pred_check
          %p479 = pneg %p108
        $region76: #{generator_forward.21} parent=61 // pred_check_branch
          %481 = sbr.rel (%p479) target = $region78
        $region77: #{generator_forward.21} parent=61 // pred_region
          %s482 = smul.u32 2, %s18
          %s483 = smul.u32 2, %s19
          %s484 = smul.addr %s482, 8
          %s485 = sadd.s32 %s483, %s484
          %s486 = smul.addr %s485, 8
          %s487 = scalar_lea.vmem %s2, %s486
          // Predicated region
          $region79: #{generator_forward.21} parent=77 // pred_check
            _
          $region80: #{generator_forward.21} parent=77 // pred_check_branch
            %489 = sbr.rel (0) target = $region82
          $region81: #{generator_forward.21} parent=77 // pred_region
            // Predicated region
            $region83: #{generator_forward.21} parent=81 // pred_check
              _
            $region84: #{generator_forward.21} parent=81 // pred_check_branch
              %491 = sbr.rel (0) target = $region86
            $region85: #{generator_forward.21} parent=81 // pred_region
              loop: start=0, step=1, limit=1
              $region87: #{generator_forward.21} parent=85 // loop_pre_header
                _
              $region88: #{generator_forward.21} parent=85 // loop_header
                %s493 = sphi 0, %s497
                %p494 = scmp.ge.s32.totalorder %s493, 1
                %s498 = sphi %s478, %s478
                %s499 = sphi %s487, %s487
              $region89: #{generator_forward.21} parent=85 // loop_header_branch
                %496 = sbr.rel (%p494) target = $region93
              $region90: #{generator_forward.21} parent=85 // loop_body
                %v500 = vld [vmem:[%s498] sm:$0xff]
                %501 = vst [vmem:[%s499] sm:$0xff] %v500
                %v502 = vld [vmem:[%s498 + $0x8] sm:$0xff]
                %503 = vst [vmem:[%s499 + $0x8] sm:$0xff] %v502
                %v504 = vld [vmem:[%s498 + $0x10] sm:$0xff]
                %505 = vst [vmem:[%s499 + $0x40] sm:$0xff] %v504
                %v506 = vld [vmem:[%s498 + $0x18] sm:$0xff]
                %507 = vst [vmem:[%s499 + $0x48] sm:$0xff] %v506
              $region91: #{generator_forward.21} parent=85 // loop_footer
                %s497 = sadd.s32 1, %s493
              $region92: #{generator_forward.21} parent=85 // loop_footer_branch
                %492 = sbr.rel target = $region88
              $region93: #{generator_forward.21} parent=85 // loop_exit
                _
            $region86: #{generator_forward.21} parent=81 // pred_fallthru
              _
            // Predicated region
            $region94: #{generator_forward.21} parent=81 // pred_check
              _
            $region95: #{generator_forward.21} parent=81 // pred_check_branch
              %509 = sbr.rel target = $region97
            $region96: #{generator_forward.21} parent=81 // pred_region
              _
            $region97: #{generator_forward.21} parent=81 // pred_fallthru
              _
          $region82: #{generator_forward.21} parent=77 // pred_fallthru
            _
          %510 = vnop
        $region78: #{generator_forward.21} parent=61 // pred_fallthru
          _
      $region62: #{generator_forward.21} parent=5 // pred_fallthru
        _
      %p511 = scmp.le.s32.totalorder 2, %s8
      // Predicated region
      $region98: #{generator_forward.21} parent=5 // pred_check
        %p512 = pneg %p511
      $region99: #{generator_forward.21} parent=5 // pred_check_branch
        %514 = sbr.rel (%p512) target = $region101
      $region100: #{generator_forward.21} parent=5 // pred_region
        %s515 = ssub.s32 %s8, 2
        // Predicated region
        $region102: #{generator_forward.21} parent=100 // pred_check
          %p516 = pneg %p114
        $region103: #{generator_forward.21} parent=100 // pred_check_branch
          %518 = sbr.rel (%p516) target = $region105
        $region104: #{generator_forward.21} parent=100 // pred_region
          %s519 = sand.u32 %s99, 1
          %s520 = sand.u32 %s99, 1
          %s521 = smul.addr %s520, 32
          %s522 = scalar_lea.vmem [#allocation4], %s521
        $region105: #{generator_forward.21} parent=100 // pred_fallthru
          _
      $region101: #{generator_forward.21} parent=5 // pred_fallthru
        _
    $region6: #{generator_forward.21} parent=1 // loop_footer
      %s12 = sadd.s32 1, %s8
    $region7: #{generator_forward.21} parent=1 // loop_footer_branch
      %7 = sbr.rel target = $region3
    $region8: #{generator_forward.21} parent=1 // loop_exit
      _

// kernel: generator_forward.23
$region0: #{generator_forward.23}
  #allocation0 [shape = 'u32[]', space=smem, size = 0x4, offset = 0x4, fixed_abs, tag = 'smem constant byte address 0x4 - core index']
  #allocation1 [shape = 'u32[144,128]{1,0:T(1,128)}', space=vmem, size = 0x12000, scoped, tag = 'internal scratch']
  #allocation2 [shape = 'f32[32,128]{1,0:T(8,128)}', space=vmem, size = 0x4000, scoped, tag = 'scratch operand']
  %s0 = inlined_call_operand.vmem [shape: bf16[32,256], index: 0, kind: input, shape index: {}]
  %s1 = inlined_call_operand.vmem [shape: bf16[256,128], index: 1, kind: input, shape index: {}]
  %s2 = inlined_call_operand.vmem [shape: f32[32,128], index: 2, kind: output, shape index: {}]
  %s3 = sld [smem:[#allocation0]]
  $region26: #{generator_forward.23} parent=0
    _
  %s5 = ssub.s32 1, %s3
  %s6 = scalar_select 0, %s5, %s3
  // Predicated region
  $region2: #{generator_forward.23} parent=0 // pred_check
    _
  $region3: #{generator_forward.23} parent=0 // pred_check_branch
    %8 = sbr.rel (0) target = $region5
  $region4: #{generator_forward.23} parent=0 // pred_region
    _
  $region5: #{generator_forward.23} parent=0 // pred_fallthru
    _
  // Predicated region
  $region6: #{generator_forward.23} parent=0 // pred_check
    _
  $region7: #{generator_forward.23} parent=0 // pred_check_branch
    %10 = sbr.rel (0) target = $region9
  $region8: #{generator_forward.23} parent=0 // pred_region
    _
  $region9: #{generator_forward.23} parent=0 // pred_fallthru
    _
  %p12 = scmp.eq.s32.totalorder 0, 0
  // Predicated region
  $region10: #{generator_forward.23} parent=0 // pred_check
    %p13 = pneg %p12
  $region11: #{generator_forward.23} parent=0 // pred_check_branch
    %15 = sbr.rel (%p13) target = $region13
  $region12: #{generator_forward.23} parent=0 // pred_region
    %16 = vst [vmem:[#allocation2] sm:$0xff] 0.0
    %17 = vst [vmem:[#allocation2 + $0x8] sm:$0xff] 0.0
    %18 = vst [vmem:[#allocation2 + $0x10] sm:$0xff] 0.0
    %19 = vst [vmem:[#allocation2 + $0x18] sm:$0xff] 0.0
  $region13: #{generator_forward.23} parent=0 // pred_fallthru
    _
  %v20 = vld [vmem:[#allocation2] sm:$0xff]
  %v21 = vld [vmem:[#allocation2 + $0x8] sm:$0xff]
  %v22 = vld [vmem:[#allocation2 + $0x10] sm:$0xff]
  %v23 = vld [vmem:[#allocation2 + $0x18] sm:$0xff]
  %v24 = vld [vmem:[%s0] sm:$0xff]
  %v25 = vld [vmem:[%s0 + $0x8] sm:$0xff]
  %v26 = vld [vmem:[%s0 + $0x10] sm:$0xff]
  %v27 = vld [vmem:[%s0 + $0x18] sm:$0xff]
  %v28 = vld [vmem:[%s1] sm:$0xf]
  %v29 = vld [vmem:[%s1 + $0x4] sm:$0xf]
  %v30 = vld [vmem:[%s1 + $0x8] sm:$0xf]
  %v31 = vld [vmem:[%s1 + $0xc] sm:$0xf]
  %v32 = vld [vmem:[%s1 + $0x10] sm:$0xf]
  %v33 = vld [vmem:[%s1 + $0x14] sm:$0xf]
  %v34 = vld [vmem:[%s1 + $0x18] sm:$0xf]
  %v35 = vld [vmem:[%s1 + $0x1c] sm:$0xf]
  %v36 = vld [vmem:[%s1 + $0x20] sm:$0xf]
  %v37 = vld [vmem:[%s1 + $0x24] sm:$0xf]
  %v38 = vld [vmem:[%s1 + $0x28] sm:$0xf]
  %v39 = vld [vmem:[%s1 + $0x2c] sm:$0xf]
  %v40 = vld [vmem:[%s1 + $0x30] sm:$0xf]
  %v41 = vld [vmem:[%s1 + $0x34] sm:$0xf]
  %v42 = vld [vmem:[%s1 + $0x38] sm:$0xf]
  %v43 = vld [vmem:[%s1 + $0x3c] sm:$0xf]
  %v44 = vld [vmem:[%s1 + $0x40] sm:$0xf]
  %v45 = vld [vmem:[%s1 + $0x44] sm:$0xf]
  %v46 = vld [vmem:[%s1 + $0x48] sm:$0xf]
  %v47 = vld [vmem:[%s1 + $0x4c] sm:$0xf]
  %v48 = vld [vmem:[%s1 + $0x50] sm:$0xf]
  %v49 = vld [vmem:[%s1 + $0x54] sm:$0xf]
  %v50 = vld [vmem:[%s1 + $0x58] sm:$0xf]
  %v51 = vld [vmem:[%s1 + $0x5c] sm:$0xf]
  %v52 = vld [vmem:[%s1 + $0x60] sm:$0xf]
  %v53 = vld [vmem:[%s1 + $0x64] sm:$0xf]
  %v54 = vld [vmem:[%s1 + $0x68] sm:$0xf]
  %v55 = vld [vmem:[%s1 + $0x6c] sm:$0xf]
  %v56 = vld [vmem:[%s1 + $0x70] sm:$0xf]
  %v57 = vld [vmem:[%s1 + $0x74] sm:$0xf]
  %v58 = vld [vmem:[%s1 + $0x78] sm:$0xf]
  %v59 = vld [vmem:[%s1 + $0x7c] sm:$0xf]
  %v64 = vunpack.c.l.b16 %v24
  %v65 = vunpack.c.h.b16 %v24
  %v66 = vunpack.c.l.b16 %v25
  %v67 = vunpack.c.h.b16 %v25
  %v68 = vunpack.c.l.b16 %v26
  %v69 = vunpack.c.h.b16 %v26
  %v70 = vunpack.c.l.b16 %v27
  %v71 = vunpack.c.h.b16 %v27
  %v72 = vpack.c.b16 %v66, %v64
  %v73 = vpack.c.b16 %v67, %v65
  %v74 = vpack.c.b16 %v70, %v68
  %v75 = vpack.c.b16 %v71, %v69
  %v112 = vunpack.c.l.b16 %v28
  %v113 = vunpack.c.l.b16 %v29
  %v114 = vunpack.c.l.b16 %v30
  %v115 = vunpack.c.l.b16 %v31
  %v116 = vunpack.c.l.b16 %v32
  %v117 = vunpack.c.l.b16 %v33
  %v118 = vunpack.c.l.b16 %v34
  %v119 = vunpack.c.l.b16 %v35
  %v120 = vunpack.c.l.b16 %v36
  %v121 = vunpack.c.l.b16 %v37
  %v122 = vunpack.c.l.b16 %v38
  %v123 = vunpack.c.l.b16 %v39
  %v124 = vunpack.c.l.b16 %v40
  %v125 = vunpack.c.l.b16 %v41
  %v126 = vunpack.c.l.b16 %v42
  %v127 = vunpack.c.l.b16 %v43
  %v128 = vunpack.c.l.b16 %v44
  %v129 = vunpack.c.l.b16 %v45
  %v130 = vunpack.c.l.b16 %v46
  %v131 = vunpack.c.l.b16 %v47
  %v132 = vunpack.c.l.b16 %v48
  %v133 = vunpack.c.l.b16 %v49
  %v134 = vunpack.c.l.b16 %v50
  %v135 = vunpack.c.l.b16 %v51
  %v136 = vunpack.c.l.b16 %v52
  %v137 = vunpack.c.l.b16 %v53
  %v138 = vunpack.c.l.b16 %v54
  %v139 = vunpack.c.l.b16 %v55
  %v140 = vunpack.c.l.b16 %v56
  %v141 = vunpack.c.l.b16 %v57
  %v142 = vunpack.c.l.b16 %v58
  %v143 = vunpack.c.l.b16 %v59
  %v144 = vpack.c.b16 %v113, %v112
  %v145 = vpack.c.b16 %v115, %v114
  %v146 = vpack.c.b16 %v117, %v116
  %v147 = vpack.c.b16 %v119, %v118
  %v148 = vpack.c.b16 %v121, %v120
  %v149 = vpack.c.b16 %v123, %v122
  %v150 = vpack.c.b16 %v125, %v124
  %v151 = vpack.c.b16 %v127, %v126
  %v152 = vpack.c.b16 %v129, %v128
  %v153 = vpack.c.b16 %v131, %v130
  %v154 = vpack.c.b16 %v133, %v132
  %v155 = vpack.c.b16 %v135, %v134
  %v156 = vpack.c.b16 %v137, %v136
  %v157 = vpack.c.b16 %v139, %v138
  %v158 = vpack.c.b16 %v141, %v140
  %v159 = vpack.c.b16 %v143, %v142
  %176 = vmatprep.subr.bf16.mxu0 0
  %177 = vmatpush1.bf16.msra.mxu0 %v144
  %178 = vmatprep.subr.bf16.mxu0 0
  %179 = vmatpush1.bf16.msra.mxu0 %v145
  %180 = vmatprep.subr.bf16.mxu0 0
  %181 = vmatpush1.bf16.msra.mxu0 %v146
  %182 = vmatprep.subr.bf16.mxu0 0
  %183 = vmatpush1.bf16.msra.mxu0 %v147
  %184 = vmatprep.subr.bf16.mxu0 0
  %185 = vmatpush1.bf16.msra.mxu0 %v148
  %186 = vmatprep.subr.bf16.mxu0 0
  %187 = vmatpush1.bf16.msra.mxu0 %v149
  %188 = vmatprep.subr.bf16.mxu0 0
  %189 = vmatpush1.bf16.msra.mxu0 %v150
  %190 = vmatprep.subr.bf16.mxu0 0
  %191 = vmatpush1.bf16.msra.mxu0 %v151
  %192 = vmatprep.subr.bf16.mxu0 0
  %193 = vmatpush1.bf16.msra.mxu0 %v152
  %194 = vmatprep.subr.bf16.mxu0 0
  %195 = vmatpush1.bf16.msra.mxu0 %v153
  %196 = vmatprep.subr.bf16.mxu0 0
  %197 = vmatpush1.bf16.msra.mxu0 %v154
  %198 = vmatprep.subr.bf16.mxu0 0
  %199 = vmatpush1.bf16.msra.mxu0 %v155
  %200 = vmatprep.subr.bf16.mxu0 0
  %201 = vmatpush1.bf16.msra.mxu0 %v156
  %202 = vmatprep.subr.bf16.mxu0 0
  %203 = vmatpush1.bf16.msra.mxu0 %v157
  %204 = vmatprep.subr.bf16.mxu0 0
  %205 = vmatpush1.bf16.msra.mxu0 %v158
  %206 = vmatprep.subr.bf16.mxu0 0
  %207 = vmatpush1.bf16.msra.mxu0 %v159
  %208 = vmatprep.mubr.bf16.mxu0 %v73
  %209 = vmatmul.mubr.bf16.gmra.mrb[0].mxu0 %v72
  %v210 = vpop.f32.mrb[0].mxu0
  %v211 = vadd.f32 0.0, %v210
  %v212 = vpop.f32.mrb[0].mxu0
  %v213 = vpop.f32.mrb[0].mxu0
  %v214 = vadd.f32 0.0, %v213
  %v215 = vpop.f32.mrb[0].mxu0
  %216 = vmatprep.mubr.bf16.mxu0 %v75
  %217 = vmatmul.mubr.bf16.gmra.mrb[0].mxu0 %v74
  %v218 = vpop.f32.mrb[0].mxu0
  %v219 = vadd.f32 0.0, %v218
  %v220 = vpop.f32.mrb[0].mxu0
  %v221 = vpop.f32.mrb[0].mxu0
  %v222 = vadd.f32 0.0, %v221
  %v223 = vpop.f32.mrb[0].mxu0
  %224 = vdwg.mxu0
  %v225 = vadd.f32 %v20, %v211
  %v226 = vadd.f32 %v21, %v214
  %v227 = vadd.f32 %v22, %v219
  %v228 = vadd.f32 %v23, %v222
  %229 = vst [vmem:[#allocation2] sm:$0xff] %v225
  %230 = vst [vmem:[#allocation2 + $0x8] sm:$0xff] %v226
  %231 = vst [vmem:[#allocation2 + $0x10] sm:$0xff] %v227
  %232 = vst [vmem:[#allocation2 + $0x18] sm:$0xff] %v228
  // Predicated region
  $region14: #{generator_forward.23} parent=0 // pred_check
    %p233 = pneg %p12
  $region15: #{generator_forward.23} parent=0 // pred_check_branch
    %235 = sbr.rel (%p233) target = $region17
  $region16: #{generator_forward.23} parent=0 // pred_region
    %v236 = vld [vmem:[#allocation2] sm:$0xff]
    %v237 = vld [vmem:[#allocation2 + $0x8] sm:$0xff]
    %v238 = vld [vmem:[#allocation2 + $0x10] sm:$0xff]
    %v239 = vld [vmem:[#allocation2 + $0x18] sm:$0xff]
    %240 = vst [vmem:[%s2] sm:$0xff] %v236
    %241 = vst [vmem:[%s2 + $0x8] sm:$0xff] %v237
    %242 = vst [vmem:[%s2 + $0x10] sm:$0xff] %v238
    %243 = vst [vmem:[%s2 + $0x18] sm:$0xff] %v239
  $region17: #{generator_forward.23} parent=0 // pred_fallthru
    _
  // Predicated region
  $region18: #{generator_forward.23} parent=0 // pred_check
    _
  $region19: #{generator_forward.23} parent=0 // pred_check_branch
    %245 = sbr.rel (0) target = $region21
  $region20: #{generator_forward.23} parent=0 // pred_region
    _
  $region21: #{generator_forward.23} parent=0 // pred_fallthru
    _
  // Predicated region
  $region22: #{generator_forward.23} parent=0 // pred_check
    _
  $region23: #{generator_forward.23} parent=0 // pred_check_branch
    %247 = sbr.rel (0) target = $region25
  $region24: #{generator_forward.23} parent=0 // pred_region
    _
  $region25: #{generator_forward.23} parent=0 // pred_fallthru
    _

// kernel: generator_forward.27
$region0: #{generator_forward.27}
  #allocation0 [shape = 'u32[]', space=smem, size = 0x4, offset = 0x4, fixed_abs, tag = 'smem constant byte address 0x4 - core index']
  #allocation1 [shape = 'u32[144,128]{1,0:T(1,128)}', space=vmem, size = 0x12000, scoped, tag = 'internal scratch']
  %s0 = inlined_call_operand.vmem [shape: f32[128,32], index: 0, kind: input, shape index: {}]
  %s1 = inlined_call_operand.vmem [shape: f32[1,32], index: 1, kind: input, shape index: {}]
  %s2 = inlined_call_operand.vmem [shape: f32[1,32], index: 2, kind: input, shape index: {}]
  %s3 = inlined_call_operand.vmem [shape: bf16[128,32], index: 3, kind: output, shape index: {}]
  %s4 = sld [smem:[#allocation0]]
  $region22: #{generator_forward.27} parent=0
    _
  %s6 = ssub.s32 1, %s4
  %s7 = scalar_select 0, %s6, %s4
  // Predicated region
  $region2: #{generator_forward.27} parent=0 // pred_check
    _
  $region3: #{generator_forward.27} parent=0 // pred_check_branch
    %9 = sbr.rel (0) target = $region5
  $region4: #{generator_forward.27} parent=0 // pred_region
    _
  $region5: #{generator_forward.27} parent=0 // pred_fallthru
    _
  // Predicated region
  $region6: #{generator_forward.27} parent=0 // pred_check
    _
  $region7: #{generator_forward.27} parent=0 // pred_check_branch
    %11 = sbr.rel (0) target = $region9
  $region8: #{generator_forward.27} parent=0 // pred_region
    _
  $region9: #{generator_forward.27} parent=0 // pred_fallthru
    _
  // Predicated region
  $region10: #{generator_forward.27} parent=0 // pred_check
    _
  $region11: #{generator_forward.27} parent=0 // pred_check_branch
    %13 = sbr.rel (0) target = $region13
  $region12: #{generator_forward.27} parent=0 // pred_region
    _
  $region13: #{generator_forward.27} parent=0 // pred_fallthru
    _
  %v14 = vld [vmem:[%s0] sm:$0xff]
  %v15 = vld [vmem:[%s0 + $0x8] sm:$0xff]
  %v16 = vld [vmem:[%s0 + $0x10] sm:$0xff]
  %v17 = vld [vmem:[%s0 + $0x18] sm:$0xff]
  %v18 = vld [vmem:[%s0 + $0x20] sm:$0xff]
  %v19 = vld [vmem:[%s0 + $0x28] sm:$0xff]
  %v20 = vld [vmem:[%s0 + $0x30] sm:$0xff]
  %v21 = vld [vmem:[%s0 + $0x38] sm:$0xff]
  %v22 = vld [vmem:[%s0 + $0x40] sm:$0xff]
  %v23 = vld [vmem:[%s0 + $0x48] sm:$0xff]
  %v24 = vld [vmem:[%s0 + $0x50] sm:$0xff]
  %v25 = vld [vmem:[%s0 + $0x58] sm:$0xff]
  %v26 = vld [vmem:[%s0 + $0x60] sm:$0xff]
  %v27 = vld [vmem:[%s0 + $0x68] sm:$0xff]
  %v28 = vld [vmem:[%s0 + $0x70] sm:$0xff]
  %v29 = vld [vmem:[%s0 + $0x78] sm:$0xff]
  %v30 = vld [vmem:[%s1] sm:$0x1]
  %v32 = vlaneseq
  %v33 = vshrl.u32 %v32, 7
  %v34 = vsub.s32 0, %v33
  %v35 = vrot.slane %v30, %v34
  %v37 = vmul.f32 %v14, %v35
  %v38 = vmul.f32 %v15, %v35
  %v39 = vmul.f32 %v16, %v35
  %v40 = vmul.f32 %v17, %v35
  %v41 = vmul.f32 %v18, %v35
  %v42 = vmul.f32 %v19, %v35
  %v43 = vmul.f32 %v20, %v35
  %v44 = vmul.f32 %v21, %v35
  %v45 = vmul.f32 %v22, %v35
  %v46 = vmul.f32 %v23, %v35
  %v47 = vmul.f32 %v24, %v35
  %v48 = vmul.f32 %v25, %v35
  %v49 = vmul.f32 %v26, %v35
  %v50 = vmul.f32 %v27, %v35
  %v51 = vmul.f32 %v28, %v35
  %v52 = vmul.f32 %v29, %v35
  %v53 = vld [vmem:[%s2] sm:$0x1]
  %v55 = vlaneseq
  %v56 = vshrl.u32 %v55, 7
  %v57 = vsub.s32 0, %v56
  %v58 = vrot.slane %v53, %v57
  %v60 = vadd.f32 %v37, %v58
  %v61 = vadd.f32 %v38, %v58
  %v62 = vadd.f32 %v39, %v58
  %v63 = vadd.f32 %v40, %v58
  %v64 = vadd.f32 %v41, %v58
  %v65 = vadd.f32 %v42, %v58
  %v66 = vadd.f32 %v43, %v58
  %v67 = vadd.f32 %v44, %v58
  %v68 = vadd.f32 %v45, %v58
  %v69 = vadd.f32 %v46, %v58
  %v70 = vadd.f32 %v47, %v58
  %v71 = vadd.f32 %v48, %v58
  %v72 = vadd.f32 %v49, %v58
  %v73 = vadd.f32 %v50, %v58
  %v74 = vadd.f32 %v51, %v58
  %v75 = vadd.f32 %v52, %v58
  %v76 = vmax.f32 %v60, 0.0
  %v77 = vmax.f32 %v61, 0.0
  %v78 = vmax.f32 %v62, 0.0
  %v79 = vmax.f32 %v63, 0.0
  %v80 = vmax.f32 %v64, 0.0
  %v81 = vmax.f32 %v65, 0.0
  %v82 = vmax.f32 %v66, 0.0
  %v83 = vmax.f32 %v67, 0.0
  %v84 = vmax.f32 %v68, 0.0
  %v85 = vmax.f32 %v69, 0.0
  %v86 = vmax.f32 %v70, 0.0
  %v87 = vmax.f32 %v71, 0.0
  %v88 = vmax.f32 %v72, 0.0
  %v89 = vmax.f32 %v73, 0.0
  %v90 = vmax.f32 %v74, 0.0
  %v91 = vmax.f32 %v75, 0.0
  %v92 = vpack.c.bf16 %v77, %v76
  %v93 = vpack.c.bf16 %v79, %v78
  %v94 = vpack.c.bf16 %v81, %v80
  %v95 = vpack.c.bf16 %v83, %v82
  %v96 = vpack.c.bf16 %v85, %v84
  %v97 = vpack.c.bf16 %v87, %v86
  %v98 = vpack.c.bf16 %v89, %v88
  %v99 = vpack.c.bf16 %v91, %v90
  %v108 = vunpack.c.l.b16 %v92
  %v109 = vunpack.c.h.b16 %v92
  %v110 = vunpack.c.l.b16 %v93
  %v111 = vunpack.c.h.b16 %v93
  %v112 = vunpack.c.l.b16 %v94
  %v113 = vunpack.c.h.b16 %v94
  %v114 = vunpack.c.l.b16 %v95
  %v115 = vunpack.c.h.b16 %v95
  %v116 = vunpack.c.l.b16 %v96
  %v117 = vunpack.c.h.b16 %v96
  %v118 = vunpack.c.l.b16 %v97
  %v119 = vunpack.c.h.b16 %v97
  %v120 = vunpack.c.l.b16 %v98
  %v121 = vunpack.c.h.b16 %v98
  %v122 = vunpack.c.l.b16 %v99
  %v123 = vunpack.c.h.b16 %v99
  %v124 = vpack.c.b16 %v108, %v108
  %v125 = vpack.c.b16 %v109, %v109
  %v126 = vpack.c.b16 %v110, %v110
  %v127 = vpack.c.b16 %v111, %v111
  %v128 = vpack.c.b16 %v112, %v112
  %v129 = vpack.c.b16 %v113, %v113
  %v130 = vpack.c.b16 %v114, %v114
  %v131 = vpack.c.b16 %v115, %v115
  %v132 = vpack.c.b16 %v116, %v116
  %v133 = vpack.c.b16 %v117, %v117
  %v134 = vpack.c.b16 %v118, %v118
  %v135 = vpack.c.b16 %v119, %v119
  %v136 = vpack.c.b16 %v120, %v120
  %v137 = vpack.c.b16 %v121, %v121
  %v138 = vpack.c.b16 %v122, %v122
  %v139 = vpack.c.b16 %v123, %v123
  %vm156 = vcmask 257024
  %157 = vst.msk [vmem:[%s3] sm:$0xf] %vm156, %v124
  %158 = vst.msk [vmem:[%s3 + $0x4] sm:$0xf] %vm156, %v125
  %159 = vst.msk [vmem:[%s3 + $0x8] sm:$0xf] %vm156, %v126
  %160 = vst.msk [vmem:[%s3 + $0xc] sm:$0xf] %vm156, %v127
  %161 = vst.msk [vmem:[%s3 + $0x10] sm:$0xf] %vm156, %v128
  %162 = vst.msk [vmem:[%s3 + $0x14] sm:$0xf] %vm156, %v129
  %163 = vst.msk [vmem:[%s3 + $0x18] sm:$0xf] %vm156, %v130
  %164 = vst.msk [vmem:[%s3 + $0x1c] sm:$0xf] %vm156, %v131
  %165 = vst.msk [vmem:[%s3 + $0x20] sm:$0xf] %vm156, %v132
  %166 = vst.msk [vmem:[%s3 + $0x24] sm:$0xf] %vm156, %v133
  %167 = vst.msk [vmem:[%s3 + $0x28] sm:$0xf] %vm156, %v134
  %168 = vst.msk [vmem:[%s3 + $0x2c] sm:$0xf] %vm156, %v135
  %169 = vst.msk [vmem:[%s3 + $0x30] sm:$0xf] %vm156, %v136
  %170 = vst.msk [vmem:[%s3 + $0x34] sm:$0xf] %vm156, %v137
  %171 = vst.msk [vmem:[%s3 + $0x38] sm:$0xf] %vm156, %v138
  %172 = vst.msk [vmem:[%s3 + $0x3c] sm:$0xf] %vm156, %v139
  // Predicated region
  $region14: #{generator_forward.27} parent=0 // pred_check
    _
  $region15: #{generator_forward.27} parent=0 // pred_check_branch
    %174 = sbr.rel (0) target = $region17
  $region16: #{generator_forward.27} parent=0 // pred_region
    _
  $region17: #{generator_forward.27} parent=0 // pred_fallthru
    _
  // Predicated region
  $region18: #{generator_forward.27} parent=0 // pred_check
    _
  $region19: #{generator_forward.27} parent=0 // pred_check_branch
    %176 = sbr.rel (0) target = $region21
  $region20: #{generator_forward.27} parent=0 // pred_region
    _
  $region21: #{generator_forward.27} parent=0 // pred_fallthru
    _

// kernel: generator_forward.29
$region0: #{generator_forward.29}
  #allocation0 [shape = 'u32[]', space=smem, size = 0x4, offset = 0x4, fixed_abs, tag = 'smem constant byte address 0x4 - core index']
  #allocation1 [shape = 'u32[144,128]{1,0:T(1,128)}', space=vmem, size = 0x12000, scoped, tag = 'internal scratch']
  #allocation2 [shape = 'f32[128,128]{1,0:T(8,128)}', space=vmem, size = 0x10000, scoped, tag = 'scratch operand']
  %s0 = inlined_call_operand.vmem [shape: bf16[128,128], index: 0, kind: input, shape index: {}]
  %s1 = inlined_call_operand.vmem [shape: bf16[128,128], index: 1, kind: input, shape index: {}]
  %s2 = inlined_call_operand.vmem [shape: f32[128,128], index: 2, kind: output, shape index: {}]
  %s3 = sld [smem:[#allocation0]]
  $region26: #{generator_forward.29} parent=0
    _
  %s5 = ssub.s32 1, %s3
  %s6 = scalar_select 0, %s5, %s3
  // Predicated region
  $region2: #{generator_forward.29} parent=0 // pred_check
    _
  $region3: #{generator_forward.29} parent=0 // pred_check_branch
    %8 = sbr.rel (0) target = $region5
  $region4: #{generator_forward.29} parent=0 // pred_region
    _
  $region5: #{generator_forward.29} parent=0 // pred_fallthru
    _
  // Predicated region
  $region6: #{generator_forward.29} parent=0 // pred_check
    _
  $region7: #{generator_forward.29} parent=0 // pred_check_branch
    %10 = sbr.rel (0) target = $region9
  $region8: #{generator_forward.29} parent=0 // pred_region
    _
  $region9: #{generator_forward.29} parent=0 // pred_fallthru
    _
  %p12 = scmp.eq.s32.totalorder 0, 0
  // Predicated region
  $region10: #{generator_forward.29} parent=0 // pred_check
    %p13 = pneg %p12
  $region11: #{generator_forward.29} parent=0 // pred_check_branch
    %15 = sbr.rel (%p13) target = $region13
  $region12: #{generator_forward.29} parent=0 // pred_region
    %16 = vst [vmem:[#allocation2] sm:$0xff] 0.0
    %17 = vst [vmem:[#allocation2 + $0x8] sm:$0xff] 0.0
    %18 = vst [vmem:[#allocation2 + $0x10] sm:$0xff] 0.0
    %19 = vst [vmem:[#allocation2 + $0x18] sm:$0xff] 0.0
    %20 = vst [vmem:[#allocation2 + $0x20] sm:$0xff] 0.0
    %21 = vst [vmem:[#allocation2 + $0x28] sm:$0xff] 0.0
    %22 = vst [vmem:[#allocation2 + $0x30] sm:$0xff] 0.0
    %23 = vst [vmem:[#allocation2 + $0x38] sm:$0xff] 0.0
    %24 = vst [vmem:[#allocation2 + $0x40] sm:$0xff] 0.0
    %25 = vst [vmem:[#allocation2 + $0x48] sm:$0xff] 0.0
    %26 = vst [vmem:[#allocation2 + $0x50] sm:$0xff] 0.0
    %27 = vst [vmem:[#allocation2 + $0x58] sm:$0xff] 0.0
    %28 = vst [vmem:[#allocation2 + $0x60] sm:$0xff] 0.0
    %29 = vst [vmem:[#allocation2 + $0x68] sm:$0xff] 0.0
    %30 = vst [vmem:[#allocation2 + $0x70] sm:$0xff] 0.0
    %31 = vst [vmem:[#allocation2 + $0x78] sm:$0xff] 0.0
  $region13: #{generator_forward.29} parent=0 // pred_fallthru
    _
  %v32 = vld [vmem:[#allocation2] sm:$0xff]
  %v33 = vld [vmem:[#allocation2 + $0x8] sm:$0xff]
  %v34 = vld [vmem:[#allocation2 + $0x10] sm:$0xff]
  %v35 = vld [vmem:[#allocation2 + $0x18] sm:$0xff]
  %v36 = vld [vmem:[#allocation2 + $0x20] sm:$0xff]
  %v37 = vld [vmem:[#allocation2 + $0x28] sm:$0xff]
  %v38 = vld [vmem:[#allocation2 + $0x30] sm:$0xff]
  %v39 = vld [vmem:[#allocation2 + $0x38] sm:$0xff]
  %v40 = vld [vmem:[#allocation2 + $0x40] sm:$0xff]
  %v41 = vld [vmem:[#allocation2 + $0x48] sm:$0xff]
  %v42 = vld [vmem:[#allocation2 + $0x50] sm:$0xff]
  %v43 = vld [vmem:[#allocation2 + $0x58] sm:$0xff]
  %v44 = vld [vmem:[#allocation2 + $0x60] sm:$0xff]
  %v45 = vld [vmem:[#allocation2 + $0x68] sm:$0xff]
  %v46 = vld [vmem:[#allocation2 + $0x70] sm:$0xff]
  %v47 = vld [vmem:[#allocation2 + $0x78] sm:$0xff]
  %v48 = vld [vmem:[%s0] sm:$0xf]
  %v49 = vld [vmem:[%s0 + $0x4] sm:$0xf]
  %v50 = vld [vmem:[%s0 + $0x8] sm:$0xf]
  %v51 = vld [vmem:[%s0 + $0xc] sm:$0xf]
  %v52 = vld [vmem:[%s0 + $0x10] sm:$0xf]
  %v53 = vld [vmem:[%s0 + $0x14] sm:$0xf]
  %v54 = vld [vmem:[%s0 + $0x18] sm:$0xf]
  %v55 = vld [vmem:[%s0 + $0x1c] sm:$0xf]
  %v56 = vld [vmem:[%s0 + $0x20] sm:$0xf]
  %v57 = vld [vmem:[%s0 + $0x24] sm:$0xf]
  %v58 = vld [vmem:[%s0 + $0x28] sm:$0xf]
  %v59 = vld [vmem:[%s0 + $0x2c] sm:$0xf]
  %v60 = vld [vmem:[%s0 + $0x30] sm:$0xf]
  %v61 = vld [vmem:[%s0 + $0x34] sm:$0xf]
  %v62 = vld [vmem:[%s0 + $0x38] sm:$0xf]
  %v63 = vld [vmem:[%s0 + $0x3c] sm:$0xf]
  %v64 = vld [vmem:[%s1] sm:$0xf]
  %v65 = vld [vmem:[%s1 + $0x4] sm:$0xf]
  %v66 = vld [vmem:[%s1 + $0x8] sm:$0xf]
  %v67 = vld [vmem:[%s1 + $0xc] sm:$0xf]
  %v68 = vld [vmem:[%s1 + $0x10] sm:$0xf]
  %v69 = vld [vmem:[%s1 + $0x14] sm:$0xf]
  %v70 = vld [vmem:[%s1 + $0x18] sm:$0xf]
  %v71 = vld [vmem:[%s1 + $0x1c] sm:$0xf]
  %v72 = vld [vmem:[%s1 + $0x20] sm:$0xf]
  %v73 = vld [vmem:[%s1 + $0x24] sm:$0xf]
  %v74 = vld [vmem:[%s1 + $0x28] sm:$0xf]
  %v75 = vld [vmem:[%s1 + $0x2c] sm:$0xf]
  %v76 = vld [vmem:[%s1 + $0x30] sm:$0xf]
  %v77 = vld [vmem:[%s1 + $0x34] sm:$0xf]
  %v78 = vld [vmem:[%s1 + $0x38] sm:$0xf]
  %v79 = vld [vmem:[%s1 + $0x3c] sm:$0xf]
  %v96 = vunpack.c.l.b16 %v48
  %v97 = vunpack.c.l.b16 %v49
  %v98 = vunpack.c.l.b16 %v50
  %v99 = vunpack.c.l.b16 %v51
  %v100 = vunpack.c.l.b16 %v52
  %v101 = vunpack.c.l.b16 %v53
  %v102 = vunpack.c.l.b16 %v54
  %v103 = vunpack.c.l.b16 %v55
  %v104 = vunpack.c.l.b16 %v56
  %v105 = vunpack.c.l.b16 %v57
  %v106 = vunpack.c.l.b16 %v58
  %v107 = vunpack.c.l.b16 %v59
  %v108 = vunpack.c.l.b16 %v60
  %v109 = vunpack.c.l.b16 %v61
  %v110 = vunpack.c.l.b16 %v62
  %v111 = vunpack.c.l.b16 %v63
  %v112 = vpack.c.b16 %v97, %v96
  %v113 = vpack.c.b16 %v99, %v98
  %v114 = vpack.c.b16 %v101, %v100
  %v115 = vpack.c.b16 %v103, %v102
  %v116 = vpack.c.b16 %v105, %v104
  %v117 = vpack.c.b16 %v107, %v106
  %v118 = vpack.c.b16 %v109, %v108
  %v119 = vpack.c.b16 %v111, %v110
  %v144 = vunpack.c.l.b16 %v64
  %v145 = vunpack.c.l.b16 %v65
  %v146 = vunpack.c.l.b16 %v66
  %v147 = vunpack.c.l.b16 %v67
  %v148 = vunpack.c.l.b16 %v68
  %v149 = vunpack.c.l.b16 %v69
  %v150 = vunpack.c.l.b16 %v70
  %v151 = vunpack.c.l.b16 %v71
  %v152 = vunpack.c.l.b16 %v72
  %v153 = vunpack.c.l.b16 %v73
  %v154 = vunpack.c.l.b16 %v74
  %v155 = vunpack.c.l.b16 %v75
  %v156 = vunpack.c.l.b16 %v76
  %v157 = vunpack.c.l.b16 %v77
  %v158 = vunpack.c.l.b16 %v78
  %v159 = vunpack.c.l.b16 %v79
  %v160 = vpack.c.b16 %v145, %v144
  %v161 = vpack.c.b16 %v147, %v146
  %v162 = vpack.c.b16 %v149, %v148
  %v163 = vpack.c.b16 %v151, %v150
  %v164 = vpack.c.b16 %v153, %v152
  %v165 = vpack.c.b16 %v155, %v154
  %v166 = vpack.c.b16 %v157, %v156
  %v167 = vpack.c.b16 %v159, %v158
  %176 = vmatprep.subr.bf16.mxu0 0
  %177 = vmatpush1.bf16.msra.mxu0 %v160
  %178 = vmatprep.subr.bf16.mxu0 0
  %179 = vmatpush1.bf16.msra.mxu0 %v161
  %180 = vmatprep.subr.bf16.mxu0 0
  %181 = vmatpush1.bf16.msra.mxu0 %v162
  %182 = vmatprep.subr.bf16.mxu0 0
  %183 = vmatpush1.bf16.msra.mxu0 %v163
  %184 = vmatprep.subr.bf16.mxu0 0
  %185 = vmatpush1.bf16.msra.mxu0 %v164
  %186 = vmatprep.subr.bf16.mxu0 0
  %187 = vmatpush1.bf16.msra.mxu0 %v165
  %188 = vmatprep.subr.bf16.mxu0 0
  %189 = vmatpush1.bf16.msra.mxu0 %v166
  %190 = vmatprep.subr.bf16.mxu0 0
  %191 = vmatpush1.bf16.msra.mxu0 %v167
  %192 = vmatprep.subr.bf16.mxu0 0
  %193 = vmatpush1.bf16.msra.mxu0 0
  %194 = vmatprep.subr.bf16.mxu0 0
  %195 = vmatpush1.bf16.msra.mxu0 0
  %196 = vmatprep.subr.bf16.mxu0 0
  %197 = vmatpush1.bf16.msra.mxu0 0
  %198 = vmatprep.subr.bf16.mxu0 0
  %199 = vmatpush1.bf16.msra.mxu0 0
  %200 = vmatprep.subr.bf16.mxu0 0
  %201 = vmatpush1.bf16.msra.mxu0 0
  %202 = vmatprep.subr.bf16.mxu0 0
  %203 = vmatpush1.bf16.msra.mxu0 0
  %204 = vmatprep.subr.bf16.mxu0 0
  %205 = vmatpush1.bf16.msra.mxu0 0
  %206 = vmatprep.subr.bf16.mxu0 0
  %207 = vmatpush1.bf16.msra.mxu0 0
  %208 = vmatprep.mubr.bf16.mxu0 0
  %209 = vmatmul.mubr.bf16.gmra.mrb[0].mxu0 %v112
  %v210 = vpop.f32.mrb[0].mxu0
  %v211 = vadd.f32 0.0, %v210
  %v212 = vpop.f32.mrb[0].mxu0
  %v213 = vpop.f32.mrb[0].mxu0
  %v214 = vadd.f32 0.0, %v213
  %v215 = vpop.f32.mrb[0].mxu0
  %216 = vmatprep.mubr.bf16.mxu0 0
  %217 = vmatmul.mubr.bf16.gmra.mrb[0].mxu0 %v113
  %v218 = vpop.f32.mrb[0].mxu0
  %v219 = vadd.f32 0.0, %v218
  %v220 = vpop.f32.mrb[0].mxu0
  %v221 = vpop.f32.mrb[0].mxu0
  %v222 = vadd.f32 0.0, %v221
  %v223 = vpop.f32.mrb[0].mxu0
  %224 = vmatprep.mubr.bf16.mxu0 0
  %225 = vmatmul.mubr.bf16.gmra.mrb[0].mxu0 %v114
  %v226 = vpop.f32.mrb[0].mxu0
  %v227 = vadd.f32 0.0, %v226
  %v228 = vpop.f32.mrb[0].mxu0
  %v229 = vpop.f32.mrb[0].mxu0
  %v230 = vadd.f32 0.0, %v229
  %v231 = vpop.f32.mrb[0].mxu0
  %232 = vmatprep.mubr.bf16.mxu0 0
  %233 = vmatmul.mubr.bf16.gmra.mrb[0].mxu0 %v115
  %v234 = vpop.f32.mrb[0].mxu0
  %v235 = vadd.f32 0.0, %v234
  %v236 = vpop.f32.mrb[0].mxu0
  %v237 = vpop.f32.mrb[0].mxu0
  %v238 = vadd.f32 0.0, %v237
  %v239 = vpop.f32.mrb[0].mxu0
  %240 = vmatprep.mubr.bf16.mxu0 0
  %241 = vmatmul.mubr.bf16.gmra.mrb[0].mxu0 %v116
  %v242 = vpop.f32.mrb[0].mxu0
  %v243 = vadd.f32 0.0, %v242
  %v244 = vpop.f32.mrb[0].mxu0
  %v245 = vpop.f32.mrb[0].mxu0
  %v246 = vadd.f32 0.0, %v245
  %v247 = vpop.f32.mrb[0].mxu0
  %248 = vmatprep.mubr.bf16.mxu0 0
  %249 = vmatmul.mubr.bf16.gmra.mrb[0].mxu0 %v117
  %v250 = vpop.f32.mrb[0].mxu0
  %v251 = vadd.f32 0.0, %v250
  %v252 = vpop.f32.mrb[0].mxu0
  %v253 = vpop.f32.mrb[0].mxu0
  %v254 = vadd.f32 0.0, %v253
  %v255 = vpop.f32.mrb[0].mxu0
  %256 = vmatprep.mubr.bf16.mxu0 0
  %257 = vmatmul.mubr.bf16.gmra.mrb[0].mxu0 %v118
  %v258 = vpop.f32.mrb[0].mxu0
  %v259 = vadd.f32 0.0, %v258
  %v260 = vpop.f32.mrb[0].mxu0
  %v261 = vpop.f32.mrb[0].mxu0
  %v262 = vadd.f32 0.0, %v261
  %v263 = vpop.f32.mrb[0].mxu0
  %264 = vmatprep.mubr.bf16.mxu0 0
  %265 = vmatmul.mubr.bf16.gmra.mrb[0].mxu0 %v119
  %v266 = vpop.f32.mrb[0].mxu0
  %v267 = vadd.f32 0.0, %v266
  %v268 = vpop.f32.mrb[0].mxu0
  %v269 = vpop.f32.mrb[0].mxu0
  %v270 = vadd.f32 0.0, %v269
  %v271 = vpop.f32.mrb[0].mxu0
  %272 = vdwg.mxu0
  %v273 = vadd.f32 %v32, %v211
  %v274 = vadd.f32 %v33, %v214
  %v275 = vadd.f32 %v34, %v219
  %v276 = vadd.f32 %v35, %v222
  %v277 = vadd.f32 %v36, %v227
  %v278 = vadd.f32 %v37, %v230
  %v279 = vadd.f32 %v38, %v235
  %v280 = vadd.f32 %v39, %v238
  %v281 = vadd.f32 %v40, %v243
  %v282 = vadd.f32 %v41, %v246
  %v283 = vadd.f32 %v42, %v251
  %v284 = vadd.f32 %v43, %v254
  %v285 = vadd.f32 %v44, %v259
  %v286 = vadd.f32 %v45, %v262
  %v287 = vadd.f32 %v46, %v267
  %v288 = vadd.f32 %v47, %v270
  %289 = vst [vmem:[#allocation2] sm:$0xff] %v273
  %290 = vst [vmem:[#allocation2 + $0x8] sm:$0xff] %v274
  %291 = vst [vmem:[#allocation2 + $0x10] sm:$0xff] %v275
  %292 = vst [vmem:[#allocation2 + $0x18] sm:$0xff] %v276
  %293 = vst [vmem:[#allocation2 + $0x20] sm:$0xff] %v277
  %294 = vst [vmem:[#allocation2 + $0x28] sm:$0xff] %v278
  %295 = vst [vmem:[#allocation2 + $0x30] sm:$0xff] %v279
  %296 = vst [vmem:[#allocation2 + $0x38] sm:$0xff] %v280
  %297 = vst [vmem:[#allocation2 + $0x40] sm:$0xff] %v281
  %298 = vst [vmem:[#allocation2 + $0x48] sm:$0xff] %v282
  %299 = vst [vmem:[#allocation2 + $0x50] sm:$0xff] %v283
  %300 = vst [vmem:[#allocation2 + $0x58] sm:$0xff] %v284
  %301 = vst [vmem:[#allocation2 + $0x60] sm:$0xff] %v285
  %302 = vst [vmem:[#allocation2 + $0x68] sm:$0xff] %v286
  %303 = vst [vmem:[#allocation2 + $0x70] sm:$0xff] %v287
  %304 = vst [vmem:[#allocation2 + $0x78] sm:$0xff] %v288
  // Predicated region
  $region14: #{generator_forward.29} parent=0 // pred_check
    %p305 = pneg %p12
  $region15: #{generator_forward.29} parent=0 // pred_check_branch
    %307 = sbr.rel (%p305) target = $region17
  $region16: #{generator_forward.29} parent=0 // pred_region
    %v308 = vld [vmem:[#allocation2] sm:$0xff]
    %v309 = vld [vmem:[#allocation2 + $0x8] sm:$0xff]
    %v310 = vld [vmem:[#allocation2 + $0x10] sm:$0xff]
    %v311 = vld [vmem:[#allocation2 + $0x18] sm:$0xff]
    %v312 = vld [vmem:[#allocation2 + $0x20] sm:$0xff]
    %v313 = vld [vmem:[#allocation2 + $0x28] sm:$0xff]
    %v314 = vld [vmem:[#allocation2 + $0x30] sm:$0xff]
    %v315 = vld [vmem:[#allocation2 + $0x38] sm:$0xff]
    %v316 = vld [vmem:[#allocation2 + $0x40] sm:$0xff]
    %v317 = vld [vmem:[#allocation2 + $0x48] sm:$0xff]
    %v318 = vld [vmem:[#allocation2 + $0x50] sm:$0xff]
    %v319 = vld [vmem:[#allocation2 + $0x58] sm:$0xff]
    %v320 = vld [vmem:[#allocation2 + $0x60] sm:$0xff]
    %v321 = vld [vmem:[#allocation2 + $0x68] sm:$0xff]
    %v322 = vld [vmem:[#allocation2 + $0x70] sm:$0xff]
    %v323 = vld [vmem:[#allocation2 + $0x78] sm:$0xff]
    %324 = vst [vmem:[%s2] sm:$0xff] %v308
    %325 = vst [vmem:[%s2 + $0x8] sm:$0xff] %v309
    %326 = vst [vmem:[%s2 + $0x10] sm:$0xff] %v310
    %327 = vst [vmem:[%s2 + $0x18] sm:$0xff] %v311
    %328 = vst [vmem:[%s2 + $0x20] sm:$0xff] %v312
    %329 = vst [vmem:[%s2 + $0x28] sm:$0xff] %v313
    %330 = vst [vmem:[%s2 + $0x30] sm:$0xff] %v314
    %331 = vst [vmem:[%s2 + $0x38] sm:$0xff] %v315
    %332 = vst [vmem:[%s2 + $0x40] sm:$0xff] %v316
    %333 = vst [vmem:[%s2 + $0x48] sm:$0xff] %v317
    %334 = vst [vmem:[%s2 + $0x50] sm:$0xff] %v318
    %335 = vst [vmem:[%s2 + $0x58] sm:$0xff] %v319
    %336 = vst [vmem:[%s2 + $0x60] sm:$0xff] %v320
    %337 = vst [vmem:[%s2 + $0x68] sm:$0xff] %v321
    %338 = vst [vmem:[%s2 + $0x70] sm:$0xff] %v322
    %339 = vst [vmem:[%s2 + $0x78] sm:$0xff] %v323
  $region17: #{generator_forward.29} parent=0 // pred_fallthru
    _
  // Predicated region
  $region18: #{generator_forward.29} parent=0 // pred_check
    _
  $region19: #{generator_forward.29} parent=0 // pred_check_branch
    %341 = sbr.rel (0) target = $region21
  $region20: #{generator_forward.29} parent=0 // pred_region
    _
  $region21: #{generator_forward.29} parent=0 // pred_fallthru
    _
  // Predicated region
  $region22: #{generator_forward.29} parent=0 // pred_check
    _
  $region23: #{generator_forward.29} parent=0 // pred_check_branch
    %343 = sbr.rel (0) target = $region25
  $region24: #{generator_forward.29} parent=0 // pred_region
    _
  $region25: #{generator_forward.29} parent=0 // pred_fallthru
    _

// kernel: generator_forward.32
$region0: #{generator_forward.32}
  #allocation0 [shape = 'u32[]', space=smem, size = 0x4, offset = 0x4, fixed_abs, tag = 'smem constant byte address 0x4 - core index']
  #allocation1 [shape = 'u32[144,128]{1,0:T(1,128)}', space=vmem, size = 0x12000, scoped, tag = 'internal scratch']
  %s0 = inlined_call_operand.vmem [shape: f32[512,16], index: 0, kind: input, shape index: {}]
  %s1 = inlined_call_operand.vmem [shape: f32[1,16], index: 1, kind: input, shape index: {}]
  %s2 = inlined_call_operand.vmem [shape: f32[1,16], index: 2, kind: input, shape index: {}]
  %s3 = inlined_call_operand.vmem [shape: bf16[512,16], index: 3, kind: output, shape index: {}]
  %s4 = sld [smem:[#allocation0]]
  $region22: #{generator_forward.32} parent=0
    _
  %s6 = ssub.s32 1, %s4
  %s7 = scalar_select 0, %s6, %s4
  // Predicated region
  $region2: #{generator_forward.32} parent=0 // pred_check
    _
  $region3: #{generator_forward.32} parent=0 // pred_check_branch
    %9 = sbr.rel (0) target = $region5
  $region4: #{generator_forward.32} parent=0 // pred_region
    _
  $region5: #{generator_forward.32} parent=0 // pred_fallthru
    _
  // Predicated region
  $region6: #{generator_forward.32} parent=0 // pred_check
    _
  $region7: #{generator_forward.32} parent=0 // pred_check_branch
    %11 = sbr.rel (0) target = $region9
  $region8: #{generator_forward.32} parent=0 // pred_region
    _
  $region9: #{generator_forward.32} parent=0 // pred_fallthru
    _
  // Predicated region
  $region10: #{generator_forward.32} parent=0 // pred_check
    _
  $region11: #{generator_forward.32} parent=0 // pred_check_branch
    %13 = sbr.rel (0) target = $region13
  $region12: #{generator_forward.32} parent=0 // pred_region
    _
  $region13: #{generator_forward.32} parent=0 // pred_fallthru
    _
  %v14 = vld [vmem:[%s0] sm:$0xff]
  %v15 = vld [vmem:[%s0 + $0x8] sm:$0xff]
  %v16 = vld [vmem:[%s0 + $0x10] sm:$0xff]
  %v17 = vld [vmem:[%s0 + $0x18] sm:$0xff]
  %v18 = vld [vmem:[%s0 + $0x20] sm:$0xff]
  %v19 = vld [vmem:[%s0 + $0x28] sm:$0xff]
  %v20 = vld [vmem:[%s0 + $0x30] sm:$0xff]
  %v21 = vld [vmem:[%s0 + $0x38] sm:$0xff]
  %v22 = vld [vmem:[%s0 + $0x40] sm:$0xff]
  %v23 = vld [vmem:[%s0 + $0x48] sm:$0xff]
  %v24 = vld [vmem:[%s0 + $0x50] sm:$0xff]
  %v25 = vld [vmem:[%s0 + $0x58] sm:$0xff]
  %v26 = vld [vmem:[%s0 + $0x60] sm:$0xff]
  %v27 = vld [vmem:[%s0 + $0x68] sm:$0xff]
  %v28 = vld [vmem:[%s0 + $0x70] sm:$0xff]
  %v29 = vld [vmem:[%s0 + $0x78] sm:$0xff]
  %v30 = vld [vmem:[%s0 + $0x80] sm:$0xff]
  %v31 = vld [vmem:[%s0 + $0x88] sm:$0xff]
  %v32 = vld [vmem:[%s0 + $0x90] sm:$0xff]
  %v33 = vld [vmem:[%s0 + $0x98] sm:$0xff]
  %v34 = vld [vmem:[%s0 + $0xa0] sm:$0xff]
  %v35 = vld [vmem:[%s0 + $0xa8] sm:$0xff]
  %v36 = vld [vmem:[%s0 + $0xb0] sm:$0xff]
  %v37 = vld [vmem:[%s0 + $0xb8] sm:$0xff]
  %v38 = vld [vmem:[%s0 + $0xc0] sm:$0xff]
  %v39 = vld [vmem:[%s0 + $0xc8] sm:$0xff]
  %v40 = vld [vmem:[%s0 + $0xd0] sm:$0xff]
  %v41 = vld [vmem:[%s0 + $0xd8] sm:$0xff]
  %v42 = vld [vmem:[%s0 + $0xe0] sm:$0xff]
  %v43 = vld [vmem:[%s0 + $0xe8] sm:$0xff]
  %v44 = vld [vmem:[%s0 + $0xf0] sm:$0xff]
  %v45 = vld [vmem:[%s0 + $0xf8] sm:$0xff]
  %v46 = vld [vmem:[%s0 + $0x100] sm:$0xff]
  %v47 = vld [vmem:[%s0 + $0x108] sm:$0xff]
  %v48 = vld [vmem:[%s0 + $0x110] sm:$0xff]
  %v49 = vld [vmem:[%s0 + $0x118] sm:$0xff]
  %v50 = vld [vmem:[%s0 + $0x120] sm:$0xff]
  %v51 = vld [vmem:[%s0 + $0x128] sm:$0xff]
  %v52 = vld [vmem:[%s0 + $0x130] sm:$0xff]
  %v53 = vld [vmem:[%s0 + $0x138] sm:$0xff]
  %v54 = vld [vmem:[%s0 + $0x140] sm:$0xff]
  %v55 = vld [vmem:[%s0 + $0x148] sm:$0xff]
  %v56 = vld [vmem:[%s0 + $0x150] sm:$0xff]
  %v57 = vld [vmem:[%s0 + $0x158] sm:$0xff]
  %v58 = vld [vmem:[%s0 + $0x160] sm:$0xff]
  %v59 = vld [vmem:[%s0 + $0x168] sm:$0xff]
  %v60 = vld [vmem:[%s0 + $0x170] sm:$0xff]
  %v61 = vld [vmem:[%s0 + $0x178] sm:$0xff]
  %v62 = vld [vmem:[%s0 + $0x180] sm:$0xff]
  %v63 = vld [vmem:[%s0 + $0x188] sm:$0xff]
  %v64 = vld [vmem:[%s0 + $0x190] sm:$0xff]
  %v65 = vld [vmem:[%s0 + $0x198] sm:$0xff]
  %v66 = vld [vmem:[%s0 + $0x1a0] sm:$0xff]
  %v67 = vld [vmem:[%s0 + $0x1a8] sm:$0xff]
  %v68 = vld [vmem:[%s0 + $0x1b0] sm:$0xff]
  %v69 = vld [vmem:[%s0 + $0x1b8] sm:$0xff]
  %v70 = vld [vmem:[%s0 + $0x1c0] sm:$0xff]
  %v71 = vld [vmem:[%s0 + $0x1c8] sm:$0xff]
  %v72 = vld [vmem:[%s0 + $0x1d0] sm:$0xff]
  %v73 = vld [vmem:[%s0 + $0x1d8] sm:$0xff]
  %v74 = vld [vmem:[%s0 + $0x1e0] sm:$0xff]
  %v75 = vld [vmem:[%s0 + $0x1e8] sm:$0xff]
  %v76 = vld [vmem:[%s0 + $0x1f0] sm:$0xff]
  %v77 = vld [vmem:[%s0 + $0x1f8] sm:$0xff]
  %v78 = vld [vmem:[%s1] sm:$0x1]
  %v80 = vlaneseq
  %v81 = vshrl.u32 %v80, 7
  %v82 = vsub.s32 0, %v81
  %v83 = vrot.slane %v78, %v82
  %v85 = vmul.f32 %v14, %v83
  %v86 = vmul.f32 %v15, %v83
  %v87 = vmul.f32 %v16, %v83
  %v88 = vmul.f32 %v17, %v83
  %v89 = vmul.f32 %v18, %v83
  %v90 = vmul.f32 %v19, %v83
  %v91 = vmul.f32 %v20, %v83
  %v92 = vmul.f32 %v21, %v83
  %v93 = vmul.f32 %v22, %v83
  %v94 = vmul.f32 %v23, %v83
  %v95 = vmul.f32 %v24, %v83
  %v96 = vmul.f32 %v25, %v83
  %v97 = vmul.f32 %v26, %v83
  %v98 = vmul.f32 %v27, %v83
  %v99 = vmul.f32 %v28, %v83
  %v100 = vmul.f32 %v29, %v83
  %v101 = vmul.f32 %v30, %v83
  %v102 = vmul.f32 %v31, %v83
  %v103 = vmul.f32 %v32, %v83
  %v104 = vmul.f32 %v33, %v83
  %v105 = vmul.f32 %v34, %v83
  %v106 = vmul.f32 %v35, %v83
  %v107 = vmul.f32 %v36, %v83
  %v108 = vmul.f32 %v37, %v83
  %v109 = vmul.f32 %v38, %v83
  %v110 = vmul.f32 %v39, %v83
  %v111 = vmul.f32 %v40, %v83
  %v112 = vmul.f32 %v41, %v83
  %v113 = vmul.f32 %v42, %v83
  %v114 = vmul.f32 %v43, %v83
  %v115 = vmul.f32 %v44, %v83
  %v116 = vmul.f32 %v45, %v83
  %v117 = vmul.f32 %v46, %v83
  %v118 = vmul.f32 %v47, %v83
  %v119 = vmul.f32 %v48, %v83
  %v120 = vmul.f32 %v49, %v83
  %v121 = vmul.f32 %v50, %v83
  %v122 = vmul.f32 %v51, %v83
  %v123 = vmul.f32 %v52, %v83
  %v124 = vmul.f32 %v53, %v83
  %v125 = vmul.f32 %v54, %v83
  %v126 = vmul.f32 %v55, %v83
  %v127 = vmul.f32 %v56, %v83
  %v128 = vmul.f32 %v57, %v83
  %v129 = vmul.f32 %v58, %v83
  %v130 = vmul.f32 %v59, %v83
  %v131 = vmul.f32 %v60, %v83
  %v132 = vmul.f32 %v61, %v83
  %v133 = vmul.f32 %v62, %v83
  %v134 = vmul.f32 %v63, %v83
  %v135 = vmul.f32 %v64, %v83
  %v136 = vmul.f32 %v65, %v83
  %v137 = vmul.f32 %v66, %v83
  %v138 = vmul.f32 %v67, %v83
  %v139 = vmul.f32 %v68, %v83
  %v140 = vmul.f32 %v69, %v83
  %v141 = vmul.f32 %v70, %v83
  %v142 = vmul.f32 %v71, %v83
  %v143 = vmul.f32 %v72, %v83
  %v144 = vmul.f32 %v73, %v83
  %v145 = vmul.f32 %v74, %v83
  %v146 = vmul.f32 %v75, %v83
  %v147 = vmul.f32 %v76, %v83
  %v148 = vmul.f32 %v77, %v83
  %v149 = vld [vmem:[%s2] sm:$0x1]
  %v151 = vlaneseq
  %v152 = vshrl.u32 %v151, 7
  %v153 = vsub.s32 0, %v152
  %v154 = vrot.slane %v149, %v153
  %v156 = vadd.f32 %v85, %v154
  %v157 = vadd.f32 %v86, %v154
  %v158 = vadd.f32 %v87, %v154
  %v159 = vadd.f32 %v88, %v154
  %v160 = vadd.f32 %v89, %v154
  %v161 = vadd.f32 %v90, %v154
  %v162 = vadd.f32 %v91, %v154
  %v163 = vadd.f32 %v92, %v154
  %v164 = vadd.f32 %v93, %v154
  %v165 = vadd.f32 %v94, %v154
  %v166 = vadd.f32 %v95, %v154
  %v167 = vadd.f32 %v96, %v154
  %v168 = vadd.f32 %v97, %v154
  %v169 = vadd.f32 %v98, %v154
  %v170 = vadd.f32 %v99, %v154
  %v171 = vadd.f32 %v100, %v154
  %v172 = vadd.f32 %v101, %v154
  %v173 = vadd.f32 %v102, %v154
  %v174 = vadd.f32 %v103, %v154
  %v175 = vadd.f32 %v104, %v154
  %v176 = vadd.f32 %v105, %v154
  %v177 = vadd.f32 %v106, %v154
  %v178 = vadd.f32 %v107, %v154
  %v179 = vadd.f32 %v108, %v154
  %v180 = vadd.f32 %v109, %v154
  %v181 = vadd.f32 %v110, %v154
  %v182 = vadd.f32 %v111, %v154
  %v183 = vadd.f32 %v112, %v154
  %v184 = vadd.f32 %v113, %v154
  %v185 = vadd.f32 %v114, %v154
  %v186 = vadd.f32 %v115, %v154
  %v187 = vadd.f32 %v116, %v154
  %v188 = vadd.f32 %v117, %v154
  %v189 = vadd.f32 %v118, %v154
  %v190 = vadd.f32 %v119, %v154
  %v191 = vadd.f32 %v120, %v154
  %v192 = vadd.f32 %v121, %v154
  %v193 = vadd.f32 %v122, %v154
  %v194 = vadd.f32 %v123, %v154
  %v195 = vadd.f32 %v124, %v154
  %v196 = vadd.f32 %v125, %v154
  %v197 = vadd.f32 %v126, %v154
  %v198 = vadd.f32 %v127, %v154
  %v199 = vadd.f32 %v128, %v154
  %v200 = vadd.f32 %v129, %v154
  %v201 = vadd.f32 %v130, %v154
  %v202 = vadd.f32 %v131, %v154
  %v203 = vadd.f32 %v132, %v154
  %v204 = vadd.f32 %v133, %v154
  %v205 = vadd.f32 %v134, %v154
  %v206 = vadd.f32 %v135, %v154
  %v207 = vadd.f32 %v136, %v154
  %v208 = vadd.f32 %v137, %v154
  %v209 = vadd.f32 %v138, %v154
  %v210 = vadd.f32 %v139, %v154
  %v211 = vadd.f32 %v140, %v154
  %v212 = vadd.f32 %v141, %v154
  %v213 = vadd.f32 %v142, %v154
  %v214 = vadd.f32 %v143, %v154
  %v215 = vadd.f32 %v144, %v154
  %v216 = vadd.f32 %v145, %v154
  %v217 = vadd.f32 %v146, %v154
  %v218 = vadd.f32 %v147, %v154
  %v219 = vadd.f32 %v148, %v154
  %v220 = vmax.f32 %v156, 0.0
  %v221 = vmax.f32 %v157, 0.0
  %v222 = vmax.f32 %v158, 0.0
  %v223 = vmax.f32 %v159, 0.0
  %v224 = vmax.f32 %v160, 0.0
  %v225 = vmax.f32 %v161, 0.0
  %v226 = vmax.f32 %v162, 0.0
  %v227 = vmax.f32 %v163, 0.0
  %v228 = vmax.f32 %v164, 0.0
  %v229 = vmax.f32 %v165, 0.0
  %v230 = vmax.f32 %v166, 0.0
  %v231 = vmax.f32 %v167, 0.0
  %v232 = vmax.f32 %v168, 0.0
  %v233 = vmax.f32 %v169, 0.0
  %v234 = vmax.f32 %v170, 0.0
  %v235 = vmax.f32 %v171, 0.0
  %v236 = vmax.f32 %v172, 0.0
  %v237 = vmax.f32 %v173, 0.0
  %v238 = vmax.f32 %v174, 0.0
  %v239 = vmax.f32 %v175, 0.0
  %v240 = vmax.f32 %v176, 0.0
  %v241 = vmax.f32 %v177, 0.0
  %v242 = vmax.f32 %v178, 0.0
  %v243 = vmax.f32 %v179, 0.0
  %v244 = vmax.f32 %v180, 0.0
  %v245 = vmax.f32 %v181, 0.0
  %v246 = vmax.f32 %v182, 0.0
  %v247 = vmax.f32 %v183, 0.0
  %v248 = vmax.f32 %v184, 0.0
  %v249 = vmax.f32 %v185, 0.0
  %v250 = vmax.f32 %v186, 0.0
  %v251 = vmax.f32 %v187, 0.0
  %v252 = vmax.f32 %v188, 0.0
  %v253 = vmax.f32 %v189, 0.0
  %v254 = vmax.f32 %v190, 0.0
  %v255 = vmax.f32 %v191, 0.0
  %v256 = vmax.f32 %v192, 0.0
  %v257 = vmax.f32 %v193, 0.0
  %v258 = vmax.f32 %v194, 0.0
  %v259 = vmax.f32 %v195, 0.0
  %v260 = vmax.f32 %v196, 0.0
  %v261 = vmax.f32 %v197, 0.0
  %v262 = vmax.f32 %v198, 0.0
  %v263 = vmax.f32 %v199, 0.0
  %v264 = vmax.f32 %v200, 0.0
  %v265 = vmax.f32 %v201, 0.0
  %v266 = vmax.f32 %v202, 0.0
  %v267 = vmax.f32 %v203, 0.0
  %v268 = vmax.f32 %v204, 0.0
  %v269 = vmax.f32 %v205, 0.0
  %v270 = vmax.f32 %v206, 0.0
  %v271 = vmax.f32 %v207, 0.0
  %v272 = vmax.f32 %v208, 0.0
  %v273 = vmax.f32 %v209, 0.0
  %v274 = vmax.f32 %v210, 0.0
  %v275 = vmax.f32 %v211, 0.0
  %v276 = vmax.f32 %v212, 0.0
  %v277 = vmax.f32 %v213, 0.0
  %v278 = vmax.f32 %v214, 0.0
  %v279 = vmax.f32 %v215, 0.0
  %v280 = vmax.f32 %v216, 0.0
  %v281 = vmax.f32 %v217, 0.0
  %v282 = vmax.f32 %v218, 0.0
  %v283 = vmax.f32 %v219, 0.0
  %v284 = vpack.c.bf16 %v221, %v220
  %v285 = vpack.c.bf16 %v223, %v222
  %v286 = vpack.c.bf16 %v225, %v224
  %v287 = vpack.c.bf16 %v227, %v226
  %v288 = vpack.c.bf16 %v229, %v228
  %v289 = vpack.c.bf16 %v231, %v230
  %v290 = vpack.c.bf16 %v233, %v232
  %v291 = vpack.c.bf16 %v235, %v234
  %v292 = vpack.c.bf16 %v237, %v236
  %v293 = vpack.c.bf16 %v239, %v238
  %v294 = vpack.c.bf16 %v241, %v240
  %v295 = vpack.c.bf16 %v243, %v242
  %v296 = vpack.c.bf16 %v245, %v244
  %v297 = vpack.c.bf16 %v247, %v246
  %v298 = vpack.c.bf16 %v249, %v248
  %v299 = vpack.c.bf16 %v251, %v250
  %v300 = vpack.c.bf16 %v253, %v252
  %v301 = vpack.c.bf16 %v255, %v254
  %v302 = vpack.c.bf16 %v257, %v256
  %v303 = vpack.c.bf16 %v259, %v258
  %v304 = vpack.c.bf16 %v261, %v260
  %v305 = vpack.c.bf16 %v263, %v262
  %v306 = vpack.c.bf16 %v265, %v264
  %v307 = vpack.c.bf16 %v267, %v266
  %v308 = vpack.c.bf16 %v269, %v268
  %v309 = vpack.c.bf16 %v271, %v270
  %v310 = vpack.c.bf16 %v273, %v272
  %v311 = vpack.c.bf16 %v275, %v274
  %v312 = vpack.c.bf16 %v277, %v276
  %v313 = vpack.c.bf16 %v279, %v278
  %v314 = vpack.c.bf16 %v281, %v280
  %v315 = vpack.c.bf16 %v283, %v282
  %v348 = vunpack.c.l.b16 %v284
  %v349 = vunpack.c.h.b16 %v284
  %v350 = vunpack.c.l.b16 %v285
  %v351 = vunpack.c.h.b16 %v285
  %v352 = vunpack.c.l.b16 %v286
  %v353 = vunpack.c.h.b16 %v286
  %v354 = vunpack.c.l.b16 %v287
  %v355 = vunpack.c.h.b16 %v287
  %v356 = vunpack.c.l.b16 %v288
  %v357 = vunpack.c.h.b16 %v288
  %v358 = vunpack.c.l.b16 %v289
  %v359 = vunpack.c.h.b16 %v289
  %v360 = vunpack.c.l.b16 %v290
  %v361 = vunpack.c.h.b16 %v290
  %v362 = vunpack.c.l.b16 %v291
  %v363 = vunpack.c.h.b16 %v291
  %v364 = vunpack.c.l.b16 %v292
  %v365 = vunpack.c.h.b16 %v292
  %v366 = vunpack.c.l.b16 %v293
  %v367 = vunpack.c.h.b16 %v293
  %v368 = vunpack.c.l.b16 %v294
  %v369 = vunpack.c.h.b16 %v294
  %v370 = vunpack.c.l.b16 %v295
  %v371 = vunpack.c.h.b16 %v295
  %v372 = vunpack.c.l.b16 %v296
  %v373 = vunpack.c.h.b16 %v296
  %v374 = vunpack.c.l.b16 %v297
  %v375 = vunpack.c.h.b16 %v297
  %v376 = vunpack.c.l.b16 %v298
  %v377 = vunpack.c.h.b16 %v298
  %v378 = vunpack.c.l.b16 %v299
  %v379 = vunpack.c.h.b16 %v299
  %v380 = vunpack.c.l.b16 %v300
  %v381 = vunpack.c.h.b16 %v300
  %v382 = vunpack.c.l.b16 %v301
  %v383 = vunpack.c.h.b16 %v301
  %v384 = vunpack.c.l.b16 %v302
  %v385 = vunpack.c.h.b16 %v302
  %v386 = vunpack.c.l.b16 %v303
  %v387 = vunpack.c.h.b16 %v303
  %v388 = vunpack.c.l.b16 %v304
  %v389 = vunpack.c.h.b16 %v304
  %v390 = vunpack.c.l.b16 %v305
  %v391 = vunpack.c.h.b16 %v305
  %v392 = vunpack.c.l.b16 %v306
  %v393 = vunpack.c.h.b16 %v306
  %v394 = vunpack.c.l.b16 %v307
  %v395 = vunpack.c.h.b16 %v307
  %v396 = vunpack.c.l.b16 %v308
  %v397 = vunpack.c.h.b16 %v308
  %v398 = vunpack.c.l.b16 %v309
  %v399 = vunpack.c.h.b16 %v309
  %v400 = vunpack.c.l.b16 %v310
  %v401 = vunpack.c.h.b16 %v310
  %v402 = vunpack.c.l.b16 %v311
  %v403 = vunpack.c.h.b16 %v311
  %v404 = vunpack.c.l.b16 %v312
  %v405 = vunpack.c.h.b16 %v312
  %v406 = vunpack.c.l.b16 %v313
  %v407 = vunpack.c.h.b16 %v313
  %v408 = vunpack.c.l.b16 %v314
  %v409 = vunpack.c.h.b16 %v314
  %v410 = vunpack.c.l.b16 %v315
  %v411 = vunpack.c.h.b16 %v315
  %v412 = vpack.c.b16 %v348, %v348
  %v413 = vpack.c.b16 %v349, %v349
  %v414 = vpack.c.b16 %v350, %v350
  %v415 = vpack.c.b16 %v351, %v351
  %v416 = vpack.c.b16 %v352, %v352
  %v417 = vpack.c.b16 %v353, %v353
  %v418 = vpack.c.b16 %v354, %v354
  %v419 = vpack.c.b16 %v355, %v355
  %v420 = vpack.c.b16 %v356, %v356
  %v421 = vpack.c.b16 %v357, %v357
  %v422 = vpack.c.b16 %v358, %v358
  %v423 = vpack.c.b16 %v359, %v359
  %v424 = vpack.c.b16 %v360, %v360
  %v425 = vpack.c.b16 %v361, %v361
  %v426 = vpack.c.b16 %v362, %v362
  %v427 = vpack.c.b16 %v363, %v363
  %v428 = vpack.c.b16 %v364, %v364
  %v429 = vpack.c.b16 %v365, %v365
  %v430 = vpack.c.b16 %v366, %v366
  %v431 = vpack.c.b16 %v367, %v367
  %v432 = vpack.c.b16 %v368, %v368
  %v433 = vpack.c.b16 %v369, %v369
  %v434 = vpack.c.b16 %v370, %v370
  %v435 = vpack.c.b16 %v371, %v371
  %v436 = vpack.c.b16 %v372, %v372
  %v437 = vpack.c.b16 %v373, %v373
  %v438 = vpack.c.b16 %v374, %v374
  %v439 = vpack.c.b16 %v375, %v375
  %v440 = vpack.c.b16 %v376, %v376
  %v441 = vpack.c.b16 %v377, %v377
  %v442 = vpack.c.b16 %v378, %v378
  %v443 = vpack.c.b16 %v379, %v379
  %v444 = vpack.c.b16 %v380, %v380
  %v445 = vpack.c.b16 %v381, %v381
  %v446 = vpack.c.b16 %v382, %v382
  %v447 = vpack.c.b16 %v383, %v383
  %v448 = vpack.c.b16 %v384, %v384
  %v449 = vpack.c.b16 %v385, %v385
  %v450 = vpack.c.b16 %v386, %v386
  %v451 = vpack.c.b16 %v387, %v387
  %v452 = vpack.c.b16 %v388, %v388
  %v453 = vpack.c.b16 %v389, %v389
  %v454 = vpack.c.b16 %v390, %v390
  %v455 = vpack.c.b16 %v391, %v391
  %v456 = vpack.c.b16 %v392, %v392
  %v457 = vpack.c.b16 %v393, %v393
  %v458 = vpack.c.b16 %v394, %v394
  %v459 = vpack.c.b16 %v395, %v395
  %v460 = vpack.c.b16 %v396, %v396
  %v461 = vpack.c.b16 %v397, %v397
  %v462 = vpack.c.b16 %v398, %v398
  %v463 = vpack.c.b16 %v399, %v399
  %v464 = vpack.c.b16 %v400, %v400
  %v465 = vpack.c.b16 %v401, %v401
  %v466 = vpack.c.b16 %v402, %v402
  %v467 = vpack.c.b16 %v403, %v403
  %v468 = vpack.c.b16 %v404, %v404
  %v469 = vpack.c.b16 %v405, %v405
  %v470 = vpack.c.b16 %v406, %v406
  %v471 = vpack.c.b16 %v407, %v407
  %v472 = vpack.c.b16 %v408, %v408
  %v473 = vpack.c.b16 %v409, %v409
  %v474 = vpack.c.b16 %v410, %v410
  %v475 = vpack.c.b16 %v411, %v411
  %vm540 = vcmask 125952
  %541 = vst.msk [vmem:[%s3] sm:$0xf] %vm540, %v412
  %542 = vst.msk [vmem:[%s3 + $0x4] sm:$0xf] %vm540, %v413
  %543 = vst.msk [vmem:[%s3 + $0x8] sm:$0xf] %vm540, %v414
  %544 = vst.msk [vmem:[%s3 + $0xc] sm:$0xf] %vm540, %v415
  %545 = vst.msk [vmem:[%s3 + $0x10] sm:$0xf] %vm540, %v416
  %546 = vst.msk [vmem:[%s3 + $0x14] sm:$0xf] %vm540, %v417
  %547 = vst.msk [vmem:[%s3 + $0x18] sm:$0xf] %vm540, %v418
  %548 = vst.msk [vmem:[%s3 + $0x1c] sm:$0xf] %vm540, %v419
  %549 = vst.msk [vmem:[%s3 + $0x20] sm:$0xf] %vm540, %v420
  %550 = vst.msk [vmem:[%s3 + $0x24] sm:$0xf] %vm540, %v421
  %551 = vst.msk [vmem:[%s3 + $0x28] sm:$0xf] %vm540, %v422
  %552 = vst.msk [vmem:[%s3 + $0x2c] sm:$0xf] %vm540, %v423
  %553 = vst.msk [vmem:[%s3 + $0x30] sm:$0xf] %vm540, %v424
  %554 = vst.msk [vmem:[%s3 + $0x34] sm:$0xf] %vm540, %v425
  %555 = vst.msk [vmem:[%s3 + $0x38] sm:$0xf] %vm540, %v426
  %556 = vst.msk [vmem:[%s3 + $0x3c] sm:$0xf] %vm540, %v427
  %557 = vst.msk [vmem:[%s3 + $0x40] sm:$0xf] %vm540, %v428
  %558 = vst.msk [vmem:[%s3 + $0x44] sm:$0xf] %vm540, %v429
  %559 = vst.msk [vmem:[%s3 + $0x48] sm:$0xf] %vm540, %v430
  %560 = vst.msk [vmem:[%s3 + $0x4c] sm:$0xf] %vm540, %v431
  %561 = vst.msk [vmem:[%s3 + $0x50] sm:$0xf] %vm540, %v432
  %562 = vst.msk [vmem:[%s3 + $0x54] sm:$0xf] %vm540, %v433
  %563 = vst.msk [vmem:[%s3 + $0x58] sm:$0xf] %vm540, %v434
  %564 = vst.msk [vmem:[%s3 + $0x5c] sm:$0xf] %vm540, %v435
  %565 = vst.msk [vmem:[%s3 + $0x60] sm:$0xf] %vm540, %v436
  %566 = vst.msk [vmem:[%s3 + $0x64] sm:$0xf] %vm540, %v437
  %567 = vst.msk [vmem:[%s3 + $0x68] sm:$0xf] %vm540, %v438
  %568 = vst.msk [vmem:[%s3 + $0x6c] sm:$0xf] %vm540, %v439
  %569 = vst.msk [vmem:[%s3 + $0x70] sm:$0xf] %vm540, %v440
  %570 = vst.msk [vmem:[%s3 + $0x74] sm:$0xf] %vm540, %v441
  %571 = vst.msk [vmem:[%s3 + $0x78] sm:$0xf] %vm540, %v442
  %572 = vst.msk [vmem:[%s3 + $0x7c] sm:$0xf] %vm540, %v443
  %573 = vst.msk [vmem:[%s3 + $0x80] sm:$0xf] %vm540, %v444
  %574 = vst.msk [vmem:[%s3 + $0x84] sm:$0xf] %vm540, %v445
  %575 = vst.msk [vmem:[%s3 + $0x88] sm:$0xf] %vm540, %v446
  %576 = vst.msk [vmem:[%s3 + $0x8c] sm:$0xf] %vm540, %v447
  %577 = vst.msk [vmem:[%s3 + $0x90] sm:$0xf] %vm540, %v448
  %578 = vst.msk [vmem:[%s3 + $0x94] sm:$0xf] %vm540, %v449
  %579 = vst.msk [vmem:[%s3 + $0x98] sm:$0xf] %vm540, %v450
  %580 = vst.msk [vmem:[%s3 + $0x9c] sm:$0xf] %vm540, %v451
  %581 = vst.msk [vmem:[%s3 + $0xa0] sm:$0xf] %vm540, %v452
  %582 = vst.msk [vmem:[%s3 + $0xa4] sm:$0xf] %vm540, %v453
  %583 = vst.msk [vmem:[%s3 + $0xa8] sm:$0xf] %vm540, %v454
  %584 = vst.msk [vmem:[%s3 + $0xac] sm:$0xf] %vm540, %v455
  %585 = vst.msk [vmem:[%s3 + $0xb0] sm:$0xf] %vm540, %v456
  %586 = vst.msk [vmem:[%s3 + $0xb4] sm:$0xf] %vm540, %v457
  %587 = vst.msk [vmem:[%s3 + $0xb8] sm:$0xf] %vm540, %v458
  %588 = vst.msk [vmem:[%s3 + $0xbc] sm:$0xf] %vm540, %v459
  %589 = vst.msk [vmem:[%s3 + $0xc0] sm:$0xf] %vm540, %v460
  %590 = vst.msk [vmem:[%s3 + $0xc4] sm:$0xf] %vm540, %v461
  %591 = vst.msk [vmem:[%s3 + $0xc8] sm:$0xf] %vm540, %v462
  %592 = vst.msk [vmem:[%s3 + $0xcc] sm:$0xf] %vm540, %v463
  %593 = vst.msk [vmem:[%s3 + $0xd0] sm:$0xf] %vm540, %v464
  %594 = vst.msk [vmem:[%s3 + $0xd4] sm:$0xf] %vm540, %v465
  %595 = vst.msk [vmem:[%s3 + $0xd8] sm:$0xf] %vm540, %v466
  %596 = vst.msk [vmem:[%s3 + $0xdc] sm:$0xf] %vm540, %v467
  %597 = vst.msk [vmem:[%s3 + $0xe0] sm:$0xf] %vm540, %v468
  %598 = vst.msk [vmem:[%s3 + $0xe4] sm:$0xf] %vm540, %v469
  %599 = vst.msk [vmem:[%s3 + $0xe8] sm:$0xf] %vm540, %v470
  %600 = vst.msk [vmem:[%s3 + $0xec] sm:$0xf] %vm540, %v471
  %601 = vst.msk [vmem:[%s3 + $0xf0] sm:$0xf] %vm540, %v472
  %602 = vst.msk [vmem:[%s3 + $0xf4] sm:$0xf] %vm540, %v473
  %603 = vst.msk [vmem:[%s3 + $0xf8] sm:$0xf] %vm540, %v474
  %604 = vst.msk [vmem:[%s3 + $0xfc] sm:$0xf] %vm540, %v475
  // Predicated region
  $region14: #{generator_forward.32} parent=0 // pred_check
    _
  $region15: #{generator_forward.32} parent=0 // pred_check_branch
    %606 = sbr.rel (0) target = $region17
  $region16: #{generator_forward.32} parent=0 // pred_region
    _
  $region17: #{generator_forward.32} parent=0 // pred_fallthru
    _
  // Predicated region
  $region18: #{generator_forward.32} parent=0 // pred_check
    _
  $region19: #{generator_forward.32} parent=0 // pred_check_branch
    %608 = sbr.rel (0) target = $region21
  $region20: #{generator_forward.32} parent=0 // pred_region
    _
  $region21: #{generator_forward.32} parent=0 // pred_fallthru
    _

// kernel: generator_forward.34
$region0: #{generator_forward.34}
  #allocation0 [shape = 'u32[]', space=smem, size = 0x4, offset = 0x4, fixed_abs, tag = 'smem constant byte address 0x4 - core index']
  #allocation1 [shape = 'u32[144,128]{1,0:T(1,128)}', space=vmem, size = 0x12000, scoped, tag = 'internal scratch']
  #allocation2 [shape = 'f32[512,128]{1,0:T(8,128)}', space=vmem, size = 0x40000, scoped, tag = 'scratch operand']
  %s0 = inlined_call_operand.vmem [shape: bf16[512,128], index: 0, kind: input, shape index: {}]
  %s1 = inlined_call_operand.vmem [shape: bf16[128,128], index: 1, kind: input, shape index: {}]
  %s2 = inlined_call_operand.vmem [shape: f32[512,128], index: 2, kind: output, shape index: {}]
  %s3 = sld [smem:[#allocation0]]
  $region26: #{generator_forward.34} parent=0
    _
  %s5 = ssub.s32 1, %s3
  %s6 = scalar_select 0, %s5, %s3
  // Predicated region
  $region2: #{generator_forward.34} parent=0 // pred_check
    _
  $region3: #{generator_forward.34} parent=0 // pred_check_branch
    %8 = sbr.rel (0) target = $region5
  $region4: #{generator_forward.34} parent=0 // pred_region
    _
  $region5: #{generator_forward.34} parent=0 // pred_fallthru
    _
  // Predicated region
  $region6: #{generator_forward.34} parent=0 // pred_check
    _
  $region7: #{generator_forward.34} parent=0 // pred_check_branch
    %10 = sbr.rel (0) target = $region9
  $region8: #{generator_forward.34} parent=0 // pred_region
    _
  $region9: #{generator_forward.34} parent=0 // pred_fallthru
    _
  %p12 = scmp.eq.s32.totalorder 0, 0
  // Predicated region
  $region10: #{generator_forward.34} parent=0 // pred_check
    %p13 = pneg %p12
  $region11: #{generator_forward.34} parent=0 // pred_check_branch
    %15 = sbr.rel (%p13) target = $region13
  $region12: #{generator_forward.34} parent=0 // pred_region
    %16 = vst [vmem:[#allocation2] sm:$0xff] 0.0
    %17 = vst [vmem:[#allocation2 + $0x8] sm:$0xff] 0.0
    %18 = vst [vmem:[#allocation2 + $0x10] sm:$0xff] 0.0
    %19 = vst [vmem:[#allocation2 + $0x18] sm:$0xff] 0.0
    %20 = vst [vmem:[#allocation2 + $0x20] sm:$0xff] 0.0
    %21 = vst [vmem:[#allocation2 + $0x28] sm:$0xff] 0.0
    %22 = vst [vmem:[#allocation2 + $0x30] sm:$0xff] 0.0
    %23 = vst [vmem:[#allocation2 + $0x38] sm:$0xff] 0.0
    %24 = vst [vmem:[#allocation2 + $0x40] sm:$0xff] 0.0
    %25 = vst [vmem:[#allocation2 + $0x48] sm:$0xff] 0.0
    %26 = vst [vmem:[#allocation2 + $0x50] sm:$0xff] 0.0
    %27 = vst [vmem:[#allocation2 + $0x58] sm:$0xff] 0.0
    %28 = vst [vmem:[#allocation2 + $0x60] sm:$0xff] 0.0
    %29 = vst [vmem:[#allocation2 + $0x68] sm:$0xff] 0.0
    %30 = vst [vmem:[#allocation2 + $0x70] sm:$0xff] 0.0
    %31 = vst [vmem:[#allocation2 + $0x78] sm:$0xff] 0.0
    %32 = vst [vmem:[#allocation2 + $0x80] sm:$0xff] 0.0
    %33 = vst [vmem:[#allocation2 + $0x88] sm:$0xff] 0.0
    %34 = vst [vmem:[#allocation2 + $0x90] sm:$0xff] 0.0
    %35 = vst [vmem:[#allocation2 + $0x98] sm:$0xff] 0.0
    %36 = vst [vmem:[#allocation2 + $0xa0] sm:$0xff] 0.0
    %37 = vst [vmem:[#allocation2 + $0xa8] sm:$0xff] 0.0
    %38 = vst [vmem:[#allocation2 + $0xb0] sm:$0xff] 0.0
    %39 = vst [vmem:[#allocation2 + $0xb8] sm:$0xff] 0.0
    %40 = vst [vmem:[#allocation2 + $0xc0] sm:$0xff] 0.0
    %41 = vst [vmem:[#allocation2 + $0xc8] sm:$0xff] 0.0
    %42 = vst [vmem:[#allocation2 + $0xd0] sm:$0xff] 0.0
    %43 = vst [vmem:[#allocation2 + $0xd8] sm:$0xff] 0.0
    %44 = vst [vmem:[#allocation2 + $0xe0] sm:$0xff] 0.0
    %45 = vst [vmem:[#allocation2 + $0xe8] sm:$0xff] 0.0
    %46 = vst [vmem:[#allocation2 + $0xf0] sm:$0xff] 0.0
    %47 = vst [vmem:[#allocation2 + $0xf8] sm:$0xff] 0.0
    %48 = vst [vmem:[#allocation2 + $0x100] sm:$0xff] 0.0
    %49 = vst [vmem:[#allocation2 + $0x108] sm:$0xff] 0.0
    %50 = vst [vmem:[#allocation2 + $0x110] sm:$0xff] 0.0
    %51 = vst [vmem:[#allocation2 + $0x118] sm:$0xff] 0.0
    %52 = vst [vmem:[#allocation2 + $0x120] sm:$0xff] 0.0
    %53 = vst [vmem:[#allocation2 + $0x128] sm:$0xff] 0.0
    %54 = vst [vmem:[#allocation2 + $0x130] sm:$0xff] 0.0
    %55 = vst [vmem:[#allocation2 + $0x138] sm:$0xff] 0.0
    %56 = vst [vmem:[#allocation2 + $0x140] sm:$0xff] 0.0
    %57 = vst [vmem:[#allocation2 + $0x148] sm:$0xff] 0.0
    %58 = vst [vmem:[#allocation2 + $0x150] sm:$0xff] 0.0
    %59 = vst [vmem:[#allocation2 + $0x158] sm:$0xff] 0.0
    %60 = vst [vmem:[#allocation2 + $0x160] sm:$0xff] 0.0
    %61 = vst [vmem:[#allocation2 + $0x168] sm:$0xff] 0.0
    %62 = vst [vmem:[#allocation2 + $0x170] sm:$0xff] 0.0
    %63 = vst [vmem:[#allocation2 + $0x178] sm:$0xff] 0.0
    %64 = vst [vmem:[#allocation2 + $0x180] sm:$0xff] 0.0
    %65 = vst [vmem:[#allocation2 + $0x188] sm:$0xff] 0.0
    %66 = vst [vmem:[#allocation2 + $0x190] sm:$0xff] 0.0
    %67 = vst [vmem:[#allocation2 + $0x198] sm:$0xff] 0.0
    %68 = vst [vmem:[#allocation2 + $0x1a0] sm:$0xff] 0.0
    %69 = vst [vmem:[#allocation2 + $0x1a8] sm:$0xff] 0.0
    %70 = vst [vmem:[#allocation2 + $0x1b0] sm:$0xff] 0.0
    %71 = vst [vmem:[#allocation2 + $0x1b8] sm:$0xff] 0.0
    %72 = vst [vmem:[#allocation2 + $0x1c0] sm:$0xff] 0.0
    %73 = vst [vmem:[#allocation2 + $0x1c8] sm:$0xff] 0.0
    %74 = vst [vmem:[#allocation2 + $0x1d0] sm:$0xff] 0.0
    %75 = vst [vmem:[#allocation2 + $0x1d8] sm:$0xff] 0.0
    %76 = vst [vmem:[#allocation2 + $0x1e0] sm:$0xff] 0.0
    %77 = vst [vmem:[#allocation2 + $0x1e8] sm:$0xff] 0.0
    %78 = vst [vmem:[#allocation2 + $0x1f0] sm:$0xff] 0.0
    %79 = vst [vmem:[#allocation2 + $0x1f8] sm:$0xff] 0.0
  $region13: #{generator_forward.34} parent=0 // pred_fallthru
    _
  %v80 = vld [vmem:[#allocation2] sm:$0xff]
  %v81 = vld [vmem:[#allocation2 + $0x8] sm:$0xff]
  %v82 = vld [vmem:[#allocation2 + $0x10] sm:$0xff]
  %v83 = vld [vmem:[#allocation2 + $0x18] sm:$0xff]
  %v84 = vld [vmem:[#allocation2 + $0x20] sm:$0xff]
  %v85 = vld [vmem:[#allocation2 + $0x28] sm:$0xff]
  %v86 = vld [vmem:[#allocation2 + $0x30] sm:$0xff]
  %v87 = vld [vmem:[#allocation2 + $0x38] sm:$0xff]
  %v88 = vld [vmem:[#allocation2 + $0x40] sm:$0xff]
  %v89 = vld [vmem:[#allocation2 + $0x48] sm:$0xff]
  %v90 = vld [vmem:[#allocation2 + $0x50] sm:$0xff]
  %v91 = vld [vmem:[#allocation2 + $0x58] sm:$0xff]
  %v92 = vld [vmem:[#allocation2 + $0x60] sm:$0xff]
  %v93 = vld [vmem:[#allocation2 + $0x68] sm:$0xff]
  %v94 = vld [vmem:[#allocation2 + $0x70] sm:$0xff]
  %v95 = vld [vmem:[#allocation2 + $0x78] sm:$0xff]
  %v96 = vld [vmem:[#allocation2 + $0x80] sm:$0xff]
  %v97 = vld [vmem:[#allocation2 + $0x88] sm:$0xff]
  %v98 = vld [vmem:[#allocation2 + $0x90] sm:$0xff]
  %v99 = vld [vmem:[#allocation2 + $0x98] sm:$0xff]
  %v100 = vld [vmem:[#allocation2 + $0xa0] sm:$0xff]
  %v101 = vld [vmem:[#allocation2 + $0xa8] sm:$0xff]
  %v102 = vld [vmem:[#allocation2 + $0xb0] sm:$0xff]
  %v103 = vld [vmem:[#allocation2 + $0xb8] sm:$0xff]
  %v104 = vld [vmem:[#allocation2 + $0xc0] sm:$0xff]
  %v105 = vld [vmem:[#allocation2 + $0xc8] sm:$0xff]
  %v106 = vld [vmem:[#allocation2 + $0xd0] sm:$0xff]
  %v107 = vld [vmem:[#allocation2 + $0xd8] sm:$0xff]
  %v108 = vld [vmem:[#allocation2 + $0xe0] sm:$0xff]
  %v109 = vld [vmem:[#allocation2 + $0xe8] sm:$0xff]
  %v110 = vld [vmem:[#allocation2 + $0xf0] sm:$0xff]
  %v111 = vld [vmem:[#allocation2 + $0xf8] sm:$0xff]
  %v112 = vld [vmem:[#allocation2 + $0x100] sm:$0xff]
  %v113 = vld [vmem:[#allocation2 + $0x108] sm:$0xff]
  %v114 = vld [vmem:[#allocation2 + $0x110] sm:$0xff]
  %v115 = vld [vmem:[#allocation2 + $0x118] sm:$0xff]
  %v116 = vld [vmem:[#allocation2 + $0x120] sm:$0xff]
  %v117 = vld [vmem:[#allocation2 + $0x128] sm:$0xff]
  %v118 = vld [vmem:[#allocation2 + $0x130] sm:$0xff]
  %v119 = vld [vmem:[#allocation2 + $0x138] sm:$0xff]
  %v120 = vld [vmem:[#allocation2 + $0x140] sm:$0xff]
  %v121 = vld [vmem:[#allocation2 + $0x148] sm:$0xff]
  %v122 = vld [vmem:[#allocation2 + $0x150] sm:$0xff]
  %v123 = vld [vmem:[#allocation2 + $0x158] sm:$0xff]
  %v124 = vld [vmem:[#allocation2 + $0x160] sm:$0xff]
  %v125 = vld [vmem:[#allocation2 + $0x168] sm:$0xff]
  %v126 = vld [vmem:[#allocation2 + $0x170] sm:$0xff]
  %v127 = vld [vmem:[#allocation2 + $0x178] sm:$0xff]
  %v128 = vld [vmem:[#allocation2 + $0x180] sm:$0xff]
  %v129 = vld [vmem:[#allocation2 + $0x188] sm:$0xff]
  %v130 = vld [vmem:[#allocation2 + $0x190] sm:$0xff]
  %v131 = vld [vmem:[#allocation2 + $0x198] sm:$0xff]
  %v132 = vld [vmem:[#allocation2 + $0x1a0] sm:$0xff]
  %v133 = vld [vmem:[#allocation2 + $0x1a8] sm:$0xff]
  %v134 = vld [vmem:[#allocation2 + $0x1b0] sm:$0xff]
  %v135 = vld [vmem:[#allocation2 + $0x1b8] sm:$0xff]
  %v136 = vld [vmem:[#allocation2 + $0x1c0] sm:$0xff]
  %v137 = vld [vmem:[#allocation2 + $0x1c8] sm:$0xff]
  %v138 = vld [vmem:[#allocation2 + $0x1d0] sm:$0xff]
  %v139 = vld [vmem:[#allocation2 + $0x1d8] sm:$0xff]
  %v140 = vld [vmem:[#allocation2 + $0x1e0] sm:$0xff]
  %v141 = vld [vmem:[#allocation2 + $0x1e8] sm:$0xff]
  %v142 = vld [vmem:[#allocation2 + $0x1f0] sm:$0xff]
  %v143 = vld [vmem:[#allocation2 + $0x1f8] sm:$0xff]
  %v144 = vld [vmem:[%s0] sm:$0xf]
  %v145 = vld [vmem:[%s0 + $0x4] sm:$0xf]
  %v146 = vld [vmem:[%s0 + $0x8] sm:$0xf]
  %v147 = vld [vmem:[%s0 + $0xc] sm:$0xf]
  %v148 = vld [vmem:[%s0 + $0x10] sm:$0xf]
  %v149 = vld [vmem:[%s0 + $0x14] sm:$0xf]
  %v150 = vld [vmem:[%s0 + $0x18] sm:$0xf]
  %v151 = vld [vmem:[%s0 + $0x1c] sm:$0xf]
  %v152 = vld [vmem:[%s0 + $0x20] sm:$0xf]
  %v153 = vld [vmem:[%s0 + $0x24] sm:$0xf]
  %v154 = vld [vmem:[%s0 + $0x28] sm:$0xf]
  %v155 = vld [vmem:[%s0 + $0x2c] sm:$0xf]
  %v156 = vld [vmem:[%s0 + $0x30] sm:$0xf]
  %v157 = vld [vmem:[%s0 + $0x34] sm:$0xf]
  %v158 = vld [vmem:[%s0 + $0x38] sm:$0xf]
  %v159 = vld [vmem:[%s0 + $0x3c] sm:$0xf]
  %v160 = vld [vmem:[%s0 + $0x40] sm:$0xf]
  %v161 = vld [vmem:[%s0 + $0x44] sm:$0xf]
  %v162 = vld [vmem:[%s0 + $0x48] sm:$0xf]
  %v163 = vld [vmem:[%s0 + $0x4c] sm:$0xf]
  %v164 = vld [vmem:[%s0 + $0x50] sm:$0xf]
  %v165 = vld [vmem:[%s0 + $0x54] sm:$0xf]
  %v166 = vld [vmem:[%s0 + $0x58] sm:$0xf]
  %v167 = vld [vmem:[%s0 + $0x5c] sm:$0xf]
  %v168 = vld [vmem:[%s0 + $0x60] sm:$0xf]
  %v169 = vld [vmem:[%s0 + $0x64] sm:$0xf]
  %v170 = vld [vmem:[%s0 + $0x68] sm:$0xf]
  %v171 = vld [vmem:[%s0 + $0x6c] sm:$0xf]
  %v172 = vld [vmem:[%s0 + $0x70] sm:$0xf]
  %v173 = vld [vmem:[%s0 + $0x74] sm:$0xf]
  %v174 = vld [vmem:[%s0 + $0x78] sm:$0xf]
  %v175 = vld [vmem:[%s0 + $0x7c] sm:$0xf]
  %v176 = vld [vmem:[%s0 + $0x80] sm:$0xf]
  %v177 = vld [vmem:[%s0 + $0x84] sm:$0xf]
  %v178 = vld [vmem:[%s0 + $0x88] sm:$0xf]
  %v179 = vld [vmem:[%s0 + $0x8c] sm:$0xf]
  %v180 = vld [vmem:[%s0 + $0x90] sm:$0xf]
  %v181 = vld [vmem:[%s0 + $0x94] sm:$0xf]
  %v182 = vld [vmem:[%s0 + $0x98] sm:$0xf]
  %v183 = vld [vmem:[%s0 + $0x9c] sm:$0xf]
  %v184 = vld [vmem:[%s0 + $0xa0] sm:$0xf]
  %v185 = vld [vmem:[%s0 + $0xa4] sm:$0xf]
  %v186 = vld [vmem:[%s0 + $0xa8] sm:$0xf]
  %v187 = vld [vmem:[%s0 + $0xac] sm:$0xf]
  %v188 = vld [vmem:[%s0 + $0xb0] sm:$0xf]
  %v189 = vld [vmem:[%s0 + $0xb4] sm:$0xf]
  %v190 = vld [vmem:[%s0 + $0xb8] sm:$0xf]
  %v191 = vld [vmem:[%s0 + $0xbc] sm:$0xf]
  %v192 = vld [vmem:[%s0 + $0xc0] sm:$0xf]
  %v193 = vld [vmem:[%s0 + $0xc4] sm:$0xf]
  %v194 = vld [vmem:[%s0 + $0xc8] sm:$0xf]
  %v195 = vld [vmem:[%s0 + $0xcc] sm:$0xf]
  %v196 = vld [vmem:[%s0 + $0xd0] sm:$0xf]
  %v197 = vld [vmem:[%s0 + $0xd4] sm:$0xf]
  %v198 = vld [vmem:[%s0 + $0xd8] sm:$0xf]
  %v199 = vld [vmem:[%s0 + $0xdc] sm:$0xf]
  %v200 = vld [vmem:[%s0 + $0xe0] sm:$0xf]
  %v201 = vld [vmem:[%s0 + $0xe4] sm:$0xf]
  %v202 = vld [vmem:[%s0 + $0xe8] sm:$0xf]
  %v203 = vld [vmem:[%s0 + $0xec] sm:$0xf]
  %v204 = vld [vmem:[%s0 + $0xf0] sm:$0xf]
  %v205 = vld [vmem:[%s0 + $0xf4] sm:$0xf]
  %v206 = vld [vmem:[%s0 + $0xf8] sm:$0xf]
  %v207 = vld [vmem:[%s0 + $0xfc] sm:$0xf]
  %v208 = vld [vmem:[%s1] sm:$0xf]
  %v209 = vld [vmem:[%s1 + $0x4] sm:$0xf]
  %v210 = vld [vmem:[%s1 + $0x8] sm:$0xf]
  %v211 = vld [vmem:[%s1 + $0xc] sm:$0xf]
  %v212 = vld [vmem:[%s1 + $0x10] sm:$0xf]
  %v213 = vld [vmem:[%s1 + $0x14] sm:$0xf]
  %v214 = vld [vmem:[%s1 + $0x18] sm:$0xf]
  %v215 = vld [vmem:[%s1 + $0x1c] sm:$0xf]
  %v216 = vld [vmem:[%s1 + $0x20] sm:$0xf]
  %v217 = vld [vmem:[%s1 + $0x24] sm:$0xf]
  %v218 = vld [vmem:[%s1 + $0x28] sm:$0xf]
  %v219 = vld [vmem:[%s1 + $0x2c] sm:$0xf]
  %v220 = vld [vmem:[%s1 + $0x30] sm:$0xf]
  %v221 = vld [vmem:[%s1 + $0x34] sm:$0xf]
  %v222 = vld [vmem:[%s1 + $0x38] sm:$0xf]
  %v223 = vld [vmem:[%s1 + $0x3c] sm:$0xf]
  %v288 = vunpack.c.l.b16 %v144
  %v289 = vunpack.c.l.b16 %v145
  %v290 = vunpack.c.l.b16 %v146
  %v291 = vunpack.c.l.b16 %v147
  %v292 = vunpack.c.l.b16 %v148
  %v293 = vunpack.c.l.b16 %v149
  %v294 = vunpack.c.l.b16 %v150
  %v295 = vunpack.c.l.b16 %v151
  %v296 = vunpack.c.l.b16 %v152
  %v297 = vunpack.c.l.b16 %v153
  %v298 = vunpack.c.l.b16 %v154
  %v299 = vunpack.c.l.b16 %v155
  %v300 = vunpack.c.l.b16 %v156
  %v301 = vunpack.c.l.b16 %v157
  %v302 = vunpack.c.l.b16 %v158
  %v303 = vunpack.c.l.b16 %v159
  %v304 = vunpack.c.l.b16 %v160
  %v305 = vunpack.c.l.b16 %v161
  %v306 = vunpack.c.l.b16 %v162
  %v307 = vunpack.c.l.b16 %v163
  %v308 = vunpack.c.l.b16 %v164
  %v309 = vunpack.c.l.b16 %v165
  %v310 = vunpack.c.l.b16 %v166
  %v311 = vunpack.c.l.b16 %v167
  %v312 = vunpack.c.l.b16 %v168
  %v313 = vunpack.c.l.b16 %v169
  %v314 = vunpack.c.l.b16 %v170
  %v315 = vunpack.c.l.b16 %v171
  %v316 = vunpack.c.l.b16 %v172
  %v317 = vunpack.c.l.b16 %v173
  %v318 = vunpack.c.l.b16 %v174
  %v319 = vunpack.c.l.b16 %v175
  %v320 = vunpack.c.l.b16 %v176
  %v321 = vunpack.c.l.b16 %v177
  %v322 = vunpack.c.l.b16 %v178
  %v323 = vunpack.c.l.b16 %v179
  %v324 = vunpack.c.l.b16 %v180
  %v325 = vunpack.c.l.b16 %v181
  %v326 = vunpack.c.l.b16 %v182
  %v327 = vunpack.c.l.b16 %v183
  %v328 = vunpack.c.l.b16 %v184
  %v329 = vunpack.c.l.b16 %v185
  %v330 = vunpack.c.l.b16 %v186
  %v331 = vunpack.c.l.b16 %v187
  %v332 = vunpack.c.l.b16 %v188
  %v333 = vunpack.c.l.b16 %v189
  %v334 = vunpack.c.l.b16 %v190
  %v335 = vunpack.c.l.b16 %v191
  %v336 = vunpack.c.l.b16 %v192
  %v337 = vunpack.c.l.b16 %v193
  %v338 = vunpack.c.l.b16 %v194
  %v339 = vunpack.c.l.b16 %v195
  %v340 = vunpack.c.l.b16 %v196
  %v341 = vunpack.c.l.b16 %v197
  %v342 = vunpack.c.l.b16 %v198
  %v343 = vunpack.c.l.b16 %v199
  %v344 = vunpack.c.l.b16 %v200
  %v345 = vunpack.c.l.b16 %v201
  %v346 = vunpack.c.l.b16 %v202
  %v347 = vunpack.c.l.b16 %v203
  %v348 = vunpack.c.l.b16 %v204
  %v349 = vunpack.c.l.b16 %v205
  %v350 = vunpack.c.l.b16 %v206
  %v351 = vunpack.c.l.b16 %v207
  %v352 = vpack.c.b16 %v289, %v288
  %v353 = vpack.c.b16 %v291, %v290
  %v354 = vpack.c.b16 %v293, %v292
  %v355 = vpack.c.b16 %v295, %v294
  %v356 = vpack.c.b16 %v297, %v296
  %v357 = vpack.c.b16 %v299, %v298
  %v358 = vpack.c.b16 %v301, %v300
  %v359 = vpack.c.b16 %v303, %v302
  %v360 = vpack.c.b16 %v305, %v304
  %v361 = vpack.c.b16 %v307, %v306
  %v362 = vpack.c.b16 %v309, %v308
  %v363 = vpack.c.b16 %v311, %v310
  %v364 = vpack.c.b16 %v313, %v312
  %v365 = vpack.c.b16 %v315, %v314
  %v366 = vpack.c.b16 %v317, %v316
  %v367 = vpack.c.b16 %v319, %v318
  %v368 = vpack.c.b16 %v321, %v320
  %v369 = vpack.c.b16 %v323, %v322
  %v370 = vpack.c.b16 %v325, %v324
  %v371 = vpack.c.b16 %v327, %v326
  %v372 = vpack.c.b16 %v329, %v328
  %v373 = vpack.c.b16 %v331, %v330
  %v374 = vpack.c.b16 %v333, %v332
  %v375 = vpack.c.b16 %v335, %v334
  %v376 = vpack.c.b16 %v337, %v336
  %v377 = vpack.c.b16 %v339, %v338
  %v378 = vpack.c.b16 %v341, %v340
  %v379 = vpack.c.b16 %v343, %v342
  %v380 = vpack.c.b16 %v345, %v344
  %v381 = vpack.c.b16 %v347, %v346
  %v382 = vpack.c.b16 %v349, %v348
  %v383 = vpack.c.b16 %v351, %v350
  %v432 = vunpack.c.l.b16 %v208
  %v433 = vunpack.c.l.b16 %v209
  %v434 = vunpack.c.l.b16 %v210
  %v435 = vunpack.c.l.b16 %v211
  %v436 = vunpack.c.l.b16 %v212
  %v437 = vunpack.c.l.b16 %v213
  %v438 = vunpack.c.l.b16 %v214
  %v439 = vunpack.c.l.b16 %v215
  %v440 = vunpack.c.l.b16 %v216
  %v441 = vunpack.c.l.b16 %v217
  %v442 = vunpack.c.l.b16 %v218
  %v443 = vunpack.c.l.b16 %v219
  %v444 = vunpack.c.l.b16 %v220
  %v445 = vunpack.c.l.b16 %v221
  %v446 = vunpack.c.l.b16 %v222
  %v447 = vunpack.c.l.b16 %v223
  %v448 = vpack.c.b16 %v433, %v432
  %v449 = vpack.c.b16 %v435, %v434
  %v450 = vpack.c.b16 %v437, %v436
  %v451 = vpack.c.b16 %v439, %v438
  %v452 = vpack.c.b16 %v441, %v440
  %v453 = vpack.c.b16 %v443, %v442
  %v454 = vpack.c.b16 %v445, %v444
  %v455 = vpack.c.b16 %v447, %v446
  %464 = vmatprep.subr.bf16.mxu0 0
  %465 = vmatpush1.bf16.msra.mxu0 %v448
  %466 = vmatprep.subr.bf16.mxu0 0
  %467 = vmatpush1.bf16.msra.mxu0 %v449
  %468 = vmatprep.subr.bf16.mxu0 0
  %469 = vmatpush1.bf16.msra.mxu0 %v450
  %470 = vmatprep.subr.bf16.mxu0 0
  %471 = vmatpush1.bf16.msra.mxu0 %v451
  %472 = vmatprep.subr.bf16.mxu0 0
  %473 = vmatpush1.bf16.msra.mxu0 %v452
  %474 = vmatprep.subr.bf16.mxu0 0
  %475 = vmatpush1.bf16.msra.mxu0 %v453
  %476 = vmatprep.subr.bf16.mxu0 0
  %477 = vmatpush1.bf16.msra.mxu0 %v454
  %478 = vmatprep.subr.bf16.mxu0 0
  %479 = vmatpush1.bf16.msra.mxu0 %v455
  %480 = vmatprep.subr.bf16.mxu0 0
  %481 = vmatpush1.bf16.msra.mxu0 0
  %482 = vmatprep.subr.bf16.mxu0 0
  %483 = vmatpush1.bf16.msra.mxu0 0
  %484 = vmatprep.subr.bf16.mxu0 0
  %485 = vmatpush1.bf16.msra.mxu0 0
  %486 = vmatprep.subr.bf16.mxu0 0
  %487 = vmatpush1.bf16.msra.mxu0 0
  %488 = vmatprep.subr.bf16.mxu0 0
  %489 = vmatpush1.bf16.msra.mxu0 0
  %490 = vmatprep.subr.bf16.mxu0 0
  %491 = vmatpush1.bf16.msra.mxu0 0
  %492 = vmatprep.subr.bf16.mxu0 0
  %493 = vmatpush1.bf16.msra.mxu0 0
  %494 = vmatprep.subr.bf16.mxu0 0
  %495 = vmatpush1.bf16.msra.mxu0 0
  %496 = vmatprep.mubr.bf16.mxu0 0
  %497 = vmatmul.mubr.bf16.gmra.mrb[0].mxu0 %v352
  %v498 = vpop.f32.mrb[0].mxu0
  %v499 = vadd.f32 0.0, %v498
  %v500 = vpop.f32.mrb[0].mxu0
  %v501 = vpop.f32.mrb[0].mxu0
  %v502 = vadd.f32 0.0, %v501
  %v503 = vpop.f32.mrb[0].mxu0
  %504 = vmatprep.mubr.bf16.mxu0 0
  %505 = vmatmul.mubr.bf16.gmra.mrb[0].mxu0 %v353
  %v506 = vpop.f32.mrb[0].mxu0
  %v507 = vadd.f32 0.0, %v506
  %v508 = vpop.f32.mrb[0].mxu0
  %v509 = vpop.f32.mrb[0].mxu0
  %v510 = vadd.f32 0.0, %v509
  %v511 = vpop.f32.mrb[0].mxu0
  %512 = vmatprep.mubr.bf16.mxu0 0
  %513 = vmatmul.mubr.bf16.gmra.mrb[0].mxu0 %v354
  %v514 = vpop.f32.mrb[0].mxu0
  %v515 = vadd.f32 0.0, %v514
  %v516 = vpop.f32.mrb[0].mxu0
  %v517 = vpop.f32.mrb[0].mxu0
  %v518 = vadd.f32 0.0, %v517
  %v519 = vpop.f32.mrb[0].mxu0
  %520 = vmatprep.mubr.bf16.mxu0 0
  %521 = vmatmul.mubr.bf16.gmra.mrb[0].mxu0 %v355
  %v522 = vpop.f32.mrb[0].mxu0
  %v523 = vadd.f32 0.0, %v522
  %v524 = vpop.f32.mrb[0].mxu0
  %v525 = vpop.f32.mrb[0].mxu0
  %v526 = vadd.f32 0.0, %v525
  %v527 = vpop.f32.mrb[0].mxu0
  %528 = vmatprep.mubr.bf16.mxu0 0
  %529 = vmatmul.mubr.bf16.gmra.mrb[0].mxu0 %v356
  %v530 = vpop.f32.mrb[0].mxu0
  %v531 = vadd.f32 0.0, %v530
  %v532 = vpop.f32.mrb[0].mxu0
  %v533 = vpop.f32.mrb[0].mxu0
  %v534 = vadd.f32 0.0, %v533
  %v535 = vpop.f32.mrb[0].mxu0
  %536 = vmatprep.mubr.bf16.mxu0 0
  %537 = vmatmul.mubr.bf16.gmra.mrb[0].mxu0 %v357
  %v538 = vpop.f32.mrb[0].mxu0
  %v539 = vadd.f32 0.0, %v538
  %v540 = vpop.f32.mrb[0].mxu0
  %v541 = vpop.f32.mrb[0].mxu0
  %v542 = vadd.f32 0.0, %v541
  %v543 = vpop.f32.mrb[0].mxu0
  %544 = vmatprep.mubr.bf16.mxu0 0
  %545 = vmatmul.mubr.bf16.gmra.mrb[0].mxu0 %v358
  %v546 = vpop.f32.mrb[0].mxu0
  %v547 = vadd.f32 0.0, %v546
  %v548 = vpop.f32.mrb[0].mxu0
  %v549 = vpop.f32.mrb[0].mxu0
  %v550 = vadd.f32 0.0, %v549
  %v551 = vpop.f32.mrb[0].mxu0
  %552 = vmatprep.mubr.bf16.mxu0 0
  %553 = vmatmul.mubr.bf16.gmra.mrb[0].mxu0 %v359
  %v554 = vpop.f32.mrb[0].mxu0
  %v555 = vadd.f32 0.0, %v554
  %v556 = vpop.f32.mrb[0].mxu0
  %v557 = vpop.f32.mrb[0].mxu0
  %v558 = vadd.f32 0.0, %v557
  %v559 = vpop.f32.mrb[0].mxu0
  %560 = vmatprep.mubr.bf16.mxu0 0
  %561 = vmatmul.mubr.bf16.gmra.mrb[0].mxu0 %v360
  %v562 = vpop.f32.mrb[0].mxu0
  %v563 = vadd.f32 0.0, %v562
  %v564 = vpop.f32.mrb[0].mxu0
  %v565 = vpop.f32.mrb[0].mxu0
  %v566 = vadd.f32 0.0, %v565
  %v567 = vpop.f32.mrb[0].mxu0
  %568 = vmatprep.mubr.bf16.mxu0 0
  %569 = vmatmul.mubr.bf16.gmra.mrb[0].mxu0 %v361
  %v570 = vpop.f32.mrb[0].mxu0
  %v571 = vadd.f32 0.0, %v570
  %v572 = vpop.f32.mrb[0].mxu0
  %v573 = vpop.f32.mrb[0].mxu0
  %v574 = vadd.f32 0.0, %v573
  %v575 = vpop.f32.mrb[0].mxu0
  %576 = vmatprep.mubr.bf16.mxu0 0
  %577 = vmatmul.mubr.bf16.gmra.mrb[0].mxu0 %v362
  %v578 = vpop.f32.mrb[0].mxu0
  %v579 = vadd.f32 0.0, %v578
  %v580 = vpop.f32.mrb[0].mxu0
  %v581 = vpop.f32.mrb[0].mxu0
  %v582 = vadd.f32 0.0, %v581
  %v583 = vpop.f32.mrb[0].mxu0
  %584 = vmatprep.mubr.bf16.mxu0 0
  %585 = vmatmul.mubr.bf16.gmra.mrb[0].mxu0 %v363
  %v586 = vpop.f32.mrb[0].mxu0
  %v587 = vadd.f32 0.0, %v586
  %v588 = vpop.f32.mrb[0].mxu0
  %v589 = vpop.f32.mrb[0].mxu0
  %v590 = vadd.f32 0.0, %v589
  %v591 = vpop.f32.mrb[0].mxu0
  %592 = vmatprep.mubr.bf16.mxu0 0
  %593 = vmatmul.mubr.bf16.gmra.mrb[0].mxu0 %v364
  %v594 = vpop.f32.mrb[0].mxu0
  %v595 = vadd.f32 0.0, %v594
  %v596 = vpop.f32.mrb[0].mxu0
  %v597 = vpop.f32.mrb[0].mxu0
  %v598 = vadd.f32 0.0, %v597
  %v599 = vpop.f32.mrb[0].mxu0
  %600 = vmatprep.mubr.bf16.mxu0 0
  %601 = vmatmul.mubr.bf16.gmra.mrb[0].mxu0 %v365
  %v602 = vpop.f32.mrb[0].mxu0
  %v603 = vadd.f32 0.0, %v602
  %v604 = vpop.f32.mrb[0].mxu0
  %v605 = vpop.f32.mrb[0].mxu0
  %v606 = vadd.f32 0.0, %v605
  %v607 = vpop.f32.mrb[0].mxu0
  %608 = vmatprep.mubr.bf16.mxu0 0
  %609 = vmatmul.mubr.bf16.gmra.mrb[0].mxu0 %v366
  %v610 = vpop.f32.mrb[0].mxu0
  %v611 = vadd.f32 0.0, %v610
  %v612 = vpop.f32.mrb[0].mxu0
  %v613 = vpop.f32.mrb[0].mxu0
  %v614 = vadd.f32 0.0, %v613
  %v615 = vpop.f32.mrb[0].mxu0
  %616 = vmatprep.mubr.bf16.mxu0 0
  %617 = vmatmul.mubr.bf16.gmra.mrb[0].mxu0 %v367
  %v618 = vpop.f32.mrb[0].mxu0
  %v619 = vadd.f32 0.0, %v618
  %v620 = vpop.f32.mrb[0].mxu0
  %v621 = vpop.f32.mrb[0].mxu0
  %v622 = vadd.f32 0.0, %v621
  %v623 = vpop.f32.mrb[0].mxu0
  %624 = vmatprep.mubr.bf16.mxu0 0
  %625 = vmatmul.mubr.bf16.gmra.mrb[0].mxu0 %v368
  %v626 = vpop.f32.mrb[0].mxu0
  %v627 = vadd.f32 0.0, %v626
  %v628 = vpop.f32.mrb[0].mxu0
  %v629 = vpop.f32.mrb[0].mxu0
  %v630 = vadd.f32 0.0, %v629
  %v631 = vpop.f32.mrb[0].mxu0
  %632 = vmatprep.mubr.bf16.mxu0 0
  %633 = vmatmul.mubr.bf16.gmra.mrb[0].mxu0 %v369
  %v634 = vpop.f32.mrb[0].mxu0
  %v635 = vadd.f32 0.0, %v634
  %v636 = vpop.f32.mrb[0].mxu0
  %v637 = vpop.f32.mrb[0].mxu0
  %v638 = vadd.f32 0.0, %v637
  %v639 = vpop.f32.mrb[0].mxu0
  %640 = vmatprep.mubr.bf16.mxu0 0
  %641 = vmatmul.mubr.bf16.gmra.mrb[0].mxu0 %v370
  %v642 = vpop.f32.mrb[0].mxu0
  %v643 = vadd.f32 0.0, %v642
  %v644 = vpop.f32.mrb[0].mxu0
  %v645 = vpop.f32.mrb[0].mxu0
  %v646 = vadd.f32 0.0, %v645
  %v647 = vpop.f32.mrb[0].mxu0
  %648 = vmatprep.mubr.bf16.mxu0 0
  %649 = vmatmul.mubr.bf16.gmra.mrb[0].mxu0 %v371
  %v650 = vpop.f32.mrb[0].mxu0
  %v651 = vadd.f32 0.0, %v650
  %v652 = vpop.f32.mrb[0].mxu0
  %v653 = vpop.f32.mrb[0].mxu0
  %v654 = vadd.f32 0.0, %v653
  %v655 = vpop.f32.mrb[0].mxu0
  %656 = vmatprep.mubr.bf16.mxu0 0
  %657 = vmatmul.mubr.bf16.gmra.mrb[0].mxu0 %v372
  %v658 = vpop.f32.mrb[0].mxu0
  %v659 = vadd.f32 0.0, %v658
  %v660 = vpop.f32.mrb[0].mxu0
  %v661 = vpop.f32.mrb[0].mxu0
  %v662 = vadd.f32 0.0, %v661
  %v663 = vpop.f32.mrb[0].mxu0
  %664 = vmatprep.mubr.bf16.mxu0 0
  %665 = vmatmul.mubr.bf16.gmra.mrb[0].mxu0 %v373
  %v666 = vpop.f32.mrb[0].mxu0
  %v667 = vadd.f32 0.0, %v666
  %v668 = vpop.f32.mrb[0].mxu0
  %v669 = vpop.f32.mrb[0].mxu0
  %v670 = vadd.f32 0.0, %v669
  %v671 = vpop.f32.mrb[0].mxu0
  %672 = vmatprep.mubr.bf16.mxu0 0
  %673 = vmatmul.mubr.bf16.gmra.mrb[0].mxu0 %v374
  %v674 = vpop.f32.mrb[0].mxu0
  %v675 = vadd.f32 0.0, %v674
  %v676 = vpop.f32.mrb[0].mxu0
  %v677 = vpop.f32.mrb[0].mxu0
  %v678 = vadd.f32 0.0, %v677
  %v679 = vpop.f32.mrb[0].mxu0
  %680 = vmatprep.mubr.bf16.mxu0 0
  %681 = vmatmul.mubr.bf16.gmra.mrb[0].mxu0 %v375
  %v682 = vpop.f32.mrb[0].mxu0
  %v683 = vadd.f32 0.0, %v682
  %v684 = vpop.f32.mrb[0].mxu0
  %v685 = vpop.f32.mrb[0].mxu0
  %v686 = vadd.f32 0.0, %v685
  %v687 = vpop.f32.mrb[0].mxu0
  %688 = vmatprep.mubr.bf16.mxu0 0
  %689 = vmatmul.mubr.bf16.gmra.mrb[0].mxu0 %v376
  %v690 = vpop.f32.mrb[0].mxu0
  %v691 = vadd.f32 0.0, %v690
  %v692 = vpop.f32.mrb[0].mxu0
  %v693 = vpop.f32.mrb[0].mxu0
  %v694 = vadd.f32 0.0, %v693
  %v695 = vpop.f32.mrb[0].mxu0
  %696 = vmatprep.mubr.bf16.mxu0 0
  %697 = vmatmul.mubr.bf16.gmra.mrb[0].mxu0 %v377
  %v698 = vpop.f32.mrb[0].mxu0
  %v699 = vadd.f32 0.0, %v698
  %v700 = vpop.f32.mrb[0].mxu0
  %v701 = vpop.f32.mrb[0].mxu0
  %v702 = vadd.f32 0.0, %v701
  %v703 = vpop.f32.mrb[0].mxu0
  %704 = vmatprep.mubr.bf16.mxu0 0
  %705 = vmatmul.mubr.bf16.gmra.mrb[0].mxu0 %v378
  %v706 = vpop.f32.mrb[0].mxu0
  %v707 = vadd.f32 0.0, %v706
  %v708 = vpop.f32.mrb[0].mxu0
  %v709 = vpop.f32.mrb[0].mxu0
  %v710 = vadd.f32 0.0, %v709
  %v711 = vpop.f32.mrb[0].mxu0
  %712 = vmatprep.mubr.bf16.mxu0 0
  %713 = vmatmul.mubr.bf16.gmra.mrb[0].mxu0 %v379
  %v714 = vpop.f32.mrb[0].mxu0
  %v715 = vadd.f32 0.0, %v714
  %v716 = vpop.f32.mrb[0].mxu0
  %v717 = vpop.f32.mrb[0].mxu0
  %v718 = vadd.f32 0.0, %v717
  %v719 = vpop.f32.mrb[0].mxu0
  %720 = vmatprep.mubr.bf16.mxu0 0
  %721 = vmatmul.mubr.bf16.gmra.mrb[0].mxu0 %v380
  %v722 = vpop.f32.mrb[0].mxu0
  %v723 = vadd.f32 0.0, %v722
  %v724 = vpop.f32.mrb[0].mxu0
  %v725 = vpop.f32.mrb[0].mxu0
  %v726 = vadd.f32 0.0, %v725
  %v727 = vpop.f32.mrb[0].mxu0
  %728 = vmatprep.mubr.bf16.mxu0 0
  %729 = vmatmul.mubr.bf16.gmra.mrb[0].mxu0 %v381
  %v730 = vpop.f32.mrb[0].mxu0
  %v731 = vadd.f32 0.0, %v730
  %v732 = vpop.f32.mrb[0].mxu0
  %v733 = vpop.f32.mrb[0].mxu0
  %v734 = vadd.f32 0.0, %v733
  %v735 = vpop.f32.mrb[0].mxu0
  %736 = vmatprep.mubr.bf16.mxu0 0
  %737 = vmatmul.mubr.bf16.gmra.mrb[0].mxu0 %v382
  %v738 = vpop.f32.mrb[0].mxu0
  %v739 = vadd.f32 0.0, %v738
  %v740 = vpop.f32.mrb[0].mxu0
  %v741 = vpop.f32.mrb[0].mxu0
  %v742 = vadd.f32 0.0, %v741
  %v743 = vpop.f32.mrb[0].mxu0
  %744 = vmatprep.mubr.bf16.mxu0 0
  %745 = vmatmul.mubr.bf16.gmra.mrb[0].mxu0 %v383
  %v746 = vpop.f32.mrb[0].mxu0
  %v747 = vadd.f32 0.0, %v746
  %v748 = vpop.f32.mrb[0].mxu0
  %v749 = vpop.f32.mrb[0].mxu0
  %v750 = vadd.f32 0.0, %v749
  %v751 = vpop.f32.mrb[0].mxu0
  %752 = vdwg.mxu0
  %v753 = vadd.f32 %v80, %v499
  %v754 = vadd.f32 %v81, %v502
  %v755 = vadd.f32 %v82, %v507
  %v756 = vadd.f32 %v83, %v510
  %v757 = vadd.f32 %v84, %v515
  %v758 = vadd.f32 %v85, %v518
  %v759 = vadd.f32 %v86, %v523
  %v760 = vadd.f32 %v87, %v526
  %v761 = vadd.f32 %v88, %v531
  %v762 = vadd.f32 %v89, %v534
  %v763 = vadd.f32 %v90, %v539
  %v764 = vadd.f32 %v91, %v542
  %v765 = vadd.f32 %v92, %v547
  %v766 = vadd.f32 %v93, %v550
  %v767 = vadd.f32 %v94, %v555
  %v768 = vadd.f32 %v95, %v558
  %v769 = vadd.f32 %v96, %v563
  %v770 = vadd.f32 %v97, %v566
  %v771 = vadd.f32 %v98, %v571
  %v772 = vadd.f32 %v99, %v574
  %v773 = vadd.f32 %v100, %v579
  %v774 = vadd.f32 %v101, %v582
  %v775 = vadd.f32 %v102, %v587
  %v776 = vadd.f32 %v103, %v590
  %v777 = vadd.f32 %v104, %v595
  %v778 = vadd.f32 %v105, %v598
  %v779 = vadd.f32 %v106, %v603
  %v780 = vadd.f32 %v107, %v606
  %v781 = vadd.f32 %v108, %v611
  %v782 = vadd.f32 %v109, %v614
  %v783 = vadd.f32 %v110, %v619
  %v784 = vadd.f32 %v111, %v622
  %v785 = vadd.f32 %v112, %v627
  %v786 = vadd.f32 %v113, %v630
  %v787 = vadd.f32 %v114, %v635
  %v788 = vadd.f32 %v115, %v638
  %v789 = vadd.f32 %v116, %v643
  %v790 = vadd.f32 %v117, %v646
  %v791 = vadd.f32 %v118, %v651
  %v792 = vadd.f32 %v119, %v654
  %v793 = vadd.f32 %v120, %v659
  %v794 = vadd.f32 %v121, %v662
  %v795 = vadd.f32 %v122, %v667
  %v796 = vadd.f32 %v123, %v670
  %v797 = vadd.f32 %v124, %v675
  %v798 = vadd.f32 %v125, %v678
  %v799 = vadd.f32 %v126, %v683
  %v800 = vadd.f32 %v127, %v686
  %v801 = vadd.f32 %v128, %v691
  %v802 = vadd.f32 %v129, %v694
  %v803 = vadd.f32 %v130, %v699
  %v804 = vadd.f32 %v131, %v702
  %v805 = vadd.f32 %v132, %v707
  %v806 = vadd.f32 %v133, %v710
  %v807 = vadd.f32 %v134, %v715
  %v808 = vadd.f32 %v135, %v718
  %v809 = vadd.f32 %v136, %v723
  %v810 = vadd.f32 %v137, %v726
  %v811 = vadd.f32 %v138, %v731
  %v812 = vadd.f32 %v139, %v734
  %v813 = vadd.f32 %v140, %v739
  %v814 = vadd.f32 %v141, %v742
  %v815 = vadd.f32 %v142, %v747
  %v816 = vadd.f32 %v143, %v750
  %817 = vst [vmem:[#allocation2] sm:$0xff] %v753
  %818 = vst [vmem:[#allocation2 + $0x8] sm:$0xff] %v754
  %819 = vst [vmem:[#allocation2 + $0x10] sm:$0xff] %v755
  %820 = vst [vmem:[#allocation2 + $0x18] sm:$0xff] %v756
  %821 = vst [vmem:[#allocation2 + $0x20] sm:$0xff] %v757
  %822 = vst [vmem:[#allocation2 + $0x28] sm:$0xff] %v758
  %823 = vst [vmem:[#allocation2 + $0x30] sm:$0xff] %v759
  %824 = vst [vmem:[#allocation2 + $0x38] sm:$0xff] %v760
  %825 = vst [vmem:[#allocation2 + $0x40] sm:$0xff] %v761
  %826 = vst [vmem:[#allocation2 + $0x48] sm:$0xff] %v762
  %827 = vst [vmem:[#allocation2 + $0x50] sm:$0xff] %v763
  %828 = vst [vmem:[#allocation2 + $0x58] sm:$0xff] %v764
  %829 = vst [vmem:[#allocation2 + $0x60] sm:$0xff] %v765
  %830 = vst [vmem:[#allocation2 + $0x68] sm:$0xff] %v766
  %831 = vst [vmem:[#allocation2 + $0x70] sm:$0xff] %v767
  %832 = vst [vmem:[#allocation2 + $0x78] sm:$0xff] %v768
  %833 = vst [vmem:[#allocation2 + $0x80] sm:$0xff] %v769
  %834 = vst [vmem:[#allocation2 + $0x88] sm:$0xff] %v770
  %835 = vst [vmem:[#allocation2 + $0x90] sm:$0xff] %v771
  %836 = vst [vmem:[#allocation2 + $0x98] sm:$0xff] %v772
  %837 = vst [vmem:[#allocation2 + $0xa0] sm:$0xff] %v773
  %838 = vst [vmem:[#allocation2 + $0xa8] sm:$0xff] %v774
  %839 = vst [vmem:[#allocation2 + $0xb0] sm:$0xff] %v775
  %840 = vst [vmem:[#allocation2 + $0xb8] sm:$0xff] %v776
  %841 = vst [vmem:[#allocation2 + $0xc0] sm:$0xff] %v777
  %842 = vst [vmem:[#allocation2 + $0xc8] sm:$0xff] %v778
  %843 = vst [vmem:[#allocation2 + $0xd0] sm:$0xff] %v779
  %844 = vst [vmem:[#allocation2 + $0xd8] sm:$0xff] %v780
  %845 = vst [vmem:[#allocation2 + $0xe0] sm:$0xff] %v781
  %846 = vst [vmem:[#allocation2 + $0xe8] sm:$0xff] %v782
  %847 = vst [vmem:[#allocation2 + $0xf0] sm:$0xff] %v783
  %848 = vst [vmem:[#allocation2 + $0xf8] sm:$0xff] %v784
  %849 = vst [vmem:[#allocation2 + $0x100] sm:$0xff] %v785
  %850 = vst [vmem:[#allocation2 + $0x108] sm:$0xff] %v786
  %851 = vst [vmem:[#allocation2 + $0x110] sm:$0xff] %v787
  %852 = vst [vmem:[#allocation2 + $0x118] sm:$0xff] %v788
  %853 = vst [vmem:[#allocation2 + $0x120] sm:$0xff] %v789
  %854 = vst [vmem:[#allocation2 + $0x128] sm:$0xff] %v790
  %855 = vst [vmem:[#allocation2 + $0x130] sm:$0xff] %v791
  %856 = vst [vmem:[#allocation2 + $0x138] sm:$0xff] %v792
  %857 = vst [vmem:[#allocation2 + $0x140] sm:$0xff] %v793
  %858 = vst [vmem:[#allocation2 + $0x148] sm:$0xff] %v794
  %859 = vst [vmem:[#allocation2 + $0x150] sm:$0xff] %v795
  %860 = vst [vmem:[#allocation2 + $0x158] sm:$0xff] %v796
  %861 = vst [vmem:[#allocation2 + $0x160] sm:$0xff] %v797
  %862 = vst [vmem:[#allocation2 + $0x168] sm:$0xff] %v798
  %863 = vst [vmem:[#allocation2 + $0x170] sm:$0xff] %v799
  %864 = vst [vmem:[#allocation2 + $0x178] sm:$0xff] %v800
  %865 = vst [vmem:[#allocation2 + $0x180] sm:$0xff] %v801
  %866 = vst [vmem:[#allocation2 + $0x188] sm:$0xff] %v802
  %867 = vst [vmem:[#allocation2 + $0x190] sm:$0xff] %v803
  %868 = vst [vmem:[#allocation2 + $0x198] sm:$0xff] %v804
  %869 = vst [vmem:[#allocation2 + $0x1a0] sm:$0xff] %v805
  %870 = vst [vmem:[#allocation2 + $0x1a8] sm:$0xff] %v806
  %871 = vst [vmem:[#allocation2 + $0x1b0] sm:$0xff] %v807
  %872 = vst [vmem:[#allocation2 + $0x1b8] sm:$0xff] %v808
  %873 = vst [vmem:[#allocation2 + $0x1c0] sm:$0xff] %v809
  %874 = vst [vmem:[#allocation2 + $0x1c8] sm:$0xff] %v810
  %875 = vst [vmem:[#allocation2 + $0x1d0] sm:$0xff] %v811
  %876 = vst [vmem:[#allocation2 + $0x1d8] sm:$0xff] %v812
  %877 = vst [vmem:[#allocation2 + $0x1e0] sm:$0xff] %v813
  %878 = vst [vmem:[#allocation2 + $0x1e8] sm:$0xff] %v814
  %879 = vst [vmem:[#allocation2 + $0x1f0] sm:$0xff] %v815
  %880 = vst [vmem:[#allocation2 + $0x1f8] sm:$0xff] %v816
  // Predicated region
  $region14: #{generator_forward.34} parent=0 // pred_check
    %p881 = pneg %p12
  $region15: #{generator_forward.34} parent=0 // pred_check_branch
    %883 = sbr.rel (%p881) target = $region17
  $region16: #{generator_forward.34} parent=0 // pred_region
    %v884 = vld [vmem:[#allocation2] sm:$0xff]
    %v885 = vld [vmem:[#allocation2 + $0x8] sm:$0xff]
    %v886 = vld [vmem:[#allocation2 + $0x10] sm:$0xff]
    %v887 = vld [vmem:[#allocation2 + $0x18] sm:$0xff]
    %v888 = vld [vmem:[#allocation2 + $0x20] sm:$0xff]
    %v889 = vld [vmem:[#allocation2 + $0x28] sm:$0xff]
    %v890 = vld [vmem:[#allocation2 + $0x30] sm:$0xff]
    %v891 = vld [vmem:[#allocation2 + $0x38] sm:$0xff]
    %v892 = vld [vmem:[#allocation2 + $0x40] sm:$0xff]
    %v893 = vld [vmem:[#allocation2 + $0x48] sm:$0xff]
    %v894 = vld [vmem:[#allocation2 + $0x50] sm:$0xff]
    %v895 = vld [vmem:[#allocation2 + $0x58] sm:$0xff]
    %v896 = vld [vmem:[#allocation2 + $0x60] sm:$0xff]
    %v897 = vld [vmem:[#allocation2 + $0x68] sm:$0xff]
    %v898 = vld [vmem:[#allocation2 + $0x70] sm:$0xff]
    %v899 = vld [vmem:[#allocation2 + $0x78] sm:$0xff]
    %v900 = vld [vmem:[#allocation2 + $0x80] sm:$0xff]
    %v901 = vld [vmem:[#allocation2 + $0x88] sm:$0xff]
    %v902 = vld [vmem:[#allocation2 + $0x90] sm:$0xff]
    %v903 = vld [vmem:[#allocation2 + $0x98] sm:$0xff]
    %v904 = vld [vmem:[#allocation2 + $0xa0] sm:$0xff]
    %v905 = vld [vmem:[#allocation2 + $0xa8] sm:$0xff]
    %v906 = vld [vmem:[#allocation2 + $0xb0] sm:$0xff]
    %v907 = vld [vmem:[#allocation2 + $0xb8] sm:$0xff]
    %v908 = vld [vmem:[#allocation2 + $0xc0] sm:$0xff]
    %v909 = vld [vmem:[#allocation2 + $0xc8] sm:$0xff]
    %v910 = vld [vmem:[#allocation2 + $0xd0] sm:$0xff]
    %v911 = vld [vmem:[#allocation2 + $0xd8] sm:$0xff]
    %v912 = vld [vmem:[#allocation2 + $0xe0] sm:$0xff]
    %v913 = vld [vmem:[#allocation2 + $0xe8] sm:$0xff]
    %v914 = vld [vmem:[#allocation2 + $0xf0] sm:$0xff]
    %v915 = vld [vmem:[#allocation2 + $0xf8] sm:$0xff]
    %v916 = vld [vmem:[#allocation2 + $0x100] sm:$0xff]
    %v917 = vld [vmem:[#allocation2 + $0x108] sm:$0xff]
    %v918 = vld [vmem:[#allocation2 + $0x110] sm:$0xff]
    %v919 = vld [vmem:[#allocation2 + $0x118] sm:$0xff]
    %v920 = vld [vmem:[#allocation2 + $0x120] sm:$0xff]
    %v921 = vld [vmem:[#allocation2 + $0x128] sm:$0xff]
    %v922 = vld [vmem:[#allocation2 + $0x130] sm:$0xff]
    %v923 = vld [vmem:[#allocation2 + $0x138] sm:$0xff]
    %v924 = vld [vmem:[#allocation2 + $0x140] sm:$0xff]
    %v925 = vld [vmem:[#allocation2 + $0x148] sm:$0xff]
    %v926 = vld [vmem:[#allocation2 + $0x150] sm:$0xff]
    %v927 = vld [vmem:[#allocation2 + $0x158] sm:$0xff]
    %v928 = vld [vmem:[#allocation2 + $0x160] sm:$0xff]
    %v929 = vld [vmem:[#allocation2 + $0x168] sm:$0xff]
    %v930 = vld [vmem:[#allocation2 + $0x170] sm:$0xff]
    %v931 = vld [vmem:[#allocation2 + $0x178] sm:$0xff]
    %v932 = vld [vmem:[#allocation2 + $0x180] sm:$0xff]
    %v933 = vld [vmem:[#allocation2 + $0x188] sm:$0xff]
    %v934 = vld [vmem:[#allocation2 + $0x190] sm:$0xff]
    %v935 = vld [vmem:[#allocation2 + $0x198] sm:$0xff]
    %v936 = vld [vmem:[#allocation2 + $0x1a0] sm:$0xff]
    %v937 = vld [vmem:[#allocation2 + $0x1a8] sm:$0xff]
    %v938 = vld [vmem:[#allocation2 + $0x1b0] sm:$0xff]
    %v939 = vld [vmem:[#allocation2 + $0x1b8] sm:$0xff]
    %v940 = vld [vmem:[#allocation2 + $0x1c0] sm:$0xff]
    %v941 = vld [vmem:[#allocation2 + $0x1c8] sm:$0xff]
    %v942 = vld [vmem:[#allocation2 + $0x1d0] sm:$0xff]
    %v943 = vld [vmem:[#allocation2 + $0x1d8] sm:$0xff]
    %v944 = vld [vmem:[#allocation2 + $0x1e0] sm:$0xff]
    %v945 = vld [vmem:[#allocation2 + $0x1e8] sm:$0xff]
    %v946 = vld [vmem:[#allocation2 + $0x1f0] sm:$0xff]
    %v947 = vld [vmem:[#allocation2 + $0x1f8] sm:$0xff]
    %948 = vst [vmem:[%s2] sm:$0xff] %v884
    %949 = vst [vmem:[%s2 + $0x8] sm:$0xff] %v885
    %950 = vst [vmem:[%s2 + $0x10] sm:$0xff] %v886
    %951 = vst [vmem:[%s2 + $0x18] sm:$0xff] %v887
    %952 = vst [vmem:[%s2 + $0x20] sm:$0xff] %v888
    %953 = vst [vmem:[%s2 + $0x28] sm:$0xff] %v889
    %954 = vst [vmem:[%s2 + $0x30] sm:$0xff] %v890
    %955 = vst [vmem:[%s2 + $0x38] sm:$0xff] %v891
    %956 = vst [vmem:[%s2 + $0x40] sm:$0xff] %v892
    %957 = vst [vmem:[%s2 + $0x48] sm:$0xff] %v893
    %958 = vst [vmem:[%s2 + $0x50] sm:$0xff] %v894
    %959 = vst [vmem:[%s2 + $0x58] sm:$0xff] %v895
    %960 = vst [vmem:[%s2 + $0x60] sm:$0xff] %v896
    %961 = vst [vmem:[%s2 + $0x68] sm:$0xff] %v897
    %962 = vst [vmem:[%s2 + $0x70] sm:$0xff] %v898
    %963 = vst [vmem:[%s2 + $0x78] sm:$0xff] %v899
    %964 = vst [vmem:[%s2 + $0x80] sm:$0xff] %v900
    %965 = vst [vmem:[%s2 + $0x88] sm:$0xff] %v901
    %966 = vst [vmem:[%s2 + $0x90] sm:$0xff] %v902
    %967 = vst [vmem:[%s2 + $0x98] sm:$0xff] %v903
    %968 = vst [vmem:[%s2 + $0xa0] sm:$0xff] %v904
    %969 = vst [vmem:[%s2 + $0xa8] sm:$0xff] %v905
    %970 = vst [vmem:[%s2 + $0xb0] sm:$0xff] %v906
    %971 = vst [vmem:[%s2 + $0xb8] sm:$0xff] %v907
    %972 = vst [vmem:[%s2 + $0xc0] sm:$0xff] %v908
    %973 = vst [vmem:[%s2 + $0xc8] sm:$0xff] %v909
    %974 = vst [vmem:[%s2 + $0xd0] sm:$0xff] %v910
    %975 = vst [vmem:[%s2 + $0xd8] sm:$0xff] %v911
    %976 = vst [vmem:[%s2 + $0xe0] sm:$0xff] %v912
    %977 = vst [vmem:[%s2 + $0xe8] sm:$0xff] %v913
    %978 = vst [vmem:[%s2 + $0xf0] sm:$0xff] %v914
    %979 = vst [vmem:[%s2 + $0xf8] sm:$0xff] %v915
    %980 = vst [vmem:[%s2 + $0x100] sm:$0xff] %v916
    %981 = vst [vmem:[%s2 + $0x108] sm:$0xff] %v917
    %982 = vst [vmem:[%s2 + $0x110] sm:$0xff] %v918
    %983 = vst [vmem:[%s2 + $0x118] sm:$0xff] %v919
    %984 = vst [vmem:[%s2 + $0x120] sm:$0xff] %v920
    %985 = vst [vmem:[%s2 + $0x128] sm:$0xff] %v921
    %986 = vst [vmem:[%s2 + $0x130] sm:$0xff] %v922
    %987 = vst [vmem:[%s2 + $0x138] sm:$0xff] %v923
    %988 = vst [vmem:[%s2 + $0x140] sm:$0xff] %v924
    %989 = vst [vmem:[%s2 + $0x148] sm:$0xff] %v925
    %990 = vst [vmem:[%s2 + $0x150] sm:$0xff] %v926
    %991 = vst [vmem:[%s2 + $0x158] sm:$0xff] %v927
    %992 = vst [vmem:[%s2 + $0x160] sm:$0xff] %v928
    %993 = vst [vmem:[%s2 + $0x168] sm:$0xff] %v929
    %994 = vst [vmem:[%s2 + $0x170] sm:$0xff] %v930
    %995 = vst [vmem:[%s2 + $0x178] sm:$0xff] %v931
    %996 = vst [vmem:[%s2 + $0x180] sm:$0xff] %v932
    %997 = vst [vmem:[%s2 + $0x188] sm:$0xff] %v933
    %998 = vst [vmem:[%s2 + $0x190] sm:$0xff] %v934
    %999 = vst [vmem:[%s2 + $0x198] sm:$0xff] %v935
    %1000 = vst [vmem:[%s2 + $0x1a0] sm:$0xff] %v936
    %1001 = vst [vmem:[%s2 + $0x1a8] sm:$0xff] %v937
    %1002 = vst [vmem:[%s2 + $0x1b0] sm:$0xff] %v938
    %1003 = vst [vmem:[%s2 + $0x1b8] sm:$0xff] %v939
    %1004 = vst [vmem:[%s2 + $0x1c0] sm:$0xff] %v940
    %1005 = vst [vmem:[%s2 + $0x1c8] sm:$0xff] %v941
    %1006 = vst [vmem:[%s2 + $0x1d0] sm:$0xff] %v942
    %1007 = vst [vmem:[%s2 + $0x1d8] sm:$0xff] %v943
    %1008 = vst [vmem:[%s2 + $0x1e0] sm:$0xff] %v944
    %1009 = vst [vmem:[%s2 + $0x1e8] sm:$0xff] %v945
    %1010 = vst [vmem:[%s2 + $0x1f0] sm:$0xff] %v946
    %1011 = vst [vmem:[%s2 + $0x1f8] sm:$0xff] %v947
  $region17: #{generator_forward.34} parent=0 // pred_fallthru
    _
  // Predicated region
  $region18: #{generator_forward.34} parent=0 // pred_check
    _
  $region19: #{generator_forward.34} parent=0 // pred_check_branch
    %1013 = sbr.rel (0) target = $region21
  $region20: #{generator_forward.34} parent=0 // pred_region
    _
  $region21: #{generator_forward.34} parent=0 // pred_fallthru
    _
  // Predicated region
  $region22: #{generator_forward.34} parent=0 // pred_check
    _
  $region23: #{generator_forward.34} parent=0 // pred_check_branch
    %1015 = sbr.rel (0) target = $region25
  $region24: #{generator_forward.34} parent=0 // pred_region
    _
  $region25: #{generator_forward.34} parent=0 // pred_fallthru
    _

// kernel: generator_forward.37
$region0: #{generator_forward.37}
  #allocation0 [shape = 'u32[]', space=smem, size = 0x4, offset = 0x4, fixed_abs, tag = 'smem constant byte address 0x4 - core index']
  #allocation1 [shape = 'u32[144,128]{1,0:T(1,128)}', space=vmem, size = 0x12000, scoped, tag = 'internal scratch']
  %s0 = inlined_call_operand.vmem [shape: f32[2048,8], index: 0, kind: input, shape index: {}]
  %s1 = inlined_call_operand.vmem [shape: f32[1,8], index: 1, kind: input, shape index: {}]
  %s2 = inlined_call_operand.vmem [shape: f32[1,8], index: 2, kind: input, shape index: {}]
  %s3 = inlined_call_operand.vmem [shape: bf16[2048,8], index: 3, kind: output, shape index: {}]
  %s4 = sld [smem:[#allocation0]]
  $region45: #{generator_forward.37} parent=0
    _
  %s6 = ssub.s32 1, %s4
  %s7 = scalar_select 0, %s6, %s4
  loop: start=0, step=1, limit=4
  $region2: #{generator_forward.37} parent=0 // loop_pre_header
    _
  $region3: #{generator_forward.37} parent=0 // loop_header
    %s9 = sphi 0, %s13
    %p10 = scmp.ge.s32.totalorder %s9, 4
    %s19 = sphi 0, %s21
    %s22 = sphi 0, %s19
    %s23 = sphi 0, %s22
    %s39 = sphi 0, %s23
    %s43 = sphi 0, %s43
    %s45 = sphi 0, %s43
    %s46 = sphi 0, %s45
    %s60 = sphi 0, %s46
    %s64 = sphi 0, %s64
    %s66 = sphi 0, %s64
    %s67 = sphi 0, %s66
    %s81 = sphi 0, %s67
    %s87 = sphi 0, %s89
    %s90 = sphi 0, %s87
    %s91 = sphi 0, %s90
    %s107 = sphi 0, %s91
  $region4: #{generator_forward.37} parent=0 // loop_header_branch
    %12 = sbr.rel (%p10) target = $region8
  $region5: #{generator_forward.37} parent=0 // loop_body
    %s14 = ssub.s32 %s9, 1
    %s15 = ssub.s32 %s9, 2
    %s16 = sadd.s32 %s9, 1
    %s17 = ssub.s32 %s9, %s16
    %p18 = scmp.eq.s32.totalorder %s17, 0
    %s20 = sadd.s32 %s19, 1
    %s21 = scalar_select %p18, %s19, %s20
    %p24 = pneg %p18
    %p25 = scmp.eq.s32.totalorder %s9, 1
    %p26 = por %p24, %p25
    %p27 = scmp.ne.s32.totalorder %s19, %s22
    %p28 = scmp.eq.s32.totalorder %s9, 0
    %p29 = por %p27, %p28
    %p30 = scmp.ne.s32.totalorder %s19, %s22
    %p31 = scmp.eq.s32.totalorder %s14, 1
    %p32 = por %p30, %p31
    %p33 = scmp.ne.s32.totalorder %s22, %s23
    %p34 = scmp.eq.s32.totalorder %s14, 0
    %p35 = por %p33, %p34
    %p36 = scmp.ne.s32.totalorder %s22, %s23
    %p37 = scmp.eq.s32.totalorder %s15, 1
    %p38 = por %p36, %p37
    %p40 = scmp.ne.s32.totalorder %s23, %s39
    %p41 = scmp.eq.s32.totalorder %s15, 0
    %p42 = por %p40, %p41
    %s44 = sadd.s32 %s43, 1
    %p47 = scmp.eq.s32.totalorder %s9, 1
    %p48 = scmp.ne.s32.totalorder %s43, %s45
    %p49 = scmp.eq.s32.totalorder %s9, 0
    %p50 = por %p48, %p49
    %p51 = scmp.ne.s32.totalorder %s43, %s45
    %p52 = scmp.eq.s32.totalorder %s14, 1
    %p53 = por %p51, %p52
    %p54 = scmp.ne.s32.totalorder %s45, %s46
    %p55 = scmp.eq.s32.totalorder %s14, 0
    %p56 = por %p54, %p55
    %p57 = scmp.ne.s32.totalorder %s45, %s46
    %p58 = scmp.eq.s32.totalorder %s15, 1
    %p59 = por %p57, %p58
    %p61 = scmp.ne.s32.totalorder %s46, %s60
    %p62 = scmp.eq.s32.totalorder %s15, 0
    %p63 = por %p61, %p62
    %s65 = sadd.s32 %s64, 1
    %p68 = scmp.eq.s32.totalorder %s9, 1
    %p69 = scmp.ne.s32.totalorder %s64, %s66
    %p70 = scmp.eq.s32.totalorder %s9, 0
    %p71 = por %p69, %p70
    %p72 = scmp.ne.s32.totalorder %s64, %s66
    %p73 = scmp.eq.s32.totalorder %s14, 1
    %p74 = por %p72, %p73
    %p75 = scmp.ne.s32.totalorder %s66, %s67
    %p76 = scmp.eq.s32.totalorder %s14, 0
    %p77 = por %p75, %p76
    %p78 = scmp.ne.s32.totalorder %s66, %s67
    %p79 = scmp.eq.s32.totalorder %s15, 1
    %p80 = por %p78, %p79
    %p82 = scmp.ne.s32.totalorder %s67, %s81
    %p83 = scmp.eq.s32.totalorder %s15, 0
    %p84 = por %p82, %p83
    %s85 = ssub.s32 %s9, %s16
    %p86 = scmp.eq.s32.totalorder %s85, 0
    %s88 = sadd.s32 %s87, 1
    %s89 = scalar_select %p86, %s87, %s88
    %p92 = pneg %p86
    %p93 = scmp.eq.s32.totalorder %s9, 1
    %p94 = por %p92, %p93
    %p95 = scmp.ne.s32.totalorder %s87, %s90
    %p96 = scmp.eq.s32.totalorder %s9, 0
    %p97 = por %p95, %p96
    %p98 = scmp.ne.s32.totalorder %s87, %s90
    %p99 = scmp.eq.s32.totalorder %s14, 1
    %p100 = por %p98, %p99
    %p101 = scmp.ne.s32.totalorder %s90, %s91
    %p102 = scmp.eq.s32.totalorder %s14, 0
    %p103 = por %p101, %p102
    %p104 = scmp.ne.s32.totalorder %s90, %s91
    %p105 = scmp.eq.s32.totalorder %s15, 1
    %p106 = por %p104, %p105
    %p108 = scmp.ne.s32.totalorder %s91, %s107
    %p109 = scmp.eq.s32.totalorder %s15, 0
    %p110 = por %p108, %p109
    %p111 = scmp.le.s32.totalorder 1, %s9
    %p112 = scmp.lt.s32.totalorder %s9, 3
    %p113 = pnand %p111, %p112
    %p114 = pneg %p113
    // Predicated region
    $region9: #{generator_forward.37} parent=5 // pred_check
      _
    $region10: #{generator_forward.37} parent=5 // pred_check_branch
      %116 = sbr.rel (%p113) target = $region12
    $region11: #{generator_forward.37} parent=5 // pred_region
      %s117 = ssub.s32 %s9, 1
      // Predicated region
      $region13: #{generator_forward.37} parent=11 // pred_check
        %p118 = pneg %p56
      $region14: #{generator_forward.37} parent=11 // pred_check_branch
        %120 = sbr.rel (%p118) target = $region16
      $region15: #{generator_forward.37} parent=11 // pred_region
        _
      $region16: #{generator_forward.37} parent=11 // pred_fallthru
        _
      // Predicated region
      $region17: #{generator_forward.37} parent=11 // pred_check
        %p121 = pneg %p77
      $region18: #{generator_forward.37} parent=11 // pred_check_branch
        %123 = sbr.rel (%p121) target = $region20
      $region19: #{generator_forward.37} parent=11 // pred_region
        _
      $region20: #{generator_forward.37} parent=11 // pred_fallthru
        _
    $region12: #{generator_forward.37} parent=5 // pred_fallthru
      _
    %p124 = scmp.lt.s32.totalorder %s9, 2
    // Predicated region
    $region21: #{generator_forward.37} parent=5 // pred_check
      %p125 = pneg %p124
    $region22: #{generator_forward.37} parent=5 // pred_check_branch
      %127 = sbr.rel (%p125) target = $region24
    $region23: #{generator_forward.37} parent=5 // pred_region
      // Predicated region
      $region25: #{generator_forward.37} parent=23 // pred_check
        %p128 = pneg %p29
      $region26: #{generator_forward.37} parent=23 // pred_check_branch
        %130 = sbr.rel (%p128) target = $region28
      $region27: #{generator_forward.37} parent=23 // pred_region
        %s131 = smul.u32 128, %s9
        %p132 = scmp.lt.s32.totalorder %s131, 255
        %s133 = scalar_select %p132, %s131, 255
        %s134 = smul.addr %s133, 8
        %s135 = scalar_lea.vmem %s0, %s134
        %s136 = smul.u32 128, %s9
      $region28: #{generator_forward.37} parent=23 // pred_fallthru
        _
    $region24: #{generator_forward.37} parent=5 // pred_fallthru
      _
    %p137 = scmp.le.s32.totalorder 1, %s9
    %p138 = scmp.lt.s32.totalorder %s9, 3
    %p139 = pnand %p137, %p138
    %p140 = pneg %p139
    // Predicated region
    $region29: #{generator_forward.37} parent=5 // pred_check
      _
    $region30: #{generator_forward.37} parent=5 // pred_check_branch
      %142 = sbr.rel (%p139) target = $region32
    $region31: #{generator_forward.37} parent=5 // pred_region
      %s143 = ssub.s32 %s9, 1
      %s144 = smul.u32 128, %s14
      %p145 = scmp.lt.s32.totalorder %s144, 255
      %s146 = scalar_select %p145, %s144, 255
      %s147 = smul.addr %s146, 8
      %s148 = scalar_lea.vmem %s0, %s147
      %p149 = pneg %p35
      %p150 = pneg %p32
      %p151 = pneg %p56
      %p152 = pneg %p53
      %p153 = pneg %p77
      %p154 = pneg %p74
      %p155 = pneg %p103
      %p156 = pneg %p100
      %s157 = smul.u32 128, %s14
      %p158 = scmp.lt.s32.totalorder %s157, 255
      %s159 = scalar_select %p158, %s157, 255
      %s160 = smul.addr %s159, 4
      %s161 = scalar_lea.vmem %s3, %s160
      %s162 = smul.u32 128, %s14
      %p163 = scmp.lt.s32.totalorder %s162, 255
      %s164 = scalar_select %p163, %s162, 255
      %s165 = smul.addr %s164, 8
      %s166 = scalar_lea.vmem %s0, %s165
      %s167 = smul.u32 128, %s14
      %s168 = smul.u32 128, %s14
      %p169 = scmp.lt.s32.totalorder %s168, 255
      %s170 = scalar_select %p169, %s168, 255
      %s171 = smul.addr %s170, 4
      %s172 = scalar_lea.vmem %s3, %s171
      %s173 = smul.u32 128, %s14
      %v174 = vld [vmem:[%s166] sm:$0xff]
      %v175 = vld [vmem:[%s166 + $0x8] sm:$0xff]
      %v176 = vld [vmem:[%s166 + $0x10] sm:$0xff]
      %v177 = vld [vmem:[%s166 + $0x18] sm:$0xff]
      %v178 = vld [vmem:[%s166 + $0x20] sm:$0xff]
      %v179 = vld [vmem:[%s166 + $0x28] sm:$0xff]
      %v180 = vld [vmem:[%s166 + $0x30] sm:$0xff]
      %v181 = vld [vmem:[%s166 + $0x38] sm:$0xff]
      %v182 = vld [vmem:[%s166 + $0x40] sm:$0xff]
      %v183 = vld [vmem:[%s166 + $0x48] sm:$0xff]
      %v184 = vld [vmem:[%s166 + $0x50] sm:$0xff]
      %v185 = vld [vmem:[%s166 + $0x58] sm:$0xff]
      %v186 = vld [vmem:[%s166 + $0x60] sm:$0xff]
      %v187 = vld [vmem:[%s166 + $0x68] sm:$0xff]
      %v188 = vld [vmem:[%s166 + $0x70] sm:$0xff]
      %v189 = vld [vmem:[%s166 + $0x78] sm:$0xff]
      %v190 = vld [vmem:[%s166 + $0x80] sm:$0xff]
      %v191 = vld [vmem:[%s166 + $0x88] sm:$0xff]
      %v192 = vld [vmem:[%s166 + $0x90] sm:$0xff]
      %v193 = vld [vmem:[%s166 + $0x98] sm:$0xff]
      %v194 = vld [vmem:[%s166 + $0xa0] sm:$0xff]
      %v195 = vld [vmem:[%s166 + $0xa8] sm:$0xff]
      %v196 = vld [vmem:[%s166 + $0xb0] sm:$0xff]
      %v197 = vld [vmem:[%s166 + $0xb8] sm:$0xff]
      %v198 = vld [vmem:[%s166 + $0xc0] sm:$0xff]
      %v199 = vld [vmem:[%s166 + $0xc8] sm:$0xff]
      %v200 = vld [vmem:[%s166 + $0xd0] sm:$0xff]
      %v201 = vld [vmem:[%s166 + $0xd8] sm:$0xff]
      %v202 = vld [vmem:[%s166 + $0xe0] sm:$0xff]
      %v203 = vld [vmem:[%s166 + $0xe8] sm:$0xff]
      %v204 = vld [vmem:[%s166 + $0xf0] sm:$0xff]
      %v205 = vld [vmem:[%s166 + $0xf8] sm:$0xff]
      %v206 = vld [vmem:[%s166 + $0x100] sm:$0xff]
      %v207 = vld [vmem:[%s166 + $0x108] sm:$0xff]
      %v208 = vld [vmem:[%s166 + $0x110] sm:$0xff]
      %v209 = vld [vmem:[%s166 + $0x118] sm:$0xff]
      %v210 = vld [vmem:[%s166 + $0x120] sm:$0xff]
      %v211 = vld [vmem:[%s166 + $0x128] sm:$0xff]
      %v212 = vld [vmem:[%s166 + $0x130] sm:$0xff]
      %v213 = vld [vmem:[%s166 + $0x138] sm:$0xff]
      %v214 = vld [vmem:[%s166 + $0x140] sm:$0xff]
      %v215 = vld [vmem:[%s166 + $0x148] sm:$0xff]
      %v216 = vld [vmem:[%s166 + $0x150] sm:$0xff]
      %v217 = vld [vmem:[%s166 + $0x158] sm:$0xff]
      %v218 = vld [vmem:[%s166 + $0x160] sm:$0xff]
      %v219 = vld [vmem:[%s166 + $0x168] sm:$0xff]
      %v220 = vld [vmem:[%s166 + $0x170] sm:$0xff]
      %v221 = vld [vmem:[%s166 + $0x178] sm:$0xff]
      %v222 = vld [vmem:[%s166 + $0x180] sm:$0xff]
      %v223 = vld [vmem:[%s166 + $0x188] sm:$0xff]
      %v224 = vld [vmem:[%s166 + $0x190] sm:$0xff]
      %v225 = vld [vmem:[%s166 + $0x198] sm:$0xff]
      %v226 = vld [vmem:[%s166 + $0x1a0] sm:$0xff]
      %v227 = vld [vmem:[%s166 + $0x1a8] sm:$0xff]
      %v228 = vld [vmem:[%s166 + $0x1b0] sm:$0xff]
      %v229 = vld [vmem:[%s166 + $0x1b8] sm:$0xff]
      %v230 = vld [vmem:[%s166 + $0x1c0] sm:$0xff]
      %v231 = vld [vmem:[%s166 + $0x1c8] sm:$0xff]
      %v232 = vld [vmem:[%s166 + $0x1d0] sm:$0xff]
      %v233 = vld [vmem:[%s166 + $0x1d8] sm:$0xff]
      %v234 = vld [vmem:[%s166 + $0x1e0] sm:$0xff]
      %v235 = vld [vmem:[%s166 + $0x1e8] sm:$0xff]
      %v236 = vld [vmem:[%s166 + $0x1f0] sm:$0xff]
      %v237 = vld [vmem:[%s166 + $0x1f8] sm:$0xff]
      %v238 = vld [vmem:[%s166 + $0x200] sm:$0xff]
      %v239 = vld [vmem:[%s166 + $0x208] sm:$0xff]
      %v240 = vld [vmem:[%s166 + $0x210] sm:$0xff]
      %v241 = vld [vmem:[%s166 + $0x218] sm:$0xff]
      %v242 = vld [vmem:[%s166 + $0x220] sm:$0xff]
      %v243 = vld [vmem:[%s166 + $0x228] sm:$0xff]
      %v244 = vld [vmem:[%s166 + $0x230] sm:$0xff]
      %v245 = vld [vmem:[%s166 + $0x238] sm:$0xff]
      %v246 = vld [vmem:[%s166 + $0x240] sm:$0xff]
      %v247 = vld [vmem:[%s166 + $0x248] sm:$0xff]
      %v248 = vld [vmem:[%s166 + $0x250] sm:$0xff]
      %v249 = vld [vmem:[%s166 + $0x258] sm:$0xff]
      %v250 = vld [vmem:[%s166 + $0x260] sm:$0xff]
      %v251 = vld [vmem:[%s166 + $0x268] sm:$0xff]
      %v252 = vld [vmem:[%s166 + $0x270] sm:$0xff]
      %v253 = vld [vmem:[%s166 + $0x278] sm:$0xff]
      %v254 = vld [vmem:[%s166 + $0x280] sm:$0xff]
      %v255 = vld [vmem:[%s166 + $0x288] sm:$0xff]
      %v256 = vld [vmem:[%s166 + $0x290] sm:$0xff]
      %v257 = vld [vmem:[%s166 + $0x298] sm:$0xff]
      %v258 = vld [vmem:[%s166 + $0x2a0] sm:$0xff]
      %v259 = vld [vmem:[%s166 + $0x2a8] sm:$0xff]
      %v260 = vld [vmem:[%s166 + $0x2b0] sm:$0xff]
      %v261 = vld [vmem:[%s166 + $0x2b8] sm:$0xff]
      %v262 = vld [vmem:[%s166 + $0x2c0] sm:$0xff]
      %v263 = vld [vmem:[%s166 + $0x2c8] sm:$0xff]
      %v264 = vld [vmem:[%s166 + $0x2d0] sm:$0xff]
      %v265 = vld [vmem:[%s166 + $0x2d8] sm:$0xff]
      %v266 = vld [vmem:[%s166 + $0x2e0] sm:$0xff]
      %v267 = vld [vmem:[%s166 + $0x2e8] sm:$0xff]
      %v268 = vld [vmem:[%s166 + $0x2f0] sm:$0xff]
      %v269 = vld [vmem:[%s166 + $0x2f8] sm:$0xff]
      %v270 = vld [vmem:[%s166 + $0x300] sm:$0xff]
      %v271 = vld [vmem:[%s166 + $0x308] sm:$0xff]
      %v272 = vld [vmem:[%s166 + $0x310] sm:$0xff]
      %v273 = vld [vmem:[%s166 + $0x318] sm:$0xff]
      %v274 = vld [vmem:[%s166 + $0x320] sm:$0xff]
      %v275 = vld [vmem:[%s166 + $0x328] sm:$0xff]
      %v276 = vld [vmem:[%s166 + $0x330] sm:$0xff]
      %v277 = vld [vmem:[%s166 + $0x338] sm:$0xff]
      %v278 = vld [vmem:[%s166 + $0x340] sm:$0xff]
      %v279 = vld [vmem:[%s166 + $0x348] sm:$0xff]
      %v280 = vld [vmem:[%s166 + $0x350] sm:$0xff]
      %v281 = vld [vmem:[%s166 + $0x358] sm:$0xff]
      %v282 = vld [vmem:[%s166 + $0x360] sm:$0xff]
      %v283 = vld [vmem:[%s166 + $0x368] sm:$0xff]
      %v284 = vld [vmem:[%s166 + $0x370] sm:$0xff]
      %v285 = vld [vmem:[%s166 + $0x378] sm:$0xff]
      %v286 = vld [vmem:[%s166 + $0x380] sm:$0xff]
      %v287 = vld [vmem:[%s166 + $0x388] sm:$0xff]
      %v288 = vld [vmem:[%s166 + $0x390] sm:$0xff]
      %v289 = vld [vmem:[%s166 + $0x398] sm:$0xff]
      %v290 = vld [vmem:[%s166 + $0x3a0] sm:$0xff]
      %v291 = vld [vmem:[%s166 + $0x3a8] sm:$0xff]
      %v292 = vld [vmem:[%s166 + $0x3b0] sm:$0xff]
      %v293 = vld [vmem:[%s166 + $0x3b8] sm:$0xff]
      %v294 = vld [vmem:[%s166 + $0x3c0] sm:$0xff]
      %v295 = vld [vmem:[%s166 + $0x3c8] sm:$0xff]
      %v296 = vld [vmem:[%s166 + $0x3d0] sm:$0xff]
      %v297 = vld [vmem:[%s166 + $0x3d8] sm:$0xff]
      %v298 = vld [vmem:[%s166 + $0x3e0] sm:$0xff]
      %v299 = vld [vmem:[%s166 + $0x3e8] sm:$0xff]
      %v300 = vld [vmem:[%s166 + $0x3f0] sm:$0xff]
      %v301 = vld [vmem:[%s166 + $0x3f8] sm:$0xff]
      %v302 = vld [vmem:[%s1] sm:$0x1]
      %v304 = vlaneseq
      %v305 = vshrl.u32 %v304, 7
      %v306 = vsub.s32 0, %v305
      %v307 = vrot.slane %v302, %v306
      %v309 = vmul.f32 %v174, %v307
      %v310 = vmul.f32 %v175, %v307
      %v311 = vmul.f32 %v176, %v307
      %v312 = vmul.f32 %v177, %v307
      %v313 = vmul.f32 %v178, %v307
      %v314 = vmul.f32 %v179, %v307
      %v315 = vmul.f32 %v180, %v307
      %v316 = vmul.f32 %v181, %v307
      %v317 = vmul.f32 %v182, %v307
      %v318 = vmul.f32 %v183, %v307
      %v319 = vmul.f32 %v184, %v307
      %v320 = vmul.f32 %v185, %v307
      %v321 = vmul.f32 %v186, %v307
      %v322 = vmul.f32 %v187, %v307
      %v323 = vmul.f32 %v188, %v307
      %v324 = vmul.f32 %v189, %v307
      %v325 = vmul.f32 %v190, %v307
      %v326 = vmul.f32 %v191, %v307
      %v327 = vmul.f32 %v192, %v307
      %v328 = vmul.f32 %v193, %v307
      %v329 = vmul.f32 %v194, %v307
      %v330 = vmul.f32 %v195, %v307
      %v331 = vmul.f32 %v196, %v307
      %v332 = vmul.f32 %v197, %v307
      %v333 = vmul.f32 %v198, %v307
      %v334 = vmul.f32 %v199, %v307
      %v335 = vmul.f32 %v200, %v307
      %v336 = vmul.f32 %v201, %v307
      %v337 = vmul.f32 %v202, %v307
      %v338 = vmul.f32 %v203, %v307
      %v339 = vmul.f32 %v204, %v307
      %v340 = vmul.f32 %v205, %v307
      %v341 = vmul.f32 %v206, %v307
      %v342 = vmul.f32 %v207, %v307
      %v343 = vmul.f32 %v208, %v307
      %v344 = vmul.f32 %v209, %v307
      %v345 = vmul.f32 %v210, %v307
      %v346 = vmul.f32 %v211, %v307
      %v347 = vmul.f32 %v212, %v307
      %v348 = vmul.f32 %v213, %v307
      %v349 = vmul.f32 %v214, %v307
      %v350 = vmul.f32 %v215, %v307
      %v351 = vmul.f32 %v216, %v307
      %v352 = vmul.f32 %v217, %v307
      %v353 = vmul.f32 %v218, %v307
      %v354 = vmul.f32 %v219, %v307
      %v355 = vmul.f32 %v220, %v307
      %v356 = vmul.f32 %v221, %v307
      %v357 = vmul.f32 %v222, %v307
      %v358 = vmul.f32 %v223, %v307
      %v359 = vmul.f32 %v224, %v307
      %v360 = vmul.f32 %v225, %v307
      %v361 = vmul.f32 %v226, %v307
      %v362 = vmul.f32 %v227, %v307
      %v363 = vmul.f32 %v228, %v307
      %v364 = vmul.f32 %v229, %v307
      %v365 = vmul.f32 %v230, %v307
      %v366 = vmul.f32 %v231, %v307
      %v367 = vmul.f32 %v232, %v307
      %v368 = vmul.f32 %v233, %v307
      %v369 = vmul.f32 %v234, %v307
      %v370 = vmul.f32 %v235, %v307
      %v371 = vmul.f32 %v236, %v307
      %v372 = vmul.f32 %v237, %v307
      %v373 = vmul.f32 %v238, %v307
      %v374 = vmul.f32 %v239, %v307
      %v375 = vmul.f32 %v240, %v307
      %v376 = vmul.f32 %v241, %v307
      %v377 = vmul.f32 %v242, %v307
      %v378 = vmul.f32 %v243, %v307
      %v379 = vmul.f32 %v244, %v307
      %v380 = vmul.f32 %v245, %v307
      %v381 = vmul.f32 %v246, %v307
      %v382 = vmul.f32 %v247, %v307
      %v383 = vmul.f32 %v248, %v307
      %v384 = vmul.f32 %v249, %v307
      %v385 = vmul.f32 %v250, %v307
      %v386 = vmul.f32 %v251, %v307
      %v387 = vmul.f32 %v252, %v307
      %v388 = vmul.f32 %v253, %v307
      %v389 = vmul.f32 %v254, %v307
      %v390 = vmul.f32 %v255, %v307
      %v391 = vmul.f32 %v256, %v307
      %v392 = vmul.f32 %v257, %v307
      %v393 = vmul.f32 %v258, %v307
      %v394 = vmul.f32 %v259, %v307
      %v395 = vmul.f32 %v260, %v307
      %v396 = vmul.f32 %v261, %v307
      %v397 = vmul.f32 %v262, %v307
      %v398 = vmul.f32 %v263, %v307
      %v399 = vmul.f32 %v264, %v307
      %v400 = vmul.f32 %v265, %v307
      %v401 = vmul.f32 %v266, %v307
      %v402 = vmul.f32 %v267, %v307
      %v403 = vmul.f32 %v268, %v307
      %v404 = vmul.f32 %v269, %v307
      %v405 = vmul.f32 %v270, %v307
      %v406 = vmul.f32 %v271, %v307
      %v407 = vmul.f32 %v272, %v307
      %v408 = vmul.f32 %v273, %v307
      %v409 = vmul.f32 %v274, %v307
      %v410 = vmul.f32 %v275, %v307
      %v411 = vmul.f32 %v276, %v307
      %v412 = vmul.f32 %v277, %v307
      %v413 = vmul.f32 %v278, %v307
      %v414 = vmul.f32 %v279, %v307
      %v415 = vmul.f32 %v280, %v307
      %v416 = vmul.f32 %v281, %v307
      %v417 = vmul.f32 %v282, %v307
      %v418 = vmul.f32 %v283, %v307
      %v419 = vmul.f32 %v284, %v307
      %v420 = vmul.f32 %v285, %v307
      %v421 = vmul.f32 %v286, %v307
      %v422 = vmul.f32 %v287, %v307
      %v423 = vmul.f32 %v288, %v307
      %v424 = vmul.f32 %v289, %v307
      %v425 = vmul.f32 %v290, %v307
      %v426 = vmul.f32 %v291, %v307
      %v427 = vmul.f32 %v292, %v307
      %v428 = vmul.f32 %v293, %v307
      %v429 = vmul.f32 %v294, %v307
      %v430 = vmul.f32 %v295, %v307
      %v431 = vmul.f32 %v296, %v307
      %v432 = vmul.f32 %v297, %v307
      %v433 = vmul.f32 %v298, %v307
      %v434 = vmul.f32 %v299, %v307
      %v435 = vmul.f32 %v300, %v307
      %v436 = vmul.f32 %v301, %v307
      %v437 = vld [vmem:[%s2] sm:$0x1]
      %v439 = vlaneseq
      %v440 = vshrl.u32 %v439, 7
      %v441 = vsub.s32 0, %v440
      %v442 = vrot.slane %v437, %v441
      %v444 = vadd.f32 %v309, %v442
      %v445 = vadd.f32 %v310, %v442
      %v446 = vadd.f32 %v311, %v442
      %v447 = vadd.f32 %v312, %v442
      %v448 = vadd.f32 %v313, %v442
      %v449 = vadd.f32 %v314, %v442
      %v450 = vadd.f32 %v315, %v442
      %v451 = vadd.f32 %v316, %v442
      %v452 = vadd.f32 %v317, %v442
      %v453 = vadd.f32 %v318, %v442
      %v454 = vadd.f32 %v319, %v442
      %v455 = vadd.f32 %v320, %v442
      %v456 = vadd.f32 %v321, %v442
      %v457 = vadd.f32 %v322, %v442
      %v458 = vadd.f32 %v323, %v442
      %v459 = vadd.f32 %v324, %v442
      %v460 = vadd.f32 %v325, %v442
      %v461 = vadd.f32 %v326, %v442
      %v462 = vadd.f32 %v327, %v442
      %v463 = vadd.f32 %v328, %v442
      %v464 = vadd.f32 %v329, %v442
      %v465 = vadd.f32 %v330, %v442
      %v466 = vadd.f32 %v331, %v442
      %v467 = vadd.f32 %v332, %v442
      %v468 = vadd.f32 %v333, %v442
      %v469 = vadd.f32 %v334, %v442
      %v470 = vadd.f32 %v335, %v442
      %v471 = vadd.f32 %v336, %v442
      %v472 = vadd.f32 %v337, %v442
      %v473 = vadd.f32 %v338, %v442
      %v474 = vadd.f32 %v339, %v442
      %v475 = vadd.f32 %v340, %v442
      %v476 = vadd.f32 %v341, %v442
      %v477 = vadd.f32 %v342, %v442
      %v478 = vadd.f32 %v343, %v442
      %v479 = vadd.f32 %v344, %v442
      %v480 = vadd.f32 %v345, %v442
      %v481 = vadd.f32 %v346, %v442
      %v482 = vadd.f32 %v347, %v442
      %v483 = vadd.f32 %v348, %v442
      %v484 = vadd.f32 %v349, %v442
      %v485 = vadd.f32 %v350, %v442
      %v486 = vadd.f32 %v351, %v442
      %v487 = vadd.f32 %v352, %v442
      %v488 = vadd.f32 %v353, %v442
      %v489 = vadd.f32 %v354, %v442
      %v490 = vadd.f32 %v355, %v442
      %v491 = vadd.f32 %v356, %v442
      %v492 = vadd.f32 %v357, %v442
      %v493 = vadd.f32 %v358, %v442
      %v494 = vadd.f32 %v359, %v442
      %v495 = vadd.f32 %v360, %v442
      %v496 = vadd.f32 %v361, %v442
      %v497 = vadd.f32 %v362, %v442
      %v498 = vadd.f32 %v363, %v442
      %v499 = vadd.f32 %v364, %v442
      %v500 = vadd.f32 %v365, %v442
      %v501 = vadd.f32 %v366, %v442
      %v502 = vadd.f32 %v367, %v442
      %v503 = vadd.f32 %v368, %v442
      %v504 = vadd.f32 %v369, %v442
      %v505 = vadd.f32 %v370, %v442
      %v506 = vadd.f32 %v371, %v442
      %v507 = vadd.f32 %v372, %v442
      %v508 = vadd.f32 %v373, %v442
      %v509 = vadd.f32 %v374, %v442
      %v510 = vadd.f32 %v375, %v442
      %v511 = vadd.f32 %v376, %v442
      %v512 = vadd.f32 %v377, %v442
      %v513 = vadd.f32 %v378, %v442
      %v514 = vadd.f32 %v379, %v442
      %v515 = vadd.f32 %v380, %v442
      %v516 = vadd.f32 %v381, %v442
      %v517 = vadd.f32 %v382, %v442
      %v518 = vadd.f32 %v383, %v442
      %v519 = vadd.f32 %v384, %v442
      %v520 = vadd.f32 %v385, %v442
      %v521 = vadd.f32 %v386, %v442
      %v522 = vadd.f32 %v387, %v442
      %v523 = vadd.f32 %v388, %v442
      %v524 = vadd.f32 %v389, %v442
      %v525 = vadd.f32 %v390, %v442
      %v526 = vadd.f32 %v391, %v442
      %v527 = vadd.f32 %v392, %v442
      %v528 = vadd.f32 %v393, %v442
      %v529 = vadd.f32 %v394, %v442
      %v530 = vadd.f32 %v395, %v442
      %v531 = vadd.f32 %v396, %v442
      %v532 = vadd.f32 %v397, %v442
      %v533 = vadd.f32 %v398, %v442
      %v534 = vadd.f32 %v399, %v442
      %v535 = vadd.f32 %v400, %v442
      %v536 = vadd.f32 %v401, %v442
      %v537 = vadd.f32 %v402, %v442
      %v538 = vadd.f32 %v403, %v442
      %v539 = vadd.f32 %v404, %v442
      %v540 = vadd.f32 %v405, %v442
      %v541 = vadd.f32 %v406, %v442
      %v542 = vadd.f32 %v407, %v442
      %v543 = vadd.f32 %v408, %v442
      %v544 = vadd.f32 %v409, %v442
      %v545 = vadd.f32 %v410, %v442
      %v546 = vadd.f32 %v411, %v442
      %v547 = vadd.f32 %v412, %v442
      %v548 = vadd.f32 %v413, %v442
      %v549 = vadd.f32 %v414, %v442
      %v550 = vadd.f32 %v415, %v442
      %v551 = vadd.f32 %v416, %v442
      %v552 = vadd.f32 %v417, %v442
      %v553 = vadd.f32 %v418, %v442
      %v554 = vadd.f32 %v419, %v442
      %v555 = vadd.f32 %v420, %v442
      %v556 = vadd.f32 %v421, %v442
      %v557 = vadd.f32 %v422, %v442
      %v558 = vadd.f32 %v423, %v442
      %v559 = vadd.f32 %v424, %v442
      %v560 = vadd.f32 %v425, %v442
      %v561 = vadd.f32 %v426, %v442
      %v562 = vadd.f32 %v427, %v442
      %v563 = vadd.f32 %v428, %v442
      %v564 = vadd.f32 %v429, %v442
      %v565 = vadd.f32 %v430, %v442
      %v566 = vadd.f32 %v431, %v442
      %v567 = vadd.f32 %v432, %v442
      %v568 = vadd.f32 %v433, %v442
      %v569 = vadd.f32 %v434, %v442
      %v570 = vadd.f32 %v435, %v442
      %v571 = vadd.f32 %v436, %v442
      %v572 = vmax.f32 %v444, 0.0
      %v573 = vmax.f32 %v445, 0.0
      %v574 = vmax.f32 %v446, 0.0
      %v575 = vmax.f32 %v447, 0.0
      %v576 = vmax.f32 %v448, 0.0
      %v577 = vmax.f32 %v449, 0.0
      %v578 = vmax.f32 %v450, 0.0
      %v579 = vmax.f32 %v451, 0.0
      %v580 = vmax.f32 %v452, 0.0
      %v581 = vmax.f32 %v453, 0.0
      %v582 = vmax.f32 %v454, 0.0
      %v583 = vmax.f32 %v455, 0.0
      %v584 = vmax.f32 %v456, 0.0
      %v585 = vmax.f32 %v457, 0.0
      %v586 = vmax.f32 %v458, 0.0
      %v587 = vmax.f32 %v459, 0.0
      %v588 = vmax.f32 %v460, 0.0
      %v589 = vmax.f32 %v461, 0.0
      %v590 = vmax.f32 %v462, 0.0
      %v591 = vmax.f32 %v463, 0.0
      %v592 = vmax.f32 %v464, 0.0
      %v593 = vmax.f32 %v465, 0.0
      %v594 = vmax.f32 %v466, 0.0
      %v595 = vmax.f32 %v467, 0.0
      %v596 = vmax.f32 %v468, 0.0
      %v597 = vmax.f32 %v469, 0.0
      %v598 = vmax.f32 %v470, 0.0
      %v599 = vmax.f32 %v471, 0.0
      %v600 = vmax.f32 %v472, 0.0
      %v601 = vmax.f32 %v473, 0.0
      %v602 = vmax.f32 %v474, 0.0
      %v603 = vmax.f32 %v475, 0.0
      %v604 = vmax.f32 %v476, 0.0
      %v605 = vmax.f32 %v477, 0.0
      %v606 = vmax.f32 %v478, 0.0
      %v607 = vmax.f32 %v479, 0.0
      %v608 = vmax.f32 %v480, 0.0
      %v609 = vmax.f32 %v481, 0.0
      %v610 = vmax.f32 %v482, 0.0
      %v611 = vmax.f32 %v483, 0.0
      %v612 = vmax.f32 %v484, 0.0
      %v613 = vmax.f32 %v485, 0.0
      %v614 = vmax.f32 %v486, 0.0
      %v615 = vmax.f32 %v487, 0.0
      %v616 = vmax.f32 %v488, 0.0
      %v617 = vmax.f32 %v489, 0.0
      %v618 = vmax.f32 %v490, 0.0
      %v619 = vmax.f32 %v491, 0.0
      %v620 = vmax.f32 %v492, 0.0
      %v621 = vmax.f32 %v493, 0.0
      %v622 = vmax.f32 %v494, 0.0
      %v623 = vmax.f32 %v495, 0.0
      %v624 = vmax.f32 %v496, 0.0
      %v625 = vmax.f32 %v497, 0.0
      %v626 = vmax.f32 %v498, 0.0
      %v627 = vmax.f32 %v499, 0.0
      %v628 = vmax.f32 %v500, 0.0
      %v629 = vmax.f32 %v501, 0.0
      %v630 = vmax.f32 %v502, 0.0
      %v631 = vmax.f32 %v503, 0.0
      %v632 = vmax.f32 %v504, 0.0
      %v633 = vmax.f32 %v505, 0.0
      %v634 = vmax.f32 %v506, 0.0
      %v635 = vmax.f32 %v507, 0.0
      %v636 = vmax.f32 %v508, 0.0
      %v637 = vmax.f32 %v509, 0.0
      %v638 = vmax.f32 %v510, 0.0
      %v639 = vmax.f32 %v511, 0.0
      %v640 = vmax.f32 %v512, 0.0
      %v641 = vmax.f32 %v513, 0.0
      %v642 = vmax.f32 %v514, 0.0
      %v643 = vmax.f32 %v515, 0.0
      %v644 = vmax.f32 %v516, 0.0
      %v645 = vmax.f32 %v517, 0.0
      %v646 = vmax.f32 %v518, 0.0
      %v647 = vmax.f32 %v519, 0.0
      %v648 = vmax.f32 %v520, 0.0
      %v649 = vmax.f32 %v521, 0.0
      %v650 = vmax.f32 %v522, 0.0
      %v651 = vmax.f32 %v523, 0.0
      %v652 = vmax.f32 %v524, 0.0
      %v653 = vmax.f32 %v525, 0.0
      %v654 = vmax.f32 %v526, 0.0
      %v655 = vmax.f32 %v527, 0.0
      %v656 = vmax.f32 %v528, 0.0
      %v657 = vmax.f32 %v529, 0.0
      %v658 = vmax.f32 %v530, 0.0
      %v659 = vmax.f32 %v531, 0.0
      %v660 = vmax.f32 %v532, 0.0
      %v661 = vmax.f32 %v533, 0.0
      %v662 = vmax.f32 %v534, 0.0
      %v663 = vmax.f32 %v535, 0.0
      %v664 = vmax.f32 %v536, 0.0
      %v665 = vmax.f32 %v537, 0.0
      %v666 = vmax.f32 %v538, 0.0
      %v667 = vmax.f32 %v539, 0.0
      %v668 = vmax.f32 %v540, 0.0
      %v669 = vmax.f32 %v541, 0.0
      %v670 = vmax.f32 %v542, 0.0
      %v671 = vmax.f32 %v543, 0.0
      %v672 = vmax.f32 %v544, 0.0
      %v673 = vmax.f32 %v545, 0.0
      %v674 = vmax.f32 %v546, 0.0
      %v675 = vmax.f32 %v547, 0.0
      %v676 = vmax.f32 %v548, 0.0
      %v677 = vmax.f32 %v549, 0.0
      %v678 = vmax.f32 %v550, 0.0
      %v679 = vmax.f32 %v551, 0.0
      %v680 = vmax.f32 %v552, 0.0
      %v681 = vmax.f32 %v553, 0.0
      %v682 = vmax.f32 %v554, 0.0
      %v683 = vmax.f32 %v555, 0.0
      %v684 = vmax.f32 %v556, 0.0
      %v685 = vmax.f32 %v557, 0.0
      %v686 = vmax.f32 %v558, 0.0
      %v687 = vmax.f32 %v559, 0.0
      %v688 = vmax.f32 %v560, 0.0
      %v689 = vmax.f32 %v561, 0.0
      %v690 = vmax.f32 %v562, 0.0
      %v691 = vmax.f32 %v563, 0.0
      %v692 = vmax.f32 %v564, 0.0
      %v693 = vmax.f32 %v565, 0.0
      %v694 = vmax.f32 %v566, 0.0
      %v695 = vmax.f32 %v567, 0.0
      %v696 = vmax.f32 %v568, 0.0
      %v697 = vmax.f32 %v569, 0.0
      %v698 = vmax.f32 %v570, 0.0
      %v699 = vmax.f32 %v571, 0.0
      %v700 = vpack.c.bf16 %v573, %v572
      %v701 = vpack.c.bf16 %v575, %v574
      %v702 = vpack.c.bf16 %v577, %v576
      %v703 = vpack.c.bf16 %v579, %v578
      %v704 = vpack.c.bf16 %v581, %v580
      %v705 = vpack.c.bf16 %v583, %v582
      %v706 = vpack.c.bf16 %v585, %v584
      %v707 = vpack.c.bf16 %v587, %v586
      %v708 = vpack.c.bf16 %v589, %v588
      %v709 = vpack.c.bf16 %v591, %v590
      %v710 = vpack.c.bf16 %v593, %v592
      %v711 = vpack.c.bf16 %v595, %v594
      %v712 = vpack.c.bf16 %v597, %v596
      %v713 = vpack.c.bf16 %v599, %v598
      %v714 = vpack.c.bf16 %v601, %v600
      %v715 = vpack.c.bf16 %v603, %v602
      %v716 = vpack.c.bf16 %v605, %v604
      %v717 = vpack.c.bf16 %v607, %v606
      %v718 = vpack.c.bf16 %v609, %v608
      %v719 = vpack.c.bf16 %v611, %v610
      %v720 = vpack.c.bf16 %v613, %v612
      %v721 = vpack.c.bf16 %v615, %v614
      %v722 = vpack.c.bf16 %v617, %v616
      %v723 = vpack.c.bf16 %v619, %v618
      %v724 = vpack.c.bf16 %v621, %v620
      %v725 = vpack.c.bf16 %v623, %v622
      %v726 = vpack.c.bf16 %v625, %v624
      %v727 = vpack.c.bf16 %v627, %v626
      %v728 = vpack.c.bf16 %v629, %v628
      %v729 = vpack.c.bf16 %v631, %v630
      %v730 = vpack.c.bf16 %v633, %v632
      %v731 = vpack.c.bf16 %v635, %v634
      %v732 = vpack.c.bf16 %v637, %v636
      %v733 = vpack.c.bf16 %v639, %v638
      %v734 = vpack.c.bf16 %v641, %v640
      %v735 = vpack.c.bf16 %v643, %v642
      %v736 = vpack.c.bf16 %v645, %v644
      %v737 = vpack.c.bf16 %v647, %v646
      %v738 = vpack.c.bf16 %v649, %v648
      %v739 = vpack.c.bf16 %v651, %v650
      %v740 = vpack.c.bf16 %v653, %v652
      %v741 = vpack.c.bf16 %v655, %v654
      %v742 = vpack.c.bf16 %v657, %v656
      %v743 = vpack.c.bf16 %v659, %v658
      %v744 = vpack.c.bf16 %v661, %v660
      %v745 = vpack.c.bf16 %v663, %v662
      %v746 = vpack.c.bf16 %v665, %v664
      %v747 = vpack.c.bf16 %v667, %v666
      %v748 = vpack.c.bf16 %v669, %v668
      %v749 = vpack.c.bf16 %v671, %v670
      %v750 = vpack.c.bf16 %v673, %v672
      %v751 = vpack.c.bf16 %v675, %v674
      %v752 = vpack.c.bf16 %v677, %v676
      %v753 = vpack.c.bf16 %v679, %v678
      %v754 = vpack.c.bf16 %v681, %v680
      %v755 = vpack.c.bf16 %v683, %v682
      %v756 = vpack.c.bf16 %v685, %v684
      %v757 = vpack.c.bf16 %v687, %v686
      %v758 = vpack.c.bf16 %v689, %v688
      %v759 = vpack.c.bf16 %v691, %v690
      %v760 = vpack.c.bf16 %v693, %v692
      %v761 = vpack.c.bf16 %v695, %v694
      %v762 = vpack.c.bf16 %v697, %v696
      %v763 = vpack.c.bf16 %v699, %v698
      %v828 = vunpack.c.l.b16 %v700
      %v829 = vunpack.c.h.b16 %v700
      %v830 = vunpack.c.l.b16 %v701
      %v831 = vunpack.c.h.b16 %v701
      %v832 = vunpack.c.l.b16 %v702
      %v833 = vunpack.c.h.b16 %v702
      %v834 = vunpack.c.l.b16 %v703
      %v835 = vunpack.c.h.b16 %v703
      %v836 = vunpack.c.l.b16 %v704
      %v837 = vunpack.c.h.b16 %v704
      %v838 = vunpack.c.l.b16 %v705
      %v839 = vunpack.c.h.b16 %v705
      %v840 = vunpack.c.l.b16 %v706
      %v841 = vunpack.c.h.b16 %v706
      %v842 = vunpack.c.l.b16 %v707
      %v843 = vunpack.c.h.b16 %v707
      %v844 = vunpack.c.l.b16 %v708
      %v845 = vunpack.c.h.b16 %v708
      %v846 = vunpack.c.l.b16 %v709
      %v847 = vunpack.c.h.b16 %v709
      %v848 = vunpack.c.l.b16 %v710
      %v849 = vunpack.c.h.b16 %v710
      %v850 = vunpack.c.l.b16 %v711
      %v851 = vunpack.c.h.b16 %v711
      %v852 = vunpack.c.l.b16 %v712
      %v853 = vunpack.c.h.b16 %v712
      %v854 = vunpack.c.l.b16 %v713
      %v855 = vunpack.c.h.b16 %v713
      %v856 = vunpack.c.l.b16 %v714
      %v857 = vunpack.c.h.b16 %v714
      %v858 = vunpack.c.l.b16 %v715
      %v859 = vunpack.c.h.b16 %v715
      %v860 = vunpack.c.l.b16 %v716
      %v861 = vunpack.c.h.b16 %v716
      %v862 = vunpack.c.l.b16 %v717
      %v863 = vunpack.c.h.b16 %v717
      %v864 = vunpack.c.l.b16 %v718
      %v865 = vunpack.c.h.b16 %v718
      %v866 = vunpack.c.l.b16 %v719
      %v867 = vunpack.c.h.b16 %v719
      %v868 = vunpack.c.l.b16 %v720
      %v869 = vunpack.c.h.b16 %v720
      %v870 = vunpack.c.l.b16 %v721
      %v871 = vunpack.c.h.b16 %v721
      %v872 = vunpack.c.l.b16 %v722
      %v873 = vunpack.c.h.b16 %v722
      %v874 = vunpack.c.l.b16 %v723
      %v875 = vunpack.c.h.b16 %v723
      %v876 = vunpack.c.l.b16 %v724
      %v877 = vunpack.c.h.b16 %v724
      %v878 = vunpack.c.l.b16 %v725
      %v879 = vunpack.c.h.b16 %v725
      %v880 = vunpack.c.l.b16 %v726
      %v881 = vunpack.c.h.b16 %v726
      %v882 = vunpack.c.l.b16 %v727
      %v883 = vunpack.c.h.b16 %v727
      %v884 = vunpack.c.l.b16 %v728
      %v885 = vunpack.c.h.b16 %v728
      %v886 = vunpack.c.l.b16 %v729
      %v887 = vunpack.c.h.b16 %v729
      %v888 = vunpack.c.l.b16 %v730
      %v889 = vunpack.c.h.b16 %v730
      %v890 = vunpack.c.l.b16 %v731
      %v891 = vunpack.c.h.b16 %v731
      %v892 = vunpack.c.l.b16 %v732
      %v893 = vunpack.c.h.b16 %v732
      %v894 = vunpack.c.l.b16 %v733
      %v895 = vunpack.c.h.b16 %v733
      %v896 = vunpack.c.l.b16 %v734
      %v897 = vunpack.c.h.b16 %v734
      %v898 = vunpack.c.l.b16 %v735
      %v899 = vunpack.c.h.b16 %v735
      %v900 = vunpack.c.l.b16 %v736
      %v901 = vunpack.c.h.b16 %v736
      %v902 = vunpack.c.l.b16 %v737
      %v903 = vunpack.c.h.b16 %v737
      %v904 = vunpack.c.l.b16 %v738
      %v905 = vunpack.c.h.b16 %v738
      %v906 = vunpack.c.l.b16 %v739
      %v907 = vunpack.c.h.b16 %v739
      %v908 = vunpack.c.l.b16 %v740
      %v909 = vunpack.c.h.b16 %v740
      %v910 = vunpack.c.l.b16 %v741
      %v911 = vunpack.c.h.b16 %v741
      %v912 = vunpack.c.l.b16 %v742
      %v913 = vunpack.c.h.b16 %v742
      %v914 = vunpack.c.l.b16 %v743
      %v915 = vunpack.c.h.b16 %v743
      %v916 = vunpack.c.l.b16 %v744
      %v917 = vunpack.c.h.b16 %v744
      %v918 = vunpack.c.l.b16 %v745
      %v919 = vunpack.c.h.b16 %v745
      %v920 = vunpack.c.l.b16 %v746
      %v921 = vunpack.c.h.b16 %v746
      %v922 = vunpack.c.l.b16 %v747
      %v923 = vunpack.c.h.b16 %v747
      %v924 = vunpack.c.l.b16 %v748
      %v925 = vunpack.c.h.b16 %v748
      %v926 = vunpack.c.l.b16 %v749
      %v927 = vunpack.c.h.b16 %v749
      %v928 = vunpack.c.l.b16 %v750
      %v929 = vunpack.c.h.b16 %v750
      %v930 = vunpack.c.l.b16 %v751
      %v931 = vunpack.c.h.b16 %v751
      %v932 = vunpack.c.l.b16 %v752
      %v933 = vunpack.c.h.b16 %v752
      %v934 = vunpack.c.l.b16 %v753
      %v935 = vunpack.c.h.b16 %v753
      %v936 = vunpack.c.l.b16 %v754
      %v937 = vunpack.c.h.b16 %v754
      %v938 = vunpack.c.l.b16 %v755
      %v939 = vunpack.c.h.b16 %v755
      %v940 = vunpack.c.l.b16 %v756
      %v941 = vunpack.c.h.b16 %v756
      %v942 = vunpack.c.l.b16 %v757
      %v943 = vunpack.c.h.b16 %v757
      %v944 = vunpack.c.l.b16 %v758
      %v945 = vunpack.c.h.b16 %v758
      %v946 = vunpack.c.l.b16 %v759
      %v947 = vunpack.c.h.b16 %v759
      %v948 = vunpack.c.l.b16 %v760
      %v949 = vunpack.c.h.b16 %v760
      %v950 = vunpack.c.l.b16 %v761
      %v951 = vunpack.c.h.b16 %v761
      %v952 = vunpack.c.l.b16 %v762
      %v953 = vunpack.c.h.b16 %v762
      %v954 = vunpack.c.l.b16 %v763
      %v955 = vunpack.c.h.b16 %v763
      %v956 = vpack.c.b16 %v828, %v828
      %v957 = vpack.c.b16 %v829, %v829
      %v958 = vpack.c.b16 %v830, %v830
      %v959 = vpack.c.b16 %v831, %v831
      %v960 = vpack.c.b16 %v832, %v832
      %v961 = vpack.c.b16 %v833, %v833
      %v962 = vpack.c.b16 %v834, %v834
      %v963 = vpack.c.b16 %v835, %v835
      %v964 = vpack.c.b16 %v836, %v836
      %v965 = vpack.c.b16 %v837, %v837
      %v966 = vpack.c.b16 %v838, %v838
      %v967 = vpack.c.b16 %v839, %v839
      %v968 = vpack.c.b16 %v840, %v840
      %v969 = vpack.c.b16 %v841, %v841
      %v970 = vpack.c.b16 %v842, %v842
      %v971 = vpack.c.b16 %v843, %v843
      %v972 = vpack.c.b16 %v844, %v844
      %v973 = vpack.c.b16 %v845, %v845
      %v974 = vpack.c.b16 %v846, %v846
      %v975 = vpack.c.b16 %v847, %v847
      %v976 = vpack.c.b16 %v848, %v848
      %v977 = vpack.c.b16 %v849, %v849
      %v978 = vpack.c.b16 %v850, %v850
      %v979 = vpack.c.b16 %v851, %v851
      %v980 = vpack.c.b16 %v852, %v852
      %v981 = vpack.c.b16 %v853, %v853
      %v982 = vpack.c.b16 %v854, %v854
      %v983 = vpack.c.b16 %v855, %v855
      %v984 = vpack.c.b16 %v856, %v856
      %v985 = vpack.c.b16 %v857, %v857
      %v986 = vpack.c.b16 %v858, %v858
      %v987 = vpack.c.b16 %v859, %v859
      %v988 = vpack.c.b16 %v860, %v860
      %v989 = vpack.c.b16 %v861, %v861
      %v990 = vpack.c.b16 %v862, %v862
      %v991 = vpack.c.b16 %v863, %v863
      %v992 = vpack.c.b16 %v864, %v864
      %v993 = vpack.c.b16 %v865, %v865
      %v994 = vpack.c.b16 %v866, %v866
      %v995 = vpack.c.b16 %v867, %v867
      %v996 = vpack.c.b16 %v868, %v868
      %v997 = vpack.c.b16 %v869, %v869
      %v998 = vpack.c.b16 %v870, %v870
      %v999 = vpack.c.b16 %v871, %v871
      %v1000 = vpack.c.b16 %v872, %v872
      %v1001 = vpack.c.b16 %v873, %v873
      %v1002 = vpack.c.b16 %v874, %v874
      %v1003 = vpack.c.b16 %v875, %v875
      %v1004 = vpack.c.b16 %v876, %v876
      %v1005 = vpack.c.b16 %v877, %v877
      %v1006 = vpack.c.b16 %v878, %v878
      %v1007 = vpack.c.b16 %v879, %v879
      %v1008 = vpack.c.b16 %v880, %v880
      %v1009 = vpack.c.b16 %v881, %v881
      %v1010 = vpack.c.b16 %v882, %v882
      %v1011 = vpack.c.b16 %v883, %v883
      %v1012 = vpack.c.b16 %v884, %v884
      %v1013 = vpack.c.b16 %v885, %v885
      %v1014 = vpack.c.b16 %v886, %v886
      %v1015 = vpack.c.b16 %v887, %v887
      %v1016 = vpack.c.b16 %v888, %v888
      %v1017 = vpack.c.b16 %v889, %v889
      %v1018 = vpack.c.b16 %v890, %v890
      %v1019 = vpack.c.b16 %v891, %v891
      %v1020 = vpack.c.b16 %v892, %v892
      %v1021 = vpack.c.b16 %v893, %v893
      %v1022 = vpack.c.b16 %v894, %v894
      %v1023 = vpack.c.b16 %v895, %v895
      %v1024 = vpack.c.b16 %v896, %v896
      %v1025 = vpack.c.b16 %v897, %v897
      %v1026 = vpack.c.b16 %v898, %v898
      %v1027 = vpack.c.b16 %v899, %v899
      %v1028 = vpack.c.b16 %v900, %v900
      %v1029 = vpack.c.b16 %v901, %v901
      %v1030 = vpack.c.b16 %v902, %v902
      %v1031 = vpack.c.b16 %v903, %v903
      %v1032 = vpack.c.b16 %v904, %v904
      %v1033 = vpack.c.b16 %v905, %v905
      %v1034 = vpack.c.b16 %v906, %v906
      %v1035 = vpack.c.b16 %v907, %v907
      %v1036 = vpack.c.b16 %v908, %v908
      %v1037 = vpack.c.b16 %v909, %v909
      %v1038 = vpack.c.b16 %v910, %v910
      %v1039 = vpack.c.b16 %v911, %v911
      %v1040 = vpack.c.b16 %v912, %v912
      %v1041 = vpack.c.b16 %v913, %v913
      %v1042 = vpack.c.b16 %v914, %v914
      %v1043 = vpack.c.b16 %v915, %v915
      %v1044 = vpack.c.b16 %v916, %v916
      %v1045 = vpack.c.b16 %v917, %v917
      %v1046 = vpack.c.b16 %v918, %v918
      %v1047 = vpack.c.b16 %v919, %v919
      %v1048 = vpack.c.b16 %v920, %v920
      %v1049 = vpack.c.b16 %v921, %v921
      %v1050 = vpack.c.b16 %v922, %v922
      %v1051 = vpack.c.b16 %v923, %v923
      %v1052 = vpack.c.b16 %v924, %v924
      %v1053 = vpack.c.b16 %v925, %v925
      %v1054 = vpack.c.b16 %v926, %v926
      %v1055 = vpack.c.b16 %v927, %v927
      %v1056 = vpack.c.b16 %v928, %v928
      %v1057 = vpack.c.b16 %v929, %v929
      %v1058 = vpack.c.b16 %v930, %v930
      %v1059 = vpack.c.b16 %v931, %v931
      %v1060 = vpack.c.b16 %v932, %v932
      %v1061 = vpack.c.b16 %v933, %v933
      %v1062 = vpack.c.b16 %v934, %v934
      %v1063 = vpack.c.b16 %v935, %v935
      %v1064 = vpack.c.b16 %v936, %v936
      %v1065 = vpack.c.b16 %v937, %v937
      %v1066 = vpack.c.b16 %v938, %v938
      %v1067 = vpack.c.b16 %v939, %v939
      %v1068 = vpack.c.b16 %v940, %v940
      %v1069 = vpack.c.b16 %v941, %v941
      %v1070 = vpack.c.b16 %v942, %v942
      %v1071 = vpack.c.b16 %v943, %v943
      %v1072 = vpack.c.b16 %v944, %v944
      %v1073 = vpack.c.b16 %v945, %v945
      %v1074 = vpack.c.b16 %v946, %v946
      %v1075 = vpack.c.b16 %v947, %v947
      %v1076 = vpack.c.b16 %v948, %v948
      %v1077 = vpack.c.b16 %v949, %v949
      %v1078 = vpack.c.b16 %v950, %v950
      %v1079 = vpack.c.b16 %v951, %v951
      %v1080 = vpack.c.b16 %v952, %v952
      %v1081 = vpack.c.b16 %v953, %v953
      %v1082 = vpack.c.b16 %v954, %v954
      %v1083 = vpack.c.b16 %v955, %v955
      %vm1212 = vcmask 60416
      %1213 = vst.msk [vmem:[%s172] sm:$0xf] %vm1212, %v956
      %1214 = vst.msk [vmem:[%s172 + $0x4] sm:$0xf] %vm1212, %v957
      %1215 = vst.msk [vmem:[%s172 + $0x8] sm:$0xf] %vm1212, %v958
      %1216 = vst.msk [vmem:[%s172 + $0xc] sm:$0xf] %vm1212, %v959
      %1217 = vst.msk [vmem:[%s172 + $0x10] sm:$0xf] %vm1212, %v960
      %1218 = vst.msk [vmem:[%s172 + $0x14] sm:$0xf] %vm1212, %v961
      %1219 = vst.msk [vmem:[%s172 + $0x18] sm:$0xf] %vm1212, %v962
      %1220 = vst.msk [vmem:[%s172 + $0x1c] sm:$0xf] %vm1212, %v963
      %1221 = vst.msk [vmem:[%s172 + $0x20] sm:$0xf] %vm1212, %v964
      %1222 = vst.msk [vmem:[%s172 + $0x24] sm:$0xf] %vm1212, %v965
      %1223 = vst.msk [vmem:[%s172 + $0x28] sm:$0xf] %vm1212, %v966
      %1224 = vst.msk [vmem:[%s172 + $0x2c] sm:$0xf] %vm1212, %v967
      %1225 = vst.msk [vmem:[%s172 + $0x30] sm:$0xf] %vm1212, %v968
      %1226 = vst.msk [vmem:[%s172 + $0x34] sm:$0xf] %vm1212, %v969
      %1227 = vst.msk [vmem:[%s172 + $0x38] sm:$0xf] %vm1212, %v970
      %1228 = vst.msk [vmem:[%s172 + $0x3c] sm:$0xf] %vm1212, %v971
      %1229 = vst.msk [vmem:[%s172 + $0x40] sm:$0xf] %vm1212, %v972
      %1230 = vst.msk [vmem:[%s172 + $0x44] sm:$0xf] %vm1212, %v973
      %1231 = vst.msk [vmem:[%s172 + $0x48] sm:$0xf] %vm1212, %v974
      %1232 = vst.msk [vmem:[%s172 + $0x4c] sm:$0xf] %vm1212, %v975
      %1233 = vst.msk [vmem:[%s172 + $0x50] sm:$0xf] %vm1212, %v976
      %1234 = vst.msk [vmem:[%s172 + $0x54] sm:$0xf] %vm1212, %v977
      %1235 = vst.msk [vmem:[%s172 + $0x58] sm:$0xf] %vm1212, %v978
      %1236 = vst.msk [vmem:[%s172 + $0x5c] sm:$0xf] %vm1212, %v979
      %1237 = vst.msk [vmem:[%s172 + $0x60] sm:$0xf] %vm1212, %v980
      %1238 = vst.msk [vmem:[%s172 + $0x64] sm:$0xf] %vm1212, %v981
      %1239 = vst.msk [vmem:[%s172 + $0x68] sm:$0xf] %vm1212, %v982
      %1240 = vst.msk [vmem:[%s172 + $0x6c] sm:$0xf] %vm1212, %v983
      %1241 = vst.msk [vmem:[%s172 + $0x70] sm:$0xf] %vm1212, %v984
      %1242 = vst.msk [vmem:[%s172 + $0x74] sm:$0xf] %vm1212, %v985
      %1243 = vst.msk [vmem:[%s172 + $0x78] sm:$0xf] %vm1212, %v986
      %1244 = vst.msk [vmem:[%s172 + $0x7c] sm:$0xf] %vm1212, %v987
      %1245 = vst.msk [vmem:[%s172 + $0x80] sm:$0xf] %vm1212, %v988
      %1246 = vst.msk [vmem:[%s172 + $0x84] sm:$0xf] %vm1212, %v989
      %1247 = vst.msk [vmem:[%s172 + $0x88] sm:$0xf] %vm1212, %v990
      %1248 = vst.msk [vmem:[%s172 + $0x8c] sm:$0xf] %vm1212, %v991
      %1249 = vst.msk [vmem:[%s172 + $0x90] sm:$0xf] %vm1212, %v992
      %1250 = vst.msk [vmem:[%s172 + $0x94] sm:$0xf] %vm1212, %v993
      %1251 = vst.msk [vmem:[%s172 + $0x98] sm:$0xf] %vm1212, %v994
      %1252 = vst.msk [vmem:[%s172 + $0x9c] sm:$0xf] %vm1212, %v995
      %1253 = vst.msk [vmem:[%s172 + $0xa0] sm:$0xf] %vm1212, %v996
      %1254 = vst.msk [vmem:[%s172 + $0xa4] sm:$0xf] %vm1212, %v997
      %1255 = vst.msk [vmem:[%s172 + $0xa8] sm:$0xf] %vm1212, %v998
      %1256 = vst.msk [vmem:[%s172 + $0xac] sm:$0xf] %vm1212, %v999
      %1257 = vst.msk [vmem:[%s172 + $0xb0] sm:$0xf] %vm1212, %v1000
      %1258 = vst.msk [vmem:[%s172 + $0xb4] sm:$0xf] %vm1212, %v1001
      %1259 = vst.msk [vmem:[%s172 + $0xb8] sm:$0xf] %vm1212, %v1002
      %1260 = vst.msk [vmem:[%s172 + $0xbc] sm:$0xf] %vm1212, %v1003
      %1261 = vst.msk [vmem:[%s172 + $0xc0] sm:$0xf] %vm1212, %v1004
      %1262 = vst.msk [vmem:[%s172 + $0xc4] sm:$0xf] %vm1212, %v1005
      %1263 = vst.msk [vmem:[%s172 + $0xc8] sm:$0xf] %vm1212, %v1006
      %1264 = vst.msk [vmem:[%s172 + $0xcc] sm:$0xf] %vm1212, %v1007
      %1265 = vst.msk [vmem:[%s172 + $0xd0] sm:$0xf] %vm1212, %v1008
      %1266 = vst.msk [vmem:[%s172 + $0xd4] sm:$0xf] %vm1212, %v1009
      %1267 = vst.msk [vmem:[%s172 + $0xd8] sm:$0xf] %vm1212, %v1010
      %1268 = vst.msk [vmem:[%s172 + $0xdc] sm:$0xf] %vm1212, %v1011
      %1269 = vst.msk [vmem:[%s172 + $0xe0] sm:$0xf] %vm1212, %v1012
      %1270 = vst.msk [vmem:[%s172 + $0xe4] sm:$0xf] %vm1212, %v1013
      %1271 = vst.msk [vmem:[%s172 + $0xe8] sm:$0xf] %vm1212, %v1014
      %1272 = vst.msk [vmem:[%s172 + $0xec] sm:$0xf] %vm1212, %v1015
      %1273 = vst.msk [vmem:[%s172 + $0xf0] sm:$0xf] %vm1212, %v1016
      %1274 = vst.msk [vmem:[%s172 + $0xf4] sm:$0xf] %vm1212, %v1017
      %1275 = vst.msk [vmem:[%s172 + $0xf8] sm:$0xf] %vm1212, %v1018
      %1276 = vst.msk [vmem:[%s172 + $0xfc] sm:$0xf] %vm1212, %v1019
      %1277 = vst.msk [vmem:[%s172 + $0x100] sm:$0xf] %vm1212, %v1020
      %1278 = vst.msk [vmem:[%s172 + $0x104] sm:$0xf] %vm1212, %v1021
      %1279 = vst.msk [vmem:[%s172 + $0x108] sm:$0xf] %vm1212, %v1022
      %1280 = vst.msk [vmem:[%s172 + $0x10c] sm:$0xf] %vm1212, %v1023
      %1281 = vst.msk [vmem:[%s172 + $0x110] sm:$0xf] %vm1212, %v1024
      %1282 = vst.msk [vmem:[%s172 + $0x114] sm:$0xf] %vm1212, %v1025
      %1283 = vst.msk [vmem:[%s172 + $0x118] sm:$0xf] %vm1212, %v1026
      %1284 = vst.msk [vmem:[%s172 + $0x11c] sm:$0xf] %vm1212, %v1027
      %1285 = vst.msk [vmem:[%s172 + $0x120] sm:$0xf] %vm1212, %v1028
      %1286 = vst.msk [vmem:[%s172 + $0x124] sm:$0xf] %vm1212, %v1029
      %1287 = vst.msk [vmem:[%s172 + $0x128] sm:$0xf] %vm1212, %v1030
      %1288 = vst.msk [vmem:[%s172 + $0x12c] sm:$0xf] %vm1212, %v1031
      %1289 = vst.msk [vmem:[%s172 + $0x130] sm:$0xf] %vm1212, %v1032
      %1290 = vst.msk [vmem:[%s172 + $0x134] sm:$0xf] %vm1212, %v1033
      %1291 = vst.msk [vmem:[%s172 + $0x138] sm:$0xf] %vm1212, %v1034
      %1292 = vst.msk [vmem:[%s172 + $0x13c] sm:$0xf] %vm1212, %v1035
      %1293 = vst.msk [vmem:[%s172 + $0x140] sm:$0xf] %vm1212, %v1036
      %1294 = vst.msk [vmem:[%s172 + $0x144] sm:$0xf] %vm1212, %v1037
      %1295 = vst.msk [vmem:[%s172 + $0x148] sm:$0xf] %vm1212, %v1038
      %1296 = vst.msk [vmem:[%s172 + $0x14c] sm:$0xf] %vm1212, %v1039
      %1297 = vst.msk [vmem:[%s172 + $0x150] sm:$0xf] %vm1212, %v1040
      %1298 = vst.msk [vmem:[%s172 + $0x154] sm:$0xf] %vm1212, %v1041
      %1299 = vst.msk [vmem:[%s172 + $0x158] sm:$0xf] %vm1212, %v1042
      %1300 = vst.msk [vmem:[%s172 + $0x15c] sm:$0xf] %vm1212, %v1043
      %1301 = vst.msk [vmem:[%s172 + $0x160] sm:$0xf] %vm1212, %v1044
      %1302 = vst.msk [vmem:[%s172 + $0x164] sm:$0xf] %vm1212, %v1045
      %1303 = vst.msk [vmem:[%s172 + $0x168] sm:$0xf] %vm1212, %v1046
      %1304 = vst.msk [vmem:[%s172 + $0x16c] sm:$0xf] %vm1212, %v1047
      %1305 = vst.msk [vmem:[%s172 + $0x170] sm:$0xf] %vm1212, %v1048
      %1306 = vst.msk [vmem:[%s172 + $0x174] sm:$0xf] %vm1212, %v1049
      %1307 = vst.msk [vmem:[%s172 + $0x178] sm:$0xf] %vm1212, %v1050
      %1308 = vst.msk [vmem:[%s172 + $0x17c] sm:$0xf] %vm1212, %v1051
      %1309 = vst.msk [vmem:[%s172 + $0x180] sm:$0xf] %vm1212, %v1052
      %1310 = vst.msk [vmem:[%s172 + $0x184] sm:$0xf] %vm1212, %v1053
      %1311 = vst.msk [vmem:[%s172 + $0x188] sm:$0xf] %vm1212, %v1054
      %1312 = vst.msk [vmem:[%s172 + $0x18c] sm:$0xf] %vm1212, %v1055
      %1313 = vst.msk [vmem:[%s172 + $0x190] sm:$0xf] %vm1212, %v1056
      %1314 = vst.msk [vmem:[%s172 + $0x194] sm:$0xf] %vm1212, %v1057
      %1315 = vst.msk [vmem:[%s172 + $0x198] sm:$0xf] %vm1212, %v1058
      %1316 = vst.msk [vmem:[%s172 + $0x19c] sm:$0xf] %vm1212, %v1059
      %1317 = vst.msk [vmem:[%s172 + $0x1a0] sm:$0xf] %vm1212, %v1060
      %1318 = vst.msk [vmem:[%s172 + $0x1a4] sm:$0xf] %vm1212, %v1061
      %1319 = vst.msk [vmem:[%s172 + $0x1a8] sm:$0xf] %vm1212, %v1062
      %1320 = vst.msk [vmem:[%s172 + $0x1ac] sm:$0xf] %vm1212, %v1063
      %1321 = vst.msk [vmem:[%s172 + $0x1b0] sm:$0xf] %vm1212, %v1064
      %1322 = vst.msk [vmem:[%s172 + $0x1b4] sm:$0xf] %vm1212, %v1065
      %1323 = vst.msk [vmem:[%s172 + $0x1b8] sm:$0xf] %vm1212, %v1066
      %1324 = vst.msk [vmem:[%s172 + $0x1bc] sm:$0xf] %vm1212, %v1067
      %1325 = vst.msk [vmem:[%s172 + $0x1c0] sm:$0xf] %vm1212, %v1068
      %1326 = vst.msk [vmem:[%s172 + $0x1c4] sm:$0xf] %vm1212, %v1069
      %1327 = vst.msk [vmem:[%s172 + $0x1c8] sm:$0xf] %vm1212, %v1070
      %1328 = vst.msk [vmem:[%s172 + $0x1cc] sm:$0xf] %vm1212, %v1071
      %1329 = vst.msk [vmem:[%s172 + $0x1d0] sm:$0xf] %vm1212, %v1072
      %1330 = vst.msk [vmem:[%s172 + $0x1d4] sm:$0xf] %vm1212, %v1073
      %1331 = vst.msk [vmem:[%s172 + $0x1d8] sm:$0xf] %vm1212, %v1074
      %1332 = vst.msk [vmem:[%s172 + $0x1dc] sm:$0xf] %vm1212, %v1075
      %1333 = vst.msk [vmem:[%s172 + $0x1e0] sm:$0xf] %vm1212, %v1076
      %1334 = vst.msk [vmem:[%s172 + $0x1e4] sm:$0xf] %vm1212, %v1077
      %1335 = vst.msk [vmem:[%s172 + $0x1e8] sm:$0xf] %vm1212, %v1078
      %1336 = vst.msk [vmem:[%s172 + $0x1ec] sm:$0xf] %vm1212, %v1079
      %1337 = vst.msk [vmem:[%s172 + $0x1f0] sm:$0xf] %vm1212, %v1080
      %1338 = vst.msk [vmem:[%s172 + $0x1f4] sm:$0xf] %vm1212, %v1081
      %1339 = vst.msk [vmem:[%s172 + $0x1f8] sm:$0xf] %vm1212, %v1082
      %1340 = vst.msk [vmem:[%s172 + $0x1fc] sm:$0xf] %vm1212, %v1083
      %s1341 = smul.u32 128, %s14
      %p1342 = scmp.lt.s32.totalorder %s1341, 255
      %s1343 = scalar_select %p1342, %s1341, 255
      %s1344 = smul.addr %s1343, 4
      %s1345 = scalar_lea.vmem %s3, %s1344
      // Predicated region
      $region33: #{generator_forward.37} parent=31 // pred_check
        %p1346 = pneg %p100
      $region34: #{generator_forward.37} parent=31 // pred_check_branch
        %1348 = sbr.rel (%p1346) target = $region36
      $region35: #{generator_forward.37} parent=31 // pred_region
        %s1349 = smul.u32 128, %s14
      $region36: #{generator_forward.37} parent=31 // pred_fallthru
        _
    $region32: #{generator_forward.37} parent=5 // pred_fallthru
      _
    %p1350 = scmp.le.s32.totalorder 2, %s9
    // Predicated region
    $region37: #{generator_forward.37} parent=5 // pred_check
      %p1351 = pneg %p1350
    $region38: #{generator_forward.37} parent=5 // pred_check_branch
      %1353 = sbr.rel (%p1351) target = $region40
    $region39: #{generator_forward.37} parent=5 // pred_region
      %s1354 = ssub.s32 %s9, 2
      // Predicated region
      $region41: #{generator_forward.37} parent=39 // pred_check
        %p1355 = pneg %p106
      $region42: #{generator_forward.37} parent=39 // pred_check_branch
        %1357 = sbr.rel (%p1355) target = $region44
      $region43: #{generator_forward.37} parent=39 // pred_region
        %s1358 = smul.u32 128, %s15
        %p1359 = scmp.lt.s32.totalorder %s1358, 255
        %s1360 = scalar_select %p1359, %s1358, 255
        %s1361 = smul.addr %s1360, 4
        %s1362 = scalar_lea.vmem %s3, %s1361
      $region44: #{generator_forward.37} parent=39 // pred_fallthru
        _
    $region40: #{generator_forward.37} parent=5 // pred_fallthru
      _
  $region6: #{generator_forward.37} parent=0 // loop_footer
    %s13 = sadd.s32 1, %s9
  $region7: #{generator_forward.37} parent=0 // loop_footer_branch
    %8 = sbr.rel target = $region3
  $region8: #{generator_forward.37} parent=0 // loop_exit
    _

// kernel: generator_forward.39
$region0: #{generator_forward.39}
  #allocation0 [shape = 'u32[]', space=smem, size = 0x4, offset = 0x4, fixed_abs, tag = 'smem constant byte address 0x4 - core index']
  #allocation1 [shape = 'u32[144,128]{1,0:T(1,128)}', space=vmem, size = 0x12000, scoped, tag = 'internal scratch']
  #allocation2 [shape = 'f32[16,256]{1,0:T(8,128)}', space=vmem, size = 0x4000, scoped, tag = 'scratch operand']
  %s0 = inlined_call_operand.vmem [shape: bf16[16,128], index: 0, kind: input, shape index: {}]
  %s1 = inlined_call_operand.vmem [shape: bf16[128,2048], index: 1, kind: input, shape index: {}]
  %s2 = inlined_call_operand.vmem [shape: f32[16,2048], index: 2, kind: output, shape index: {}]
  %s3 = sld [smem:[#allocation0]]
  $region106: #{generator_forward.39} parent=0
    _
  %s5 = ssub.s32 1, %s3
  %s6 = scalar_select 0, %s5, %s3
  $region1: #{generator_forward.39} parent=0
    #allocation3 [shape = 'u8[131072]{0}', space=vmem, size = 0x20000, scoped, tag = 'input window, operand 1']
    #allocation4 [shape = 'u8[32768]{0}', space=vmem, size = 0x8000, scoped, tag = 'output window, operand 0']
    loop: start=0, step=1, limit=10
    $region2: #{generator_forward.39} parent=1 // loop_pre_header
      _
    $region3: #{generator_forward.39} parent=1 // loop_header
      %s8 = sphi 0, %s12
      %p9 = scmp.ge.s32.totalorder %s8, 10
      %s15 = sphi 0, %s34
      %s16 = sphi 0, %s30
      %s17 = sphi 0, %s26
      %s18 = sphi 0, %s15
      %s19 = sphi 0, %s16
      %s20 = sphi 0, %s17
      %s21 = sphi 0, %s18
      %s22 = sphi 0, %s19
      %s23 = sphi 0, %s20
      %s39 = sphi 0, %s41
      %s42 = sphi 0, %s39
      %s43 = sphi 0, %s42
      %s59 = sphi 0, %s43
      %s67 = sphi 0, %s69
      %s70 = sphi 0, %s67
      %s71 = sphi 0, %s70
      %s87 = sphi 0, %s71
      %s95 = sphi 0, %s97
      %s98 = sphi 0, %s95
      %s99 = sphi 0, %s98
      %s115 = sphi 0, %s99
    $region4: #{generator_forward.39} parent=1 // loop_header_branch
      %11 = sbr.rel (%p9) target = $region8
    $region5: #{generator_forward.39} parent=1 // loop_body
      %s13 = ssub.s32 %s8, 1
      %s14 = ssub.s32 %s8, 2
      %s24 = sadd.s32 1, %s17
      %p25 = scmp.ge.s32.totalorder %s24, 1
      %s26 = scalar_select %p25, 0, %s24
      %s27 = sadd.s32 1, %s16
      %s28 = scalar_select %p25, %s27, %s16
      %p29 = scmp.ge.s32.totalorder %s28, 8
      %s30 = scalar_select %p29, 0, %s28
      %s31 = sadd.s32 1, %s15
      %s32 = scalar_select %p29, %s31, %s15
      %p33 = scmp.ge.s32.totalorder %s32, 1
      %s34 = scalar_select %p33, 0, %s32
      %s35 = ssub.s32 %s15, %s34
      %s36 = ssub.s32 %s17, %s26
      %s37 = sor.u32 %s35, %s36
      %p38 = scmp.eq.s32.totalorder %s37, 0
      %s40 = sadd.s32 %s39, 1
      %s41 = scalar_select %p38, %s39, %s40
      %p44 = pneg %p38
      %p45 = scmp.eq.s32.totalorder %s8, 7
      %p46 = por %p44, %p45
      %p47 = scmp.ne.s32.totalorder %s39, %s42
      %p48 = scmp.eq.s32.totalorder %s8, 0
      %p49 = por %p47, %p48
      %p50 = scmp.ne.s32.totalorder %s39, %s42
      %p51 = scmp.eq.s32.totalorder %s13, 7
      %p52 = por %p50, %p51
      %p53 = scmp.ne.s32.totalorder %s42, %s43
      %p54 = scmp.eq.s32.totalorder %s13, 0
      %p55 = por %p53, %p54
      %p56 = scmp.ne.s32.totalorder %s42, %s43
      %p57 = scmp.eq.s32.totalorder %s14, 7
      %p58 = por %p56, %p57
      %p60 = scmp.ne.s32.totalorder %s43, %s59
      %p61 = scmp.eq.s32.totalorder %s14, 0
      %p62 = por %p60, %p61
      %s63 = ssub.s32 %s17, %s26
      %s64 = ssub.s32 %s16, %s30
      %s65 = sor.u32 %s63, %s64
      %p66 = scmp.eq.s32.totalorder %s65, 0
      %s68 = sadd.s32 %s67, 1
      %s69 = scalar_select %p66, %s67, %s68
      %p72 = pneg %p66
      %p73 = scmp.eq.s32.totalorder %s8, 7
      %p74 = por %p72, %p73
      %p75 = scmp.ne.s32.totalorder %s67, %s70
      %p76 = scmp.eq.s32.totalorder %s8, 0
      %p77 = por %p75, %p76
      %p78 = scmp.ne.s32.totalorder %s67, %s70
      %p79 = scmp.eq.s32.totalorder %s13, 7
      %p80 = por %p78, %p79
      %p81 = scmp.ne.s32.totalorder %s70, %s71
      %p82 = scmp.eq.s32.totalorder %s13, 0
      %p83 = por %p81, %p82
      %p84 = scmp.ne.s32.totalorder %s70, %s71
      %p85 = scmp.eq.s32.totalorder %s14, 7
      %p86 = por %p84, %p85
      %p88 = scmp.ne.s32.totalorder %s71, %s87
      %p89 = scmp.eq.s32.totalorder %s14, 0
      %p90 = por %p88, %p89
      %s91 = ssub.s32 %s15, %s34
      %s92 = ssub.s32 %s16, %s30
      %s93 = sor.u32 %s91, %s92
      %p94 = scmp.eq.s32.totalorder %s93, 0
      %s96 = sadd.s32 %s95, 1
      %s97 = scalar_select %p94, %s95, %s96
      %p100 = pneg %p94
      %p101 = scmp.eq.s32.totalorder %s8, 7
      %p102 = por %p100, %p101
      %p103 = scmp.ne.s32.totalorder %s95, %s98
      %p104 = scmp.eq.s32.totalorder %s8, 0
      %p105 = por %p103, %p104
      %p106 = scmp.ne.s32.totalorder %s95, %s98
      %p107 = scmp.eq.s32.totalorder %s13, 7
      %p108 = por %p106, %p107
      %p109 = scmp.ne.s32.totalorder %s98, %s99
      %p110 = scmp.eq.s32.totalorder %s13, 0
      %p111 = por %p109, %p110
      %p112 = scmp.ne.s32.totalorder %s98, %s99
      %p113 = scmp.eq.s32.totalorder %s14, 7
      %p114 = por %p112, %p113
      %p116 = scmp.ne.s32.totalorder %s99, %s115
      %p117 = scmp.eq.s32.totalorder %s14, 0
      %p118 = por %p116, %p117
      %p119 = scmp.le.s32.totalorder 1, %s8
      %p120 = scmp.lt.s32.totalorder %s8, 9
      %p121 = pnand %p119, %p120
      %p122 = pneg %p121
      // Predicated region
      $region9: #{generator_forward.39} parent=5 // pred_check
        _
      $region10: #{generator_forward.39} parent=5 // pred_check_branch
        %124 = sbr.rel (%p121) target = $region12
      $region11: #{generator_forward.39} parent=5 // pred_region
        %s125 = ssub.s32 %s8, 1
        // Predicated region
        $region13: #{generator_forward.39} parent=11 // pred_check
          %p126 = pneg %p55
        $region14: #{generator_forward.39} parent=11 // pred_check_branch
          %128 = sbr.rel (%p126) target = $region16
        $region15: #{generator_forward.39} parent=11 // pred_region
          %s129 = smul.u32 2, %s18
          %p130 = scmp.lt.s32.totalorder %s129, 1
          %s131 = scalar_select %p130, %s129, 1
          %p132 = scmp.lt.s32.totalorder %s20, 0
          %s133 = scalar_select %p132, %s20, 0
          %s134 = sadd.s32 %s133, %s131
          %s135 = smul.addr %s134, 4
          %s136 = scalar_lea.vmem %s0, %s135
          %s137 = smul.u32 2, %s18
        $region16: #{generator_forward.39} parent=11 // pred_fallthru
          _
      $region12: #{generator_forward.39} parent=5 // pred_fallthru
        _
      %p138 = scmp.lt.s32.totalorder %s8, 8
      // Predicated region
      $region17: #{generator_forward.39} parent=5 // pred_check
        %p139 = pneg %p138
      $region18: #{generator_forward.39} parent=5 // pred_check_branch
        %141 = sbr.rel (%p139) target = $region20
      $region19: #{generator_forward.39} parent=5 // pred_region
        // Predicated region
        $region21: #{generator_forward.39} parent=19 // pred_check
          %p142 = pneg %p77
        $region22: #{generator_forward.39} parent=19 // pred_check_branch
          %144 = sbr.rel (%p142) target = $region24
        $region23: #{generator_forward.39} parent=19 // pred_region
          %s145 = sand.u32 %s67, 1
          %s146 = sand.u32 %s67, 1
          %s147 = smul.addr %s146, 128
          %s148 = scalar_lea.vmem [#allocation3], %s147
          %s149 = smul.u32 16, %s17
          %s150 = smul.u32 2, %s16
          %s151 = smul.addr %s149, 16
          %s152 = sadd.s32 %s150, %s151
          %s153 = smul.addr %s152, 4
          %s154 = scalar_lea.vmem %s1, %s153
          // Predicated region
          $region25: #{generator_forward.39} parent=23 // pred_check
            _
          $region26: #{generator_forward.39} parent=23 // pred_check_branch
            %156 = sbr.rel (0) target = $region28
          $region27: #{generator_forward.39} parent=23 // pred_region
            // Predicated region
            $region29: #{generator_forward.39} parent=27 // pred_check
              _
            $region30: #{generator_forward.39} parent=27 // pred_check_branch
              %158 = sbr.rel (0) target = $region32
            $region31: #{generator_forward.39} parent=27 // pred_region
              // Predicated region
              $region44: #{generator_forward.39} parent=31 // pred_check
                _
              $region45: #{generator_forward.39} parent=31 // pred_check_branch
                %203 = sbr.rel (0) target = $region47
              $region46: #{generator_forward.39} parent=31 // pred_region
                loop: start=0, step=1, limit=1
                $region48: #{generator_forward.39} parent=46 // loop_pre_header
                  _
                $region49: #{generator_forward.39} parent=46 // loop_header
                  %s205 = sphi 0, %s209
                  %p206 = scmp.ge.s32.totalorder %s205, 1
                  %s210 = sphi %s154, %s154
                  %s211 = sphi %s148, %s148
                $region50: #{generator_forward.39} parent=46 // loop_header_branch
                  %208 = sbr.rel (%p206) target = $region54
                $region51: #{generator_forward.39} parent=46 // loop_body
                  %v212 = vld [vmem:[%s210] sm:$0xff]
                  %213 = vst [vmem:[%s211] sm:$0xff] %v212
                  %v214 = vld [vmem:[%s210 + $0x40] sm:$0xff]
                  %215 = vst [vmem:[%s211 + $0x8] sm:$0xff] %v214
                  %v216 = vld [vmem:[%s210 + $0x80] sm:$0xff]
                  %217 = vst [vmem:[%s211 + $0x10] sm:$0xff] %v216
                  %v218 = vld [vmem:[%s210 + $0xc0] sm:$0xff]
                  %219 = vst [vmem:[%s211 + $0x18] sm:$0xff] %v218
                  %v220 = vld [vmem:[%s210 + $0x100] sm:$0xff]
                  %221 = vst [vmem:[%s211 + $0x20] sm:$0xff] %v220
                  %v222 = vld [vmem:[%s210 + $0x140] sm:$0xff]
                  %223 = vst [vmem:[%s211 + $0x28] sm:$0xff] %v222
                  %v224 = vld [vmem:[%s210 + $0x180] sm:$0xff]
                  %225 = vst [vmem:[%s211 + $0x30] sm:$0xff] %v224
                  %v226 = vld [vmem:[%s210 + $0x1c0] sm:$0xff]
                  %227 = vst [vmem:[%s211 + $0x38] sm:$0xff] %v226
                  %v228 = vld [vmem:[%s210 + $0x200] sm:$0xff]
                  %229 = vst [vmem:[%s211 + $0x40] sm:$0xff] %v228
                  %v230 = vld [vmem:[%s210 + $0x240] sm:$0xff]
                  %231 = vst [vmem:[%s211 + $0x48] sm:$0xff] %v230
                  %v232 = vld [vmem:[%s210 + $0x280] sm:$0xff]
                  %233 = vst [vmem:[%s211 + $0x50] sm:$0xff] %v232
                  %v234 = vld [vmem:[%s210 + $0x2c0] sm:$0xff]
                  %235 = vst [vmem:[%s211 + $0x58] sm:$0xff] %v234
                  %v236 = vld [vmem:[%s210 + $0x300] sm:$0xff]
                  %237 = vst [vmem:[%s211 + $0x60] sm:$0xff] %v236
                  %v238 = vld [vmem:[%s210 + $0x340] sm:$0xff]
                  %239 = vst [vmem:[%s211 + $0x68] sm:$0xff] %v238
                  %v240 = vld [vmem:[%s210 + $0x380] sm:$0xff]
                  %241 = vst [vmem:[%s211 + $0x70] sm:$0xff] %v240
                  %v242 = vld [vmem:[%s210 + $0x3c0] sm:$0xff]
                  %243 = vst [vmem:[%s211 + $0x78] sm:$0xff] %v242
                $region52: #{generator_forward.39} parent=46 // loop_footer
                  %s209 = sadd.s32 1, %s205
                $region53: #{generator_forward.39} parent=46 // loop_footer_branch
                  %204 = sbr.rel target = $region49
                $region54: #{generator_forward.39} parent=46 // loop_exit
                  _
              $region47: #{generator_forward.39} parent=31 // pred_fallthru
                _
              // Predicated region
              $region55: #{generator_forward.39} parent=31 // pred_check
                _
              $region56: #{generator_forward.39} parent=31 // pred_check_branch
                %245 = sbr.rel target = $region58
              $region57: #{generator_forward.39} parent=31 // pred_region
                _
              $region58: #{generator_forward.39} parent=31 // pred_fallthru
                _
            $region32: #{generator_forward.39} parent=27 // pred_fallthru
              _
            // Predicated region
            $region33: #{generator_forward.39} parent=27 // pred_check
              _
            $region34: #{generator_forward.39} parent=27 // pred_check_branch
              %160 = sbr.rel target = $region36
            $region35: #{generator_forward.39} parent=27 // pred_region
              loop: start=0, step=1, limit=1
              $region37: #{generator_forward.39} parent=35 // loop_pre_header
                _
              $region38: #{generator_forward.39} parent=35 // loop_header
                %s163 = sphi 0, %s167
                %p164 = scmp.ge.s32.totalorder %s163, 1
                %s168 = sphi %s154, %s154
                %s169 = sphi %s148, %s148
              $region39: #{generator_forward.39} parent=35 // loop_header_branch
                %166 = sbr.rel (%p164) target = $region43
              $region40: #{generator_forward.39} parent=35 // loop_body
                %v170 = vld [vmem:[%s168] sm:$0xff]
                %171 = vst [vmem:[%s169] sm:$0xff] %v170
                %v172 = vld [vmem:[%s168 + $0x40] sm:$0xff]
                %173 = vst [vmem:[%s169 + $0x8] sm:$0xff] %v172
                %v174 = vld [vmem:[%s168 + $0x80] sm:$0xff]
                %175 = vst [vmem:[%s169 + $0x10] sm:$0xff] %v174
                %v176 = vld [vmem:[%s168 + $0xc0] sm:$0xff]
                %177 = vst [vmem:[%s169 + $0x18] sm:$0xff] %v176
                %v178 = vld [vmem:[%s168 + $0x100] sm:$0xff]
                %179 = vst [vmem:[%s169 + $0x20] sm:$0xff] %v178
                %v180 = vld [vmem:[%s168 + $0x140] sm:$0xff]
                %181 = vst [vmem:[%s169 + $0x28] sm:$0xff] %v180
                %v182 = vld [vmem:[%s168 + $0x180] sm:$0xff]
                %183 = vst [vmem:[%s169 + $0x30] sm:$0xff] %v182
                %v184 = vld [vmem:[%s168 + $0x1c0] sm:$0xff]
                %185 = vst [vmem:[%s169 + $0x38] sm:$0xff] %v184
                %v186 = vld [vmem:[%s168 + $0x200] sm:$0xff]
                %187 = vst [vmem:[%s169 + $0x40] sm:$0xff] %v186
                %v188 = vld [vmem:[%s168 + $0x240] sm:$0xff]
                %189 = vst [vmem:[%s169 + $0x48] sm:$0xff] %v188
                %v190 = vld [vmem:[%s168 + $0x280] sm:$0xff]
                %191 = vst [vmem:[%s169 + $0x50] sm:$0xff] %v190
                %v192 = vld [vmem:[%s168 + $0x2c0] sm:$0xff]
                %193 = vst [vmem:[%s169 + $0x58] sm:$0xff] %v192
                %v194 = vld [vmem:[%s168 + $0x300] sm:$0xff]
                %195 = vst [vmem:[%s169 + $0x60] sm:$0xff] %v194
                %v196 = vld [vmem:[%s168 + $0x340] sm:$0xff]
                %197 = vst [vmem:[%s169 + $0x68] sm:$0xff] %v196
                %v198 = vld [vmem:[%s168 + $0x380] sm:$0xff]
                %199 = vst [vmem:[%s169 + $0x70] sm:$0xff] %v198
                %v200 = vld [vmem:[%s168 + $0x3c0] sm:$0xff]
                %201 = vst [vmem:[%s169 + $0x78] sm:$0xff] %v200
              $region41: #{generator_forward.39} parent=35 // loop_footer
                %s167 = sadd.s32 1, %s163
              $region42: #{generator_forward.39} parent=35 // loop_footer_branch
                %162 = sbr.rel target = $region38
              $region43: #{generator_forward.39} parent=35 // loop_exit
                _
            $region36: #{generator_forward.39} parent=27 // pred_fallthru
              _
          $region28: #{generator_forward.39} parent=23 // pred_fallthru
            _
          %246 = vnop
        $region24: #{generator_forward.39} parent=19 // pred_fallthru
          _
      $region20: #{generator_forward.39} parent=5 // pred_fallthru
        _
      %p247 = scmp.le.s32.totalorder 1, %s8
      %p248 = scmp.lt.s32.totalorder %s8, 9
      %p249 = pnand %p247, %p248
      %p250 = pneg %p249
      // Predicated region
      $region59: #{generator_forward.39} parent=5 // pred_check
        _
      $region60: #{generator_forward.39} parent=5 // pred_check_branch
        %252 = sbr.rel (%p249) target = $region62
      $region61: #{generator_forward.39} parent=5 // pred_region
        %s253 = ssub.s32 %s8, 1
        %s254 = sand.u32 %s70, 1
        %s255 = sand.u32 %s70, 1
        %s256 = smul.addr %s255, 128
        %s257 = scalar_lea.vmem [#allocation3], %s256
        // Predicated region
        $region63: #{generator_forward.39} parent=61 // pred_check
          %p258 = pneg %p83
        $region64: #{generator_forward.39} parent=61 // pred_check_branch
          %260 = sbr.rel (%p258) target = $region66
        $region65: #{generator_forward.39} parent=61 // pred_region
          _
        $region66: #{generator_forward.39} parent=61 // pred_fallthru
          _
        %s261 = smul.u32 2, %s18
        %p262 = scmp.lt.s32.totalorder %s261, 1
        %s263 = scalar_select %p262, %s261, 1
        %p264 = scmp.lt.s32.totalorder %s20, 0
        %s265 = scalar_select %p264, %s20, 0
        %s266 = sadd.s32 %s265, %s263
        %s267 = smul.addr %s266, 4
        %s268 = scalar_lea.vmem %s0, %s267
        %p269 = pneg %p55
        %p270 = pneg %p52
        %s271 = sand.u32 %s70, 1
        %s272 = sand.u32 %s70, 1
        %s273 = smul.addr %s272, 128
        %s274 = scalar_lea.vmem [#allocation3], %s273
        %p275 = pneg %p83
        %p276 = pneg %p80
        %p277 = pneg %p111
        %p278 = pneg %p108
        %s279 = sand.u32 %s98, 1
        %s280 = sand.u32 %s98, 1
        %s281 = smul.addr %s280, 32
        %s282 = scalar_lea.vmem [#allocation4], %s281
        %s283 = smul.u32 2, %s18
        %p284 = scmp.lt.s32.totalorder %s283, 1
        %s285 = scalar_select %p284, %s283, 1
        %p286 = scmp.lt.s32.totalorder %s20, 0
        %s287 = scalar_select %p286, %s20, 0
        %s288 = sadd.s32 %s287, %s285
        %s289 = smul.addr %s288, 4
        %s290 = scalar_lea.vmem %s0, %s289
        %s291 = smul.u32 2, %s18
        %s292 = smul.u32 16, %s20
        %s293 = smul.u32 2, %s19
        %s294 = smul.u32 2, %s18
        %s295 = smul.u32 2, %s19
        %p297 = scmp.eq.s32.totalorder %s20, 0
        // Predicated region
        $region67: #{generator_forward.39} parent=61 // pred_check
          %p298 = pneg %p297
        $region68: #{generator_forward.39} parent=61 // pred_check_branch
          %300 = sbr.rel (%p298) target = $region70
        $region69: #{generator_forward.39} parent=61 // pred_region
          %301 = vst [vmem:[#allocation2] sm:$0xff] 0.0
          %302 = vst [vmem:[#allocation2 + $0x8] sm:$0xff] 0.0
          %303 = vst [vmem:[#allocation2 + $0x10] sm:$0xff] 0.0
          %304 = vst [vmem:[#allocation2 + $0x18] sm:$0xff] 0.0
        $region70: #{generator_forward.39} parent=61 // pred_fallthru
          _
        %v305 = vld [vmem:[#allocation2] sm:$0xff]
        %v306 = vld [vmem:[#allocation2 + $0x8] sm:$0xff]
        %v307 = vld [vmem:[#allocation2 + $0x10] sm:$0xff]
        %v308 = vld [vmem:[#allocation2 + $0x18] sm:$0xff]
        %v309 = vld [vmem:[%s290] sm:$0xf]
        %v310 = vld [vmem:[%s290 + $0x4] sm:$0xf]
        %v311 = vld [vmem:[%s257] sm:$0xff]
        %v312 = vld [vmem:[%s257 + $0x8] sm:$0xff]
        %v313 = vld [vmem:[%s257 + $0x10] sm:$0xff]
        %v314 = vld [vmem:[%s257 + $0x18] sm:$0xff]
        %v315 = vld [vmem:[%s257 + $0x20] sm:$0xff]
        %v316 = vld [vmem:[%s257 + $0x28] sm:$0xff]
        %v317 = vld [vmem:[%s257 + $0x30] sm:$0xff]
        %v318 = vld [vmem:[%s257 + $0x38] sm:$0xff]
        %v319 = vld [vmem:[%s257 + $0x40] sm:$0xff]
        %v320 = vld [vmem:[%s257 + $0x48] sm:$0xff]
        %v321 = vld [vmem:[%s257 + $0x50] sm:$0xff]
        %v322 = vld [vmem:[%s257 + $0x58] sm:$0xff]
        %v323 = vld [vmem:[%s257 + $0x60] sm:$0xff]
        %v324 = vld [vmem:[%s257 + $0x68] sm:$0xff]
        %v325 = vld [vmem:[%s257 + $0x70] sm:$0xff]
        %v326 = vld [vmem:[%s257 + $0x78] sm:$0xff]
        %v329 = vunpack.c.l.b16 %v309
        %v330 = vunpack.c.l.b16 %v310
        %v331 = vpack.c.b16 %v330, %v329
        %v349 = vunpack.c.l.b16 %v311
        %v350 = vunpack.c.h.b16 %v311
        %v351 = vunpack.c.l.b16 %v312
        %v352 = vunpack.c.h.b16 %v312
        %v353 = vunpack.c.l.b16 %v313
        %v354 = vunpack.c.h.b16 %v313
        %v355 = vunpack.c.l.b16 %v314
        %v356 = vunpack.c.h.b16 %v314
        %v357 = vunpack.c.l.b16 %v315
        %v358 = vunpack.c.h.b16 %v315
        %v359 = vunpack.c.l.b16 %v316
        %v360 = vunpack.c.h.b16 %v316
        %v361 = vunpack.c.l.b16 %v317
        %v362 = vunpack.c.h.b16 %v317
        %v363 = vunpack.c.l.b16 %v318
        %v364 = vunpack.c.h.b16 %v318
        %v365 = vunpack.c.l.b16 %v319
        %v366 = vunpack.c.h.b16 %v319
        %v367 = vunpack.c.l.b16 %v320
        %v368 = vunpack.c.h.b16 %v320
        %v369 = vunpack.c.l.b16 %v321
        %v370 = vunpack.c.h.b16 %v321
        %v371 = vunpack.c.l.b16 %v322
        %v372 = vunpack.c.h.b16 %v322
        %v373 = vunpack.c.l.b16 %v323
        %v374 = vunpack.c.h.b16 %v323
        %v375 = vunpack.c.l.b16 %v324
        %v376 = vunpack.c.h.b16 %v324
        %v377 = vunpack.c.l.b16 %v325
        %v378 = vunpack.c.h.b16 %v325
        %v379 = vunpack.c.l.b16 %v326
        %v380 = vunpack.c.h.b16 %v326
        %v381 = vpack.c.b16 %v351, %v349
        %v382 = vpack.c.b16 %v352, %v350
        %v383 = vpack.c.b16 %v355, %v353
        %v384 = vpack.c.b16 %v356, %v354
        %v385 = vpack.c.b16 %v359, %v357
        %v386 = vpack.c.b16 %v360, %v358
        %v387 = vpack.c.b16 %v363, %v361
        %v388 = vpack.c.b16 %v364, %v362
        %v389 = vpack.c.b16 %v367, %v365
        %v390 = vpack.c.b16 %v368, %v366
        %v391 = vpack.c.b16 %v371, %v369
        %v392 = vpack.c.b16 %v372, %v370
        %v393 = vpack.c.b16 %v375, %v373
        %v394 = vpack.c.b16 %v376, %v374
        %v395 = vpack.c.b16 %v379, %v377
        %v396 = vpack.c.b16 %v380, %v378
        %413 = vmatprep.subr.bf16.mxu0 %v382
        %414 = vmatpush1.bf16.msra.mxu0 %v381
        %415 = vmatprep.subr.bf16.mxu0 %v384
        %416 = vmatpush1.bf16.msra.mxu0 %v383
        %417 = vmatprep.subr.bf16.mxu0 %v386
        %418 = vmatpush1.bf16.msra.mxu0 %v385
        %419 = vmatprep.subr.bf16.mxu0 %v388
        %420 = vmatpush1.bf16.msra.mxu0 %v387
        %421 = vmatprep.subr.bf16.mxu0 %v390
        %422 = vmatpush1.bf16.msra.mxu0 %v389
        %423 = vmatprep.subr.bf16.mxu0 %v392
        %424 = vmatpush1.bf16.msra.mxu0 %v391
        %425 = vmatprep.subr.bf16.mxu0 %v394
        %426 = vmatpush1.bf16.msra.mxu0 %v393
        %427 = vmatprep.subr.bf16.mxu0 %v396
        %428 = vmatpush1.bf16.msra.mxu0 %v395
        %429 = vmatprep.subr.bf16.mxu0 0
        %430 = vmatpush1.bf16.msra.mxu0 0
        %431 = vmatprep.subr.bf16.mxu0 0
        %432 = vmatpush1.bf16.msra.mxu0 0
        %433 = vmatprep.subr.bf16.mxu0 0
        %434 = vmatpush1.bf16.msra.mxu0 0
        %435 = vmatprep.subr.bf16.mxu0 0
        %436 = vmatpush1.bf16.msra.mxu0 0
        %437 = vmatprep.subr.bf16.mxu0 0
        %438 = vmatpush1.bf16.msra.mxu0 0
        %439 = vmatprep.subr.bf16.mxu0 0
        %440 = vmatpush1.bf16.msra.mxu0 0
        %441 = vmatprep.subr.bf16.mxu0 0
        %442 = vmatpush1.bf16.msra.mxu0 0
        %443 = vmatprep.subr.bf16.mxu0 0
        %444 = vmatpush1.bf16.msra.mxu0 0
        %445 = vmatprep.mubr.bf16.mxu0 0
        %446 = vmatmul.mubr.bf16.gmra.mrb[0].mxu0 %v331
        %v447 = vpop.f32.mrb[0].mxu0
        %v448 = vadd.f32 0.0, %v447
        %v449 = vpop.f32.mrb[0].mxu0
        %v450 = vadd.f32 0.0, %v449
        %v451 = vpop.f32.mrb[0].mxu0
        %v452 = vadd.f32 0.0, %v451
        %v453 = vpop.f32.mrb[0].mxu0
        %v454 = vadd.f32 0.0, %v453
        %455 = vdwg.mxu0
        %v456 = vadd.f32 %v305, %v448
        %v457 = vadd.f32 %v306, %v450
        %v458 = vadd.f32 %v307, %v452
        %v459 = vadd.f32 %v308, %v454
        %460 = vst [vmem:[#allocation2] sm:$0xff] %v456
        %461 = vst [vmem:[#allocation2 + $0x8] sm:$0xff] %v457
        %462 = vst [vmem:[#allocation2 + $0x10] sm:$0xff] %v458
        %463 = vst [vmem:[#allocation2 + $0x18] sm:$0xff] %v459
        // Predicated region
        $region71: #{generator_forward.39} parent=61 // pred_check
          %p464 = pneg %p297
        $region72: #{generator_forward.39} parent=61 // pred_check_branch
          %466 = sbr.rel (%p464) target = $region74
        $region73: #{generator_forward.39} parent=61 // pred_region
          %v467 = vld [vmem:[#allocation2] sm:$0xff]
          %v468 = vld [vmem:[#allocation2 + $0x8] sm:$0xff]
          %v469 = vld [vmem:[#allocation2 + $0x10] sm:$0xff]
          %v470 = vld [vmem:[#allocation2 + $0x18] sm:$0xff]
          %v471 = vtanh.pop %v467
          %v472 = vtanh.pop %v468
          %v473 = vtanh.pop %v469
          %v474 = vtanh.pop %v470
          %475 = vst [vmem:[%s282] sm:$0xff] %v471
          %476 = vst [vmem:[%s282 + $0x8] sm:$0xff] %v472
          %477 = vst [vmem:[%s282 + $0x10] sm:$0xff] %v473
          %478 = vst [vmem:[%s282 + $0x18] sm:$0xff] %v474
        $region74: #{generator_forward.39} parent=61 // pred_fallthru
          _
        %s479 = sand.u32 %s98, 1
        %s480 = sand.u32 %s98, 1
        %s481 = smul.addr %s480, 32
        %s482 = scalar_lea.vmem [#allocation4], %s481
        // Predicated region
        $region75: #{generator_forward.39} parent=61 // pred_check
          %p483 = pneg %p108
        $region76: #{generator_forward.39} parent=61 // pred_check_branch
          %485 = sbr.rel (%p483) target = $region78
        $region77: #{generator_forward.39} parent=61 // pred_region
          %s486 = smul.u32 2, %s18
          %s487 = smul.u32 2, %s19
          %s488 = smul.addr %s486, 16
          %s489 = sadd.s32 %s487, %s488
          %s490 = smul.addr %s489, 8
          %s491 = scalar_lea.vmem %s2, %s490
          // Predicated region
          $region79: #{generator_forward.39} parent=77 // pred_check
            _
          $region80: #{generator_forward.39} parent=77 // pred_check_branch
            %493 = sbr.rel (0) target = $region82
          $region81: #{generator_forward.39} parent=77 // pred_region
            // Predicated region
            $region83: #{generator_forward.39} parent=81 // pred_check
              _
            $region84: #{generator_forward.39} parent=81 // pred_check_branch
              %495 = sbr.rel (0) target = $region86
            $region85: #{generator_forward.39} parent=81 // pred_region
              loop: start=0, step=1, limit=1
              $region87: #{generator_forward.39} parent=85 // loop_pre_header
                _
              $region88: #{generator_forward.39} parent=85 // loop_header
                %s497 = sphi 0, %s501
                %p498 = scmp.ge.s32.totalorder %s497, 1
                %s502 = sphi %s482, %s482
                %s503 = sphi %s491, %s491
              $region89: #{generator_forward.39} parent=85 // loop_header_branch
                %500 = sbr.rel (%p498) target = $region93
              $region90: #{generator_forward.39} parent=85 // loop_body
                %v504 = vld [vmem:[%s502] sm:$0xff]
                %505 = vst [vmem:[%s503] sm:$0xff] %v504
                %v506 = vld [vmem:[%s502 + $0x8] sm:$0xff]
                %507 = vst [vmem:[%s503 + $0x8] sm:$0xff] %v506
                %v508 = vld [vmem:[%s502 + $0x10] sm:$0xff]
                %509 = vst [vmem:[%s503 + $0x80] sm:$0xff] %v508
                %v510 = vld [vmem:[%s502 + $0x18] sm:$0xff]
                %511 = vst [vmem:[%s503 + $0x88] sm:$0xff] %v510
              $region91: #{generator_forward.39} parent=85 // loop_footer
                %s501 = sadd.s32 1, %s497
              $region92: #{generator_forward.39} parent=85 // loop_footer_branch
                %496 = sbr.rel target = $region88
              $region93: #{generator_forward.39} parent=85 // loop_exit
                _
            $region86: #{generator_forward.39} parent=81 // pred_fallthru
              _
            // Predicated region
            $region94: #{generator_forward.39} parent=81 // pred_check
              _
            $region95: #{generator_forward.39} parent=81 // pred_check_branch
              %513 = sbr.rel target = $region97
            $region96: #{generator_forward.39} parent=81 // pred_region
              _
            $region97: #{generator_forward.39} parent=81 // pred_fallthru
              _
          $region82: #{generator_forward.39} parent=77 // pred_fallthru
            _
          %514 = vnop
        $region78: #{generator_forward.39} parent=61 // pred_fallthru
          _
      $region62: #{generator_forward.39} parent=5 // pred_fallthru
        _
      %p515 = scmp.le.s32.totalorder 2, %s8
      // Predicated region
      $region98: #{generator_forward.39} parent=5 // pred_check
        %p516 = pneg %p515
      $region99: #{generator_forward.39} parent=5 // pred_check_branch
        %518 = sbr.rel (%p516) target = $region101
      $region100: #{generator_forward.39} parent=5 // pred_region
        %s519 = ssub.s32 %s8, 2
        // Predicated region
        $region102: #{generator_forward.39} parent=100 // pred_check
          %p520 = pneg %p114
        $region103: #{generator_forward.39} parent=100 // pred_check_branch
          %522 = sbr.rel (%p520) target = $region105
        $region104: #{generator_forward.39} parent=100 // pred_region
          %s523 = sand.u32 %s99, 1
          %s524 = sand.u32 %s99, 1
          %s525 = smul.addr %s524, 32
          %s526 = scalar_lea.vmem [#allocation4], %s525
        $region105: #{generator_forward.39} parent=100 // pred_fallthru
          _
      $region101: #{generator_forward.39} parent=5 // pred_fallthru
        _
    $region6: #{generator_forward.39} parent=1 // loop_footer
      %s12 = sadd.s32 1, %s8
    $region7: #{generator_forward.39} parent=1 // loop_footer_branch
      %7 = sbr.rel target = $region3
    $region8: #{generator_forward.39} parent=1 // loop_exit
      _

</llo_original>
